<compile_context>
chip_gen: v6e
topology: v6e:2x2x1
jax: 0.10.0
libtpu: 0.0.40
codegen_flags: <defaults>
</compile_context>

<pallas_src>
import functools
import math

import jax
import jax.numpy as jnp
from jax.experimental import pallas as pl
from jax.experimental.pallas import tpu as pltpu


# --------------------------------------------------------------------------
# Fused Pallas kernel
# --------------------------------------------------------------------------

def _eeg_fused_kernel(x_ref,
                      wb1_ref, bb1_ref, p1_ref, e1_ref, g1_ref, be1_ref,
                      wb2_ref, bb2_ref, p2_ref, e2_ref, g2_ref, be2_ref,
                      wb3_ref, bb3_ref, p3_ref, e3_ref, g3_ref, be3_ref,
                      wb4_ref, bb4_ref, p4_ref, e4_ref, g4_ref, be4_ref,
                      rep_ref, h0_ref, wi_ref, wh_ref, bi_ref, bh_ref,
                      wd_ref, bd_ref,
                      y_ref, hn_ref):
    B = x_ref.shape[0]                 # real flattened batch (= firstDim*secondDim)
    NP, HP = h0_ref.shape              # sublane-padded GRU batch, lane-padded hidden
    S = rep_ref.shape[0] // NP         # sequence length (= secondDim)

    def fc_layer(act, wb_ref_, bb_ref_, p_ref_, e_ref_, g_ref_, be_ref_):
        # Linear with a pre-expanded block-structured weight (the permutes of
        # the original module folded in) on a lane-dense (B, feat) tile.
        wv = wb_ref_[...]
        z = jnp.dot(act.astype(wv.dtype), wv,
                    preferred_element_type=jnp.float32) + bb_ref_[...]
        # Training-mode BatchNorm1d: ONE thin (feat, C) reduction matmul gives
        # per-row channel means of z and z^2 (stacked along sublanes), then
        # var = E[z^2] - mean^2 (clamped) -- no square BN matmuls.
        stats = jnp.dot(jnp.concatenate([z, z * z], axis=0), p_ref_[...],
                        preferred_element_type=jnp.float32)
        mean = jnp.mean(stats[:B], axis=0, keepdims=True)       # (1, C)
        mean_sq = jnp.mean(stats[B:], axis=0, keepdims=True)    # (1, C)
        var = jnp.maximum(mean_sq - mean * mean, 0.0)
        scale = g_ref_[...] * jax.lax.rsqrt(var + 1e-5)         # (1, C)
        shift = be_ref_[...] - scale * mean                     # (1, C)
        # Broadcast per-channel scale/shift back to the flat feature layout
        # with a tiny (C, feat) 0/1 expand matmul; fuse BN + LeakyReLU(0.2).
        a_full = jnp.dot(scale, e_ref_[...], preferred_element_type=jnp.float32)
        b_full = jnp.dot(shift, e_ref_[...], preferred_element_type=jnp.float32)
        out = z * a_full + b_full
        return jnp.maximum(out, 0.2 * out)                      # LeakyReLU(0.2)

    a = fc_layer(x_ref[...], wb1_ref, bb1_ref, p1_ref, e1_ref, g1_ref, be1_ref)
    a = fc_layer(a, wb2_ref, bb2_ref, p2_ref, e2_ref, g2_ref, be2_ref)
    a = fc_layer(a, wb3_ref, bb3_ref, p3_ref, e3_ref, g3_ref, be3_ref)
    a = fc_layer(a, wb4_ref, bb4_ref, p4_ref, e4_ref, g4_ref, be4_ref)
    # `a` is (B, flatSize) in the GRU flat order (permute(1,0,3,2) folded in).

    # Seq-major reorder + sublane padding of the GRU batch as ONE tiny 0/1
    # replication matmul on the MXU (rows of `rep` pick/replicate FC rows),
    # so there is no host-side transpose and no per-step strided row slices.
    a_seq = jnp.dot(rep_ref[...], a, preferred_element_type=jnp.float32)

    # GRU with gates fused AND lane-padded as [ r | z | n ], one 128-lane
    # segment per gate.  Input projection for ALL timesteps hoisted into one
    # matmul; only the hidden projection stays in the recurrence; h stays in
    # vregs.  Padded lanes/rows stay inert (zero weight/bias columns).
    wiv = wi_ref[...]
    gi_all = jnp.dot(a_seq.astype(wiv.dtype), wiv,
                     preferred_element_type=jnp.float32) + bi_ref[...]
    whv = wh_ref[...]
    bh = bh_ref[...]
    h = h0_ref[...]                    # (NP, HP)
    hs = []
    # TODO(synk): for long sequences switch this static unroll to
    # lax.fori_loop (h carried, hall in an aligned VMEM scratch) to bound
    # vreg live ranges; at small S the full unroll is fastest.
    for s in range(S):
        gi = gi_all[s * NP:(s + 1) * NP, :]          # 8-row / 128-lane aligned
        gh = jnp.dot(h.astype(whv.dtype), whv,
                     preferred_element_type=jnp.float32) + bh
        r = jax.nn.sigmoid(gi[:, :HP] + gh[:, :HP])
        zg = jax.nn.sigmoid(gi[:, HP:2 * HP] + gh[:, HP:2 * HP])
        n = jnp.tanh(gi[:, 2 * HP:] + r * gh[:, 2 * HP:])
        h = (1.0 - zg) * n + zg * h
        hs.append(h)
    hn_ref[...] = h                    # one dense 128-lane store

    # Decide head hoisted out of the recurrence: hidden states stay in vregs
    # (no VMEM scratch round trip), one matmul, lane-dense (128-wide) store.
    hall = jnp.concatenate(hs, axis=0)                # (S*NP, HP)
    wdv = wd_ref[...]
    y_ref[...] = jnp.dot(hall.astype(wdv.dtype), wdv,
                         preferred_element_type=jnp.float32) + bd_ref[...]


def _fused_call(packed, x0, rep, h0):
    SNP = rep.shape[0]
    NP, HP = h0.shape
    OP = packed["wd"].shape[1]
    args = (x0,
            packed["wb1"], packed["bb1"], packed["p1"], packed["e1"], packed["g1"], packed["be1"],
            packed["wb2"], packed["bb2"], packed["p2"], packed["e2"], packed["g2"], packed["be2"],
            packed["wb3"], packed["bb3"], packed["p3"], packed["e3"], packed["g3"], packed["be3"],
            packed["wb4"], packed["bb4"], packed["p4"], packed["e4"], packed["g4"], packed["be4"],
            rep, h0, packed["wi"], packed["wh"], packed["bi"], packed["bh"],
            packed["wd"], packed["bd"])
    vmem = pl.BlockSpec(memory_space=pltpu.MemorySpace.VMEM)
    # TODO(synk): for production sizes add a batch-tile grid with
    # dimension_semantics=("parallel",) (v7x 2-TC split + DMA pipelining);
    # it requires a two-pass BN (global stats, then normalize) because
    # training-mode BatchNorm couples every row of the batch.
    return pl.pallas_call(
        _eeg_fused_kernel,
        out_shape=(jax.ShapeDtypeStruct((SNP, OP), jnp.float32),
                   jax.ShapeDtypeStruct((NP, HP), jnp.float32)),
        in_specs=[vmem] * len(args),
        out_specs=(vmem, vmem),
        compiler_params=pltpu.CompilerParams(
            # Explicit VMEM budget: above v5e's 16 MiB scoped default, below
            # v7x's 64 MiB physical VMEM.
            vmem_limit_bytes=32 * 1024 * 1024),
    )(*args)


# --------------------------------------------------------------------------
# Host-side parameter packing (one-time)
# --------------------------------------------------------------------------

def pack_params(p):
    """Repack PyTorch-layout parameters into the fused, lane/sublane-aligned
    layout the kernel consumes.  Pure host/XLA work, done once."""
    f32 = jnp.float32
    w1, w2, w3, w4 = p["w1"], p["w2"], p["w3"], p["w4"]
    F = w1.shape[0]            # fftChannels
    I = w2.shape[0]            # inputs
    Cf = w3.shape[1]           # comprFftChannels
    Ci = w4.shape[1]           # comprInputs
    H = p["whh"].shape[0]
    out = p["wd"].shape[1]

    def eye(n):
        return jnp.eye(n, dtype=f32)

    def avg_col(n):            # thin per-channel averaging column
        return jnp.ones((n, 1), f32) / n

    def bcast_row(n):          # 0/1 expand row
        return jnp.ones((1, n), f32)

    packed = {}
    # fc1: flat (i, f) -> (i, f'); BN channel = i, contiguous blocks of F.
    packed["wb1"] = jnp.kron(eye(I), w1)
    packed["bb1"] = jnp.tile(p["b1"], (1, I))
    packed["p1"] = jnp.kron(eye(I), avg_col(F))        # (I*F, I)
    packed["e1"] = jnp.kron(eye(I), bcast_row(F))      # (I, I*F)
    packed["g1"], packed["be1"] = p["g1"], p["be1"]
    # fc2 (permute(0,2,1) folded in): (i, f) -> (f, i'); BN channel = f.
    packed["wb2"] = (w2[:, None, None, :] * eye(F)[None, :, :, None]).reshape(I * F, F * I)
    packed["bb2"] = jnp.tile(p["b2"], (1, F))
    packed["p2"] = jnp.kron(eye(F), avg_col(I))
    packed["e2"] = jnp.kron(eye(F), bcast_row(I))
    packed["g2"], packed["be2"] = p["g2"], p["be2"]
    # fc3 (permute folded in): (f, i) -> (i, cf); BN channel = i.
    packed["wb3"] = (w3[:, None, None, :] * eye(I)[None, :, :, None]).reshape(F * I, I * Cf)
    packed["bb3"] = jnp.tile(p["b3"], (1, I))
    packed["p3"] = jnp.kron(eye(I), avg_col(Cf))
    packed["e3"] = jnp.kron(eye(I), bcast_row(Cf))
    packed["g3"], packed["be3"] = p["g3"], p["be3"]
    # fc4 (permute folded in): (i, cf) -> (ci, cf), which IS the GRU flat
    # order of PyTorch's permute(1,0,3,2)+reshape; BN channel = cf (minor).
    packed["wb4"] = jnp.kron(w4, eye(Cf))
    packed["bb4"] = jnp.repeat(p["b4"], Cf, axis=1)
    packed["p4"] = jnp.kron(jnp.ones((Ci, 1), f32) / Ci, eye(Cf))   # (Ci*Cf, Cf)
    packed["e4"] = jnp.kron(jnp.ones((1, Ci), f32), eye(Cf))        # (Cf, Ci*Cf)
    packed["g4"], packed["be4"] = p["g4"], p["be4"]

    # GRU, gates fused as [r | z | n], each gate zero-padded to a full
    # 128-lane segment so every in-kernel gate slice is tile aligned.
    HP = ((H + 127) // 128) * 128
    flat = p["wih"].shape[0]
    wi = jnp.zeros((flat, 3 * HP), f32)
    wh = jnp.zeros((HP, 3 * HP), f32)
    bi = jnp.zeros((1, 3 * HP), f32)
    bh = jnp.zeros((1, 3 * HP), f32)
    for g in range(3):
        src = slice(g * H, (g + 1) * H)
        dst = slice(g * HP, g * HP + H)
        wi = wi.at[:, dst].set(p["wih"][:, src])
        wh = wh.at[:H, dst].set(p["whh"][:, src])
        bi = bi.at[:, dst].set(p["bih"][:, src])
        bh = bh.at[:, dst].set(p["bhh"][:, src])
    packed["wi"], packed["wh"], packed["bi"], packed["bh"] = wi, wh, bi, bh

    # Decide head, zero-padded to 128 lanes / HP rows for dense stores.
    OP = ((out + 127) // 128) * 128
    packed["wd"] = jnp.zeros((HP, OP), f32).at[:H, :out].set(p["wd"])
    packed["bd"] = jnp.zeros((1, OP), f32).at[:, :out].set(p["bd"])
    return packed


def cast_matmul_weights(packed, dtype):
    """Cast only the large MXU matmul weights (recommended: bfloat16 on
    v6e/v7x); biases, BN projectors and per-channel affine stay float32."""
    mm = ("wb1", "wb2", "wb3", "wb4", "wi", "wh", "wd")
    return {k: (v.astype(dtype) if k in mm else v) for k, v in packed.items()}


# --------------------------------------------------------------------------
# Model wrapper
# --------------------------------------------------------------------------

def eeg_model_2_forward(packed, x, h=None, *, out_size, hidden_size):
    firstDim, secondDim = x.shape[0], x.shape[1]
    n_inputs, n_fft = x.shape[2], x.shape[3]
    N, S, H = firstDim, secondDim, hidden_size
    HP = packed["wh"].shape[0]
    NP = max(8, ((N + 7) // 8) * 8)        # sublane-padded GRU batch

    # Input enters the kernel in its natural order via a FREE reshape; the
    # seq-major reorder + batch padding happens inside the kernel as a tiny
    # 0/1 replication matmul (no host-side HBM transpose round trip).
    x0 = x.astype(jnp.float32).reshape(N * S, n_inputs * n_fft)
    rows = jnp.arange(S * NP)
    src = ((rows % NP) % N) * S + (rows // NP)     # flat (n-major) source row
    rep = jax.nn.one_hot(src, N * S, dtype=jnp.float32)

    if h is None:
        h0 = jnp.zeros((NP, HP), jnp.float32)
    else:
        h0 = jnp.zeros((NP, HP), jnp.float32).at[:N, :H].set(
            h[0].astype(jnp.float32))

    y_pad, h_pad = _fused_call(packed, x0, rep, h0)

    y = y_pad.reshape(S, NP, -1)[:, :N, :out_size]     # drop pad rows / lanes
    y = jnp.transpose(y, (0, 2, 1))                    # PyTorch's .permute(0,2,1)
    return y, h_pad[:N, :H][None]


# --------------------------------------------------------------------------
# Parameter init (PyTorch-equivalent layouts / distributions)
# --------------------------------------------------------------------------

def init_params(key, *, inputs, fftChannels, comprInputs, comprFftChannels,
                gruSize, outSize):
    keys = iter(jax.random.split(key, 40))

    def lin(fan_in, fan_out):
        bound = 1.0 / math.sqrt(fan_in)
        w = jax.random.uniform(next(keys), (fan_in, fan_out), jnp.float32,
                               -bound, bound)   # stored as (in, out) = W^T
        b = jax.random.uniform(next(keys), (1, fan_out), jnp.float32,
                               -bound, bound)
        return w, b

    p = {}
    p["w1"], p["b1"] = lin(fftChannels, fftChannels)
    p["g1"], p["be1"] = (jnp.ones((1, inputs), jnp.float32),
                         jnp.zeros((1, inputs), jnp.float32))
    p["w2"], p["b2"] = lin(inputs, inputs)
    p["g2"], p["be2"] = (jnp.ones((1, fftChannels), jnp.float32),
                         jnp.zeros((1, fftChannels), jnp.float32))
    p["w3"], p["b3"] = lin(fftChannels, comprFftChannels)
    p["g3"], p["be3"] = (jnp.ones((1, inputs), jnp.float32),
                         jnp.zeros((1, inputs), jnp.float32))
    p["w4"], p["b4"] = lin(inputs, comprInputs)
    p["g4"], p["be4"] = (jnp.ones((1, comprFftChannels), jnp.float32),
                         jnp.zeros((1, comprFftChannels), jnp.float32))

    flat = comprInputs * comprFftChannels
    H = gruSize
    gb = 1.0 / math.sqrt(H)

    def g_uniform(shape):
        return jax.random.uniform(next(keys), shape, jnp.float32, -gb, gb)

    # Fused GRU params, gate order [r | z | n], stored transposed to (in, out).
    p["wih"] = g_uniform((flat, 3 * H))
    p["whh"] = g_uniform((H, 3 * H))
    p["bih"] = g_uniform((1, 3 * H))
    p["bhh"] = g_uniform((1, 3 * H))
    p["wd"], p["bd"] = lin(H, outSize)
    return p


# --------------------------------------------------------------------------
# Pure-JAX reference (direct transliteration of the PyTorch module)
# --------------------------------------------------------------------------

def eeg_model_2_reference(p, x, h=None):
    with jax.default_matmul_precision("float32"):
        firstDim, secondDim = x.shape[0], x.shape[1]
        I, F = x.shape[2], x.shape[3]
        Cf = p["w3"].shape[1]
        Ci = p["w4"].shape[1]
        H = p["whh"].shape[0]
        v = x.reshape(-1, I, F).astype(jnp.float32)

        def bn_train(t, gamma, beta, eps=1e-5):
            mean = jnp.mean(t, axis=(0, 2), keepdims=True)
            var = jnp.mean((t - mean) ** 2, axis=(0, 2), keepdims=True)
            return ((t - mean) * jax.lax.rsqrt(var + eps) * gamma[:, :, None]
                    + beta[:, :, None])

        def leaky(v_):
            return jnp.where(v_ > 0.0, v_, 0.2 * v_)

        def layer(t, w, b, g, be):
            t = jnp.einsum("bcl,lo->bco", t, w) + b
            return leaky(bn_train(t, g, be))

        v = layer(v, p["w1"], p["b1"], p["g1"], p["be1"])
        v = layer(jnp.transpose(v, (0, 2, 1)), p["w2"], p["b2"], p["g2"], p["be2"])
        v = layer(jnp.transpose(v, (0, 2, 1)), p["w3"], p["b3"], p["g3"], p["be3"])
        v = layer(jnp.transpose(v, (0, 2, 1)), p["w4"], p["b4"], p["g4"], p["be4"])
        v = v.reshape(firstDim, secondDim, Cf, Ci)
        seq = jnp.transpose(v, (1, 0, 3, 2)).reshape(secondDim, firstDim, Ci * Cf)

        h_t = jnp.zeros((firstDim, H), jnp.float32) if h is None else h[0]
        outs = []
        for s in range(secondDim):
            gi = seq[s] @ p["wih"] + p["bih"]
            gh = h_t @ p["whh"] + p["bhh"]
            r = jax.nn.sigmoid(gi[:, :H] + gh[:, :H])
            z = jax.nn.sigmoid(gi[:, H:2 * H] + gh[:, H:2 * H])
            n = jnp.tanh(gi[:, 2 * H:] + r * gh[:, 2 * H:])
            h_t = (1.0 - z) * n + z * h_t
            outs.append(h_t)
        o = jnp.stack(outs, axis=0)
        y = o @ p["wd"] + p["bd"][None]
        return jnp.transpose(y, (0, 2, 1)), h_t[None]


# --------------------------------------------------------------------------
# main
# --------------------------------------------------------------------------

if __name__ == "__main__":
    inputs, fftChannels = 16, 16
    comprInputs, comprFftChannels = 8, 8
    gruSize, outSize = 32, 9
    firstDim, secondDim = 2, 4

    key = jax.random.PRNGKey(0)
    pkey, xkey = jax.random.split(key)
    params = init_params(pkey, inputs=inputs, fftChannels=fftChannels,
                         comprInputs=comprInputs,
                         comprFftChannels=comprFftChannels,
                         gruSize=gruSize, outSize=outSize)
    packed = pack_params(params)
    x = jax.random.normal(xkey, (firstDim, secondDim, inputs, fftChannels),
                          jnp.float32)

    fwd = jax.jit(functools.partial(eeg_model_2_forward,
                                    out_size=outSize, hidden_size=gruSize))
    y, h_new = fwd(packed, x)
    jax.block_until_ready((y, h_new))

    assert y.shape == (secondDim, outSize, firstDim), y.shape
    assert h_new.shape == (1, firstDim, gruSize), h_new.shape

    # Cross-check the fused kernel against a direct transliteration (f32).
    y_ref, h_ref = eeg_model_2_reference(params, x)
    assert jnp.allclose(y, y_ref, atol=2e-3, rtol=2e-3), \
        float(jnp.max(jnp.abs(y - y_ref)))
    assert jnp.allclose(h_new, h_ref, atol=2e-3, rtol=2e-3)

    # bf16-MXU variant (recommended on v6e/v7x): same kernel, only the big
    # matmul weights cast; validated at a loose tolerance vs the f32 reference.
    packed_bf16 = cast_matmul_weights(packed, jnp.bfloat16)
    y16, h16 = fwd(packed_bf16, x)
    jax.block_until_ready((y16, h16))
    assert jnp.allclose(y16, y_ref, atol=8e-2, rtol=8e-2), \
        float(jnp.max(jnp.abs(y16 - y_ref)))

    print("KERNEL_OK")
</pallas_src>

<mosaic_0001>
module attributes {stable_mosaic.version = 11 : i64} {
  func.func @_eeg_fused_kernel(%arg0: memref<8x256xf32, #tpu.memory_space<vmem>>, %arg1: memref<256x256xf32, #tpu.memory_space<vmem>>, %arg2: memref<1x256xf32, #tpu.memory_space<vmem>>, %arg3: memref<256x16xf32, #tpu.memory_space<vmem>>, %arg4: memref<16x256xf32, #tpu.memory_space<vmem>>, %arg5: memref<1x16xf32, #tpu.memory_space<vmem>>, %arg6: memref<1x16xf32, #tpu.memory_space<vmem>>, %arg7: memref<256x256xf32, #tpu.memory_space<vmem>>, %arg8: memref<1x256xf32, #tpu.memory_space<vmem>>, %arg9: memref<256x16xf32, #tpu.memory_space<vmem>>, %arg10: memref<16x256xf32, #tpu.memory_space<vmem>>, %arg11: memref<1x16xf32, #tpu.memory_space<vmem>>, %arg12: memref<1x16xf32, #tpu.memory_space<vmem>>, %arg13: memref<256x128xf32, #tpu.memory_space<vmem>>, %arg14: memref<1x128xf32, #tpu.memory_space<vmem>>, %arg15: memref<128x16xf32, #tpu.memory_space<vmem>>, %arg16: memref<16x128xf32, #tpu.memory_space<vmem>>, %arg17: memref<1x16xf32, #tpu.memory_space<vmem>>, %arg18: memref<1x16xf32, #tpu.memory_space<vmem>>, %arg19: memref<128x64xf32, #tpu.memory_space<vmem>>, %arg20: memref<1x64xf32, #tpu.memory_space<vmem>>, %arg21: memref<64x8xf32, #tpu.memory_space<vmem>>, %arg22: memref<8x64xf32, #tpu.memory_space<vmem>>, %arg23: memref<1x8xf32, #tpu.memory_space<vmem>>, %arg24: memref<1x8xf32, #tpu.memory_space<vmem>>, %arg25: memref<32x8xf32, #tpu.memory_space<vmem>>, %arg26: memref<8x128xf32, #tpu.memory_space<vmem>>, %arg27: memref<64x384xf32, #tpu.memory_space<vmem>>, %arg28: memref<128x384xf32, #tpu.memory_space<vmem>>, %arg29: memref<1x384xf32, #tpu.memory_space<vmem>>, %arg30: memref<1x384xf32, #tpu.memory_space<vmem>>, %arg31: memref<128x128xf32, #tpu.memory_space<vmem>>, %arg32: memref<1x128xf32, #tpu.memory_space<vmem>>, %arg33: memref<32x128xf32, #tpu.memory_space<vmem>>, %arg34: memref<8x128xf32, #tpu.memory_space<vmem>>) attributes {dimension_semantics = [], scalar_prefetch = 0 : i64, scratch_operands = 0 : i64, tpu.core_type = #tpu.core_type<tc>} {
    %c0 = arith.constant 0 : index
    %c0_0 = arith.constant 0 : index
    %0 = vector.load %arg0[%c0, %c0_0] : memref<8x256xf32, #tpu.memory_space<vmem>>, vector<8x256xf32>
    %c0_1 = arith.constant 0 : index
    %c0_2 = arith.constant 0 : index
    %1 = vector.load %arg1[%c0_1, %c0_2] : memref<256x256xf32, #tpu.memory_space<vmem>>, vector<256x256xf32>
    %cst = arith.constant dense<0.000000e+00> : vector<8x256xf32>
    %2 = tpu.matmul %0, %1, %cst {dimension_numbers = #tpu.dot_dimension_numbers<[1], [0], [0], [1], [0, 0, 1, 1], [], []>} : vector<8x256xf32>, vector<256x256xf32>, vector<8x256xf32> -> vector<8x256xf32>
    %c0_3 = arith.constant 0 : index
    %c0_4 = arith.constant 0 : index
    %3 = vector.load %arg2[%c0_3, %c0_4] : memref<1x256xf32, #tpu.memory_space<vmem>>, vector<1x256xf32>
    %4 = vector.broadcast %3 : vector<1x256xf32> to vector<8x256xf32>
    %5 = arith.addf %2, %4 : vector<8x256xf32>
    %6 = arith.mulf %5, %5 : vector<8x256xf32>
    %7 = tpu.concatenate %5, %6 in 0 : vector<8x256xf32>, vector<8x256xf32> -> vector<16x256xf32>
    %c0_5 = arith.constant 0 : index
    %c0_6 = arith.constant 0 : index
    %8 = vector.load %arg3[%c0_5, %c0_6] : memref<256x16xf32, #tpu.memory_space<vmem>>, vector<256x16xf32>
    %cst_7 = arith.constant dense<0.000000e+00> : vector<16x16xf32>
    %9 = tpu.matmul %7, %8, %cst_7 {dimension_numbers = #tpu.dot_dimension_numbers<[1], [0], [0], [1], [0, 0, 1, 1], [], []>} : vector<16x256xf32>, vector<256x16xf32>, vector<16x16xf32> -> vector<16x16xf32>
    %10 = vector.extract_strided_slice %9 {offsets = [0, 0], sizes = [8, 16], strides = [1, 1]} : vector<16x16xf32> to vector<8x16xf32>
    %cst_8 = arith.constant dense<0.000000e+00> : vector<16xf32>
    %11 = vector.multi_reduction <add>, %10, %cst_8 [0] : vector<8x16xf32> to vector<16xf32>
    %12 = vector.shape_cast %11 : vector<16xf32> to vector<1x16xf32>
    %cst_9 = arith.constant 8.000000e+00 : f32
    %13 = vector.broadcast %cst_9 : f32 to vector<1x16xf32>
    %14 = arith.divf %12, %13 : vector<1x16xf32>
    %15 = vector.extract_strided_slice %9 {offsets = [8, 0], sizes = [8, 16], strides = [1, 1]} : vector<16x16xf32> to vector<8x16xf32>
    %cst_10 = arith.constant dense<0.000000e+00> : vector<16xf32>
    %16 = vector.multi_reduction <add>, %15, %cst_10 [0] : vector<8x16xf32> to vector<16xf32>
    %17 = vector.shape_cast %16 : vector<16xf32> to vector<1x16xf32>
    %cst_11 = arith.constant 8.000000e+00 : f32
    %18 = vector.broadcast %cst_11 : f32 to vector<1x16xf32>
    %19 = arith.divf %17, %18 : vector<1x16xf32>
    %20 = arith.mulf %14, %14 : vector<1x16xf32>
    %21 = arith.subf %19, %20 : vector<1x16xf32>
    %cst_12 = arith.constant 0.000000e+00 : f32
    %22 = vector.broadcast %cst_12 : f32 to vector<1x16xf32>
    %23 = arith.maximumf %21, %22 : vector<1x16xf32>
    %c0_13 = arith.constant 0 : index
    %c0_14 = arith.constant 0 : index
    %24 = vector.load %arg5[%c0_13, %c0_14] : memref<1x16xf32, #tpu.memory_space<vmem>>, vector<1x16xf32>
    %cst_15 = arith.constant 9.99999974E-6 : f32
    %25 = vector.broadcast %cst_15 : f32 to vector<1x16xf32>
    %26 = arith.addf %23, %25 : vector<1x16xf32>
    %27 = math.rsqrt %26 : vector<1x16xf32>
    %28 = arith.mulf %24, %27 : vector<1x16xf32>
    %c0_16 = arith.constant 0 : index
    %c0_17 = arith.constant 0 : index
    %29 = vector.load %arg6[%c0_16, %c0_17] : memref<1x16xf32, #tpu.memory_space<vmem>>, vector<1x16xf32>
    %30 = arith.mulf %28, %14 : vector<1x16xf32>
    %31 = arith.subf %29, %30 : vector<1x16xf32>
    %c0_18 = arith.constant 0 : index
    %c0_19 = arith.constant 0 : index
    %32 = vector.load %arg4[%c0_18, %c0_19] : memref<16x256xf32, #tpu.memory_space<vmem>>, vector<16x256xf32>
    %cst_20 = arith.constant dense<0.000000e+00> : vector<1x256xf32>
    %33 = tpu.matmul %28, %32, %cst_20 {dimension_numbers = #tpu.dot_dimension_numbers<[1], [0], [0], [1], [0, 0, 1, 1], [], []>} : vector<1x16xf32>, vector<16x256xf32>, vector<1x256xf32> -> vector<1x256xf32>
    %c0_21 = arith.constant 0 : index
    %c0_22 = arith.constant 0 : index
    %34 = vector.load %arg4[%c0_21, %c0_22] : memref<16x256xf32, #tpu.memory_space<vmem>>, vector<16x256xf32>
    %cst_23 = arith.constant dense<0.000000e+00> : vector<1x256xf32>
    %35 = tpu.matmul %31, %34, %cst_23 {dimension_numbers = #tpu.dot_dimension_numbers<[1], [0], [0], [1], [0, 0, 1, 1], [], []>} : vector<1x16xf32>, vector<16x256xf32>, vector<1x256xf32> -> vector<1x256xf32>
    %36 = vector.broadcast %33 : vector<1x256xf32> to vector<8x256xf32>
    %37 = arith.mulf %5, %36 : vector<8x256xf32>
    %38 = vector.broadcast %35 : vector<1x256xf32> to vector<8x256xf32>
    %39 = arith.addf %37, %38 : vector<8x256xf32>
    %cst_24 = arith.constant 2.000000e-01 : f32
    %40 = vector.broadcast %cst_24 : f32 to vector<8x256xf32>
    %41 = arith.mulf %40, %39 : vector<8x256xf32>
    %42 = arith.maximumf %39, %41 : vector<8x256xf32>
    %c0_25 = arith.constant 0 : index
    %c0_26 = arith.constant 0 : index
    %43 = vector.load %arg7[%c0_25, %c0_26] : memref<256x256xf32, #tpu.memory_space<vmem>>, vector<256x256xf32>
    %cst_27 = arith.constant dense<0.000000e+00> : vector<8x256xf32>
    %44 = tpu.matmul %42, %43, %cst_27 {dimension_numbers = #tpu.dot_dimension_numbers<[1], [0], [0], [1], [0, 0, 1, 1], [], []>} : vector<8x256xf32>, vector<256x256xf32>, vector<8x256xf32> -> vector<8x256xf32>
    %c0_28 = arith.constant 0 : index
    %c0_29 = arith.constant 0 : index
    %45 = vector.load %arg8[%c0_28, %c0_29] : memref<1x256xf32, #tpu.memory_space<vmem>>, vector<1x256xf32>
    %46 = vector.broadcast %45 : vector<1x256xf32> to vector<8x256xf32>
    %47 = arith.addf %44, %46 : vector<8x256xf32>
    %48 = arith.mulf %47, %47 : vector<8x256xf32>
    %49 = tpu.concatenate %47, %48 in 0 : vector<8x256xf32>, vector<8x256xf32> -> vector<16x256xf32>
    %c0_30 = arith.constant 0 : index
    %c0_31 = arith.constant 0 : index
    %50 = vector.load %arg9[%c0_30, %c0_31] : memref<256x16xf32, #tpu.memory_space<vmem>>, vector<256x16xf32>
    %cst_32 = arith.constant dense<0.000000e+00> : vector<16x16xf32>
    %51 = tpu.matmul %49, %50, %cst_32 {dimension_numbers = #tpu.dot_dimension_numbers<[1], [0], [0], [1], [0, 0, 1, 1], [], []>} : vector<16x256xf32>, vector<256x16xf32>, vector<16x16xf32> -> vector<16x16xf32>
    %52 = vector.extract_strided_slice %51 {offsets = [0, 0], sizes = [8, 16], strides = [1, 1]} : vector<16x16xf32> to vector<8x16xf32>
    %cst_33 = arith.constant dense<0.000000e+00> : vector<16xf32>
    %53 = vector.multi_reduction <add>, %52, %cst_33 [0] : vector<8x16xf32> to vector<16xf32>
    %54 = vector.shape_cast %53 : vector<16xf32> to vector<1x16xf32>
    %cst_34 = arith.constant 8.000000e+00 : f32
    %55 = vector.broadcast %cst_34 : f32 to vector<1x16xf32>
    %56 = arith.divf %54, %55 : vector<1x16xf32>
    %57 = vector.extract_strided_slice %51 {offsets = [8, 0], sizes = [8, 16], strides = [1, 1]} : vector<16x16xf32> to vector<8x16xf32>
    %cst_35 = arith.constant dense<0.000000e+00> : vector<16xf32>
    %58 = vector.multi_reduction <add>, %57, %cst_35 [0] : vector<8x16xf32> to vector<16xf32>
    %59 = vector.shape_cast %58 : vector<16xf32> to vector<1x16xf32>
    %cst_36 = arith.constant 8.000000e+00 : f32
    %60 = vector.broadcast %cst_36 : f32 to vector<1x16xf32>
    %61 = arith.divf %59, %60 : vector<1x16xf32>
    %62 = arith.mulf %56, %56 : vector<1x16xf32>
    %63 = arith.subf %61, %62 : vector<1x16xf32>
    %cst_37 = arith.constant 0.000000e+00 : f32
    %64 = vector.broadcast %cst_37 : f32 to vector<1x16xf32>
    %65 = arith.maximumf %63, %64 : vector<1x16xf32>
    %c0_38 = arith.constant 0 : index
    %c0_39 = arith.constant 0 : index
    %66 = vector.load %arg11[%c0_38, %c0_39] : memref<1x16xf32, #tpu.memory_space<vmem>>, vector<1x16xf32>
    %cst_40 = arith.constant 9.99999974E-6 : f32
    %67 = vector.broadcast %cst_40 : f32 to vector<1x16xf32>
    %68 = arith.addf %65, %67 : vector<1x16xf32>
    %69 = math.rsqrt %68 : vector<1x16xf32>
    %70 = arith.mulf %66, %69 : vector<1x16xf32>
    %c0_41 = arith.constant 0 : index
    %c0_42 = arith.constant 0 : index
    %71 = vector.load %arg12[%c0_41, %c0_42] : memref<1x16xf32, #tpu.memory_space<vmem>>, vector<1x16xf32>
    %72 = arith.mulf %70, %56 : vector<1x16xf32>
    %73 = arith.subf %71, %72 : vector<1x16xf32>
    %c0_43 = arith.constant 0 : index
    %c0_44 = arith.constant 0 : index
    %74 = vector.load %arg10[%c0_43, %c0_44] : memref<16x256xf32, #tpu.memory_space<vmem>>, vector<16x256xf32>
    %cst_45 = arith.constant dense<0.000000e+00> : vector<1x256xf32>
    %75 = tpu.matmul %70, %74, %cst_45 {dimension_numbers = #tpu.dot_dimension_numbers<[1], [0], [0], [1], [0, 0, 1, 1], [], []>} : vector<1x16xf32>, vector<16x256xf32>, vector<1x256xf32> -> vector<1x256xf32>
    %c0_46 = arith.constant 0 : index
    %c0_47 = arith.constant 0 : index
    %76 = vector.load %arg10[%c0_46, %c0_47] : memref<16x256xf32, #tpu.memory_space<vmem>>, vector<16x256xf32>
    %cst_48 = arith.constant dense<0.000000e+00> : vector<1x256xf32>
    %77 = tpu.matmul %73, %76, %cst_48 {dimension_numbers = #tpu.dot_dimension_numbers<[1], [0], [0], [1], [0, 0, 1, 1], [], []>} : vector<1x16xf32>, vector<16x256xf32>, vector<1x256xf32> -> vector<1x256xf32>
    %78 = vector.broadcast %75 : vector<1x256xf32> to vector<8x256xf32>
    %79 = arith.mulf %47, %78 : vector<8x256xf32>
    %80 = vector.broadcast %77 : vector<1x256xf32> to vector<8x256xf32>
    %81 = arith.addf %79, %80 : vector<8x256xf32>
    %cst_49 = arith.constant 2.000000e-01 : f32
    %82 = vector.broadcast %cst_49 : f32 to vector<8x256xf32>
    %83 = arith.mulf %82, %81 : vector<8x256xf32>
    %84 = arith.maximumf %81, %83 : vector<8x256xf32>
    %c0_50 = arith.constant 0 : index
    %c0_51 = arith.constant 0 : index
    %85 = vector.load %arg13[%c0_50, %c0_51] : memref<256x128xf32, #tpu.memory_space<vmem>>, vector<256x128xf32>
    %cst_52 = arith.constant dense<0.000000e+00> : vector<8x128xf32>
    %86 = tpu.matmul %84, %85, %cst_52 {dimension_numbers = #tpu.dot_dimension_numbers<[1], [0], [0], [1], [0, 0, 1, 1], [], []>} : vector<8x256xf32>, vector<256x128xf32>, vector<8x128xf32> -> vector<8x128xf32>
    %c0_53 = arith.constant 0 : index
    %c0_54 = arith.constant 0 : index
    %87 = vector.load %arg14[%c0_53, %c0_54] : memref<1x128xf32, #tpu.memory_space<vmem>>, vector<1x128xf32>
    %88 = vector.broadcast %87 : vector<1x128xf32> to vector<8x128xf32>
    %89 = arith.addf %86, %88 : vector<8x128xf32>
    %90 = arith.mulf %89, %89 : vector<8x128xf32>
    %91 = tpu.concatenate %89, %90 in 0 : vector<8x128xf32>, vector<8x128xf32> -> vector<16x128xf32>
    %c0_55 = arith.constant 0 : index
    %c0_56 = arith.constant 0 : index
    %92 = vector.load %arg15[%c0_55, %c0_56] : memref<128x16xf32, #tpu.memory_space<vmem>>, vector<128x16xf32>
    %cst_57 = arith.constant dense<0.000000e+00> : vector<16x16xf32>
    %93 = tpu.matmul %91, %92, %cst_57 {dimension_numbers = #tpu.dot_dimension_numbers<[1], [0], [0], [1], [0, 0, 1, 1], [], []>} : vector<16x128xf32>, vector<128x16xf32>, vector<16x16xf32> -> vector<16x16xf32>
    %94 = vector.extract_strided_slice %93 {offsets = [0, 0], sizes = [8, 16], strides = [1, 1]} : vector<16x16xf32> to vector<8x16xf32>
    %cst_58 = arith.constant dense<0.000000e+00> : vector<16xf32>
    %95 = vector.multi_reduction <add>, %94, %cst_58 [0] : vector<8x16xf32> to vector<16xf32>
    %96 = vector.shape_cast %95 : vector<16xf32> to vector<1x16xf32>
    %cst_59 = arith.constant 8.000000e+00 : f32
    %97 = vector.broadcast %cst_59 : f32 to vector<1x16xf32>
    %98 = arith.divf %96, %97 : vector<1x16xf32>
    %99 = vector.extract_strided_slice %93 {offsets = [8, 0], sizes = [8, 16], strides = [1, 1]} : vector<16x16xf32> to vector<8x16xf32>
    %cst_60 = arith.constant dense<0.000000e+00> : vector<16xf32>
    %100 = vector.multi_reduction <add>, %99, %cst_60 [0] : vector<8x16xf32> to vector<16xf32>
    %101 = vector.shape_cast %100 : vector<16xf32> to vector<1x16xf32>
    %cst_61 = arith.constant 8.000000e+00 : f32
    %102 = vector.broadcast %cst_61 : f32 to vector<1x16xf32>
    %103 = arith.divf %101, %102 : vector<1x16xf32>
    %104 = arith.mulf %98, %98 : vector<1x16xf32>
    %105 = arith.subf %103, %104 : vector<1x16xf32>
    %cst_62 = arith.constant 0.000000e+00 : f32
    %106 = vector.broadcast %cst_62 : f32 to vector<1x16xf32>
    %107 = arith.maximumf %105, %106 : vector<1x16xf32>
    %c0_63 = arith.constant 0 : index
    %c0_64 = arith.constant 0 : index
    %108 = vector.load %arg17[%c0_63, %c0_64] : memref<1x16xf32, #tpu.memory_space<vmem>>, vector<1x16xf32>
    %cst_65 = arith.constant 9.99999974E-6 : f32
    %109 = vector.broadcast %cst_65 : f32 to vector<1x16xf32>
    %110 = arith.addf %107, %109 : vector<1x16xf32>
    %111 = math.rsqrt %110 : vector<1x16xf32>
    %112 = arith.mulf %108, %111 : vector<1x16xf32>
    %c0_66 = arith.constant 0 : index
    %c0_67 = arith.constant 0 : index
    %113 = vector.load %arg18[%c0_66, %c0_67] : memref<1x16xf32, #tpu.memory_space<vmem>>, vector<1x16xf32>
    %114 = arith.mulf %112, %98 : vector<1x16xf32>
    %115 = arith.subf %113, %114 : vector<1x16xf32>
    %c0_68 = arith.constant 0 : index
    %c0_69 = arith.constant 0 : index
    %116 = vector.load %arg16[%c0_68, %c0_69] : memref<16x128xf32, #tpu.memory_space<vmem>>, vector<16x128xf32>
    %cst_70 = arith.constant dense<0.000000e+00> : vector<1x128xf32>
    %117 = tpu.matmul %112, %116, %cst_70 {dimension_numbers = #tpu.dot_dimension_numbers<[1], [0], [0], [1], [0, 0, 1, 1], [], []>} : vector<1x16xf32>, vector<16x128xf32>, vector<1x128xf32> -> vector<1x128xf32>
    %c0_71 = arith.constant 0 : index
    %c0_72 = arith.constant 0 : index
    %118 = vector.load %arg16[%c0_71, %c0_72] : memref<16x128xf32, #tpu.memory_space<vmem>>, vector<16x128xf32>
    %cst_73 = arith.constant dense<0.000000e+00> : vector<1x128xf32>
    %119 = tpu.matmul %115, %118, %cst_73 {dimension_numbers = #tpu.dot_dimension_numbers<[1], [0], [0], [1], [0, 0, 1, 1], [], []>} : vector<1x16xf32>, vector<16x128xf32>, vector<1x128xf32> -> vector<1x128xf32>
    %120 = vector.broadcast %117 : vector<1x128xf32> to vector<8x128xf32>
    %121 = arith.mulf %89, %120 : vector<8x128xf32>
    %122 = vector.broadcast %119 : vector<1x128xf32> to vector<8x128xf32>
    %123 = arith.addf %121, %122 : vector<8x128xf32>
    %cst_74 = arith.constant 2.000000e-01 : f32
    %124 = vector.broadcast %cst_74 : f32 to vector<8x128xf32>
    %125 = arith.mulf %124, %123 : vector<8x128xf32>
    %126 = arith.maximumf %123, %125 : vector<8x128xf32>
    %c0_75 = arith.constant 0 : index
    %c0_76 = arith.constant 0 : index
    %127 = vector.load %arg19[%c0_75, %c0_76] : memref<128x64xf32, #tpu.memory_space<vmem>>, vector<128x64xf32>
    %cst_77 = arith.constant dense<0.000000e+00> : vector<8x64xf32>
    %128 = tpu.matmul %126, %127, %cst_77 {dimension_numbers = #tpu.dot_dimension_numbers<[1], [0], [0], [1], [0, 0, 1, 1], [], []>} : vector<8x128xf32>, vector<128x64xf32>, vector<8x64xf32> -> vector<8x64xf32>
    %c0_78 = arith.constant 0 : index
    %c0_79 = arith.constant 0 : index
    %129 = vector.load %arg20[%c0_78, %c0_79] : memref<1x64xf32, #tpu.memory_space<vmem>>, vector<1x64xf32>
    %130 = vector.broadcast %129 : vector<1x64xf32> to vector<8x64xf32>
    %131 = arith.addf %128, %130 : vector<8x64xf32>
    %132 = arith.mulf %131, %131 : vector<8x64xf32>
    %133 = tpu.concatenate %131, %132 in 0 : vector<8x64xf32>, vector<8x64xf32> -> vector<16x64xf32>
    %c0_80 = arith.constant 0 : index
    %c0_81 = arith.constant 0 : index
    %134 = vector.load %arg21[%c0_80, %c0_81] : memref<64x8xf32, #tpu.memory_space<vmem>>, vector<64x8xf32>
    %cst_82 = arith.constant dense<0.000000e+00> : vector<16x8xf32>
    %135 = tpu.matmul %133, %134, %cst_82 {dimension_numbers = #tpu.dot_dimension_numbers<[1], [0], [0], [1], [0, 0, 1, 1], [], []>} : vector<16x64xf32>, vector<64x8xf32>, vector<16x8xf32> -> vector<16x8xf32>
    %136 = vector.extract_strided_slice %135 {offsets = [0, 0], sizes = [8, 8], strides = [1, 1]} : vector<16x8xf32> to vector<8x8xf32>
    %cst_83 = arith.constant dense<0.000000e+00> : vector<8xf32>
    %137 = vector.multi_reduction <add>, %136, %cst_83 [0] : vector<8x8xf32> to vector<8xf32>
    %138 = vector.shape_cast %137 : vector<8xf32> to vector<1x8xf32>
    %cst_84 = arith.constant 8.000000e+00 : f32
    %139 = vector.broadcast %cst_84 : f32 to vector<1x8xf32>
    %140 = arith.divf %138, %139 : vector<1x8xf32>
    %141 = vector.extract_strided_slice %135 {offsets = [8, 0], sizes = [8, 8], strides = [1, 1]} : vector<16x8xf32> to vector<8x8xf32>
    %cst_85 = arith.constant dense<0.000000e+00> : vector<8xf32>
    %142 = vector.multi_reduction <add>, %141, %cst_85 [0] : vector<8x8xf32> to vector<8xf32>
    %143 = vector.shape_cast %142 : vector<8xf32> to vector<1x8xf32>
    %cst_86 = arith.constant 8.000000e+00 : f32
    %144 = vector.broadcast %cst_86 : f32 to vector<1x8xf32>
    %145 = arith.divf %143, %144 : vector<1x8xf32>
    %146 = arith.mulf %140, %140 : vector<1x8xf32>
    %147 = arith.subf %145, %146 : vector<1x8xf32>
    %cst_87 = arith.constant 0.000000e+00 : f32
    %148 = vector.broadcast %cst_87 : f32 to vector<1x8xf32>
    %149 = arith.maximumf %147, %148 : vector<1x8xf32>
    %c0_88 = arith.constant 0 : index
    %c0_89 = arith.constant 0 : index
    %150 = vector.load %arg23[%c0_88, %c0_89] : memref<1x8xf32, #tpu.memory_space<vmem>>, vector<1x8xf32>
    %cst_90 = arith.constant 9.99999974E-6 : f32
    %151 = vector.broadcast %cst_90 : f32 to vector<1x8xf32>
    %152 = arith.addf %149, %151 : vector<1x8xf32>
    %153 = math.rsqrt %152 : vector<1x8xf32>
    %154 = arith.mulf %150, %153 : vector<1x8xf32>
    %c0_91 = arith.constant 0 : index
    %c0_92 = arith.constant 0 : index
    %155 = vector.load %arg24[%c0_91, %c0_92] : memref<1x8xf32, #tpu.memory_space<vmem>>, vector<1x8xf32>
    %156 = arith.mulf %154, %140 : vector<1x8xf32>
    %157 = arith.subf %155, %156 : vector<1x8xf32>
    %c0_93 = arith.constant 0 : index
    %c0_94 = arith.constant 0 : index
    %158 = vector.load %arg22[%c0_93, %c0_94] : memref<8x64xf32, #tpu.memory_space<vmem>>, vector<8x64xf32>
    %cst_95 = arith.constant dense<0.000000e+00> : vector<1x64xf32>
    %159 = tpu.matmul %154, %158, %cst_95 {dimension_numbers = #tpu.dot_dimension_numbers<[1], [0], [0], [1], [0, 0, 1, 1], [], []>} : vector<1x8xf32>, vector<8x64xf32>, vector<1x64xf32> -> vector<1x64xf32>
    %c0_96 = arith.constant 0 : index
    %c0_97 = arith.constant 0 : index
    %160 = vector.load %arg22[%c0_96, %c0_97] : memref<8x64xf32, #tpu.memory_space<vmem>>, vector<8x64xf32>
    %cst_98 = arith.constant dense<0.000000e+00> : vector<1x64xf32>
    %161 = tpu.matmul %157, %160, %cst_98 {dimension_numbers = #tpu.dot_dimension_numbers<[1], [0], [0], [1], [0, 0, 1, 1], [], []>} : vector<1x8xf32>, vector<8x64xf32>, vector<1x64xf32> -> vector<1x64xf32>
    %162 = vector.broadcast %159 : vector<1x64xf32> to vector<8x64xf32>
    %163 = arith.mulf %131, %162 : vector<8x64xf32>
    %164 = vector.broadcast %161 : vector<1x64xf32> to vector<8x64xf32>
    %165 = arith.addf %163, %164 : vector<8x64xf32>
    %cst_99 = arith.constant 2.000000e-01 : f32
    %166 = vector.broadcast %cst_99 : f32 to vector<8x64xf32>
    %167 = arith.mulf %166, %165 : vector<8x64xf32>
    %168 = arith.maximumf %165, %167 : vector<8x64xf32>
    %c0_100 = arith.constant 0 : index
    %c0_101 = arith.constant 0 : index
    %169 = vector.load %arg25[%c0_100, %c0_101] : memref<32x8xf32, #tpu.memory_space<vmem>>, vector<32x8xf32>
    %cst_102 = arith.constant dense<0.000000e+00> : vector<32x64xf32>
    %170 = tpu.matmul %169, %168, %cst_102 {dimension_numbers = #tpu.dot_dimension_numbers<[1], [0], [0], [1], [0, 0, 1, 1], [], []>} : vector<32x8xf32>, vector<8x64xf32>, vector<32x64xf32> -> vector<32x64xf32>
    %c0_103 = arith.constant 0 : index
    %c0_104 = arith.constant 0 : index
    %171 = vector.load %arg27[%c0_103, %c0_104] : memref<64x384xf32, #tpu.memory_space<vmem>>, vector<64x384xf32>
    %cst_105 = arith.constant dense<0.000000e+00> : vector<32x384xf32>
    %172 = tpu.matmul %170, %171, %cst_105 {dimension_numbers = #tpu.dot_dimension_numbers<[1], [0], [0], [1], [0, 0, 1, 1], [], []>} : vector<32x64xf32>, vector<64x384xf32>, vector<32x384xf32> -> vector<32x384xf32>
    %c0_106 = arith.constant 0 : index
    %c0_107 = arith.constant 0 : index
    %173 = vector.load %arg29[%c0_106, %c0_107] : memref<1x384xf32, #tpu.memory_space<vmem>>, vector<1x384xf32>
    %174 = vector.broadcast %173 : vector<1x384xf32> to vector<32x384xf32>
    %175 = arith.addf %172, %174 : vector<32x384xf32>
    %c0_108 = arith.constant 0 : index
    %c0_109 = arith.constant 0 : index
    %176 = vector.load %arg28[%c0_108, %c0_109] : memref<128x384xf32, #tpu.memory_space<vmem>>, vector<128x384xf32>
    %c0_110 = arith.constant 0 : index
    %c0_111 = arith.constant 0 : index
    %177 = vector.load %arg30[%c0_110, %c0_111] : memref<1x384xf32, #tpu.memory_space<vmem>>, vector<1x384xf32>
    %c0_112 = arith.constant 0 : index
    %c0_113 = arith.constant 0 : index
    %178 = vector.load %arg26[%c0_112, %c0_113] : memref<8x128xf32, #tpu.memory_space<vmem>>, vector<8x128xf32>
    %179 = vector.extract_strided_slice %175 {offsets = [0, 0], sizes = [8, 384], strides = [1, 1]} : vector<32x384xf32> to vector<8x384xf32>
    %cst_114 = arith.constant dense<0.000000e+00> : vector<8x384xf32>
    %180 = tpu.matmul %178, %176, %cst_114 {dimension_numbers = #tpu.dot_dimension_numbers<[1], [0], [0], [1], [0, 0, 1, 1], [], []>} : vector<8x128xf32>, vector<128x384xf32>, vector<8x384xf32> -> vector<8x384xf32>
    %181 = vector.broadcast %177 : vector<1x384xf32> to vector<8x384xf32>
    %182 = arith.addf %180, %181 : vector<8x384xf32>
    %183 = vector.extract_strided_slice %179 {offsets = [0, 0], sizes = [8, 128], strides = [1, 1]} : vector<8x384xf32> to vector<8x128xf32>
    %184 = vector.extract_strided_slice %182 {offsets = [0, 0], sizes = [8, 128], strides = [1, 1]} : vector<8x384xf32> to vector<8x128xf32>
    %185 = arith.addf %183, %184 : vector<8x128xf32>
    %186 = arith.negf %185 : vector<8x128xf32>
    %187 = math.exp %186 : vector<8x128xf32>
    %cst_115 = arith.constant 1.000000e+00 : f32
    %188 = vector.broadcast %cst_115 : f32 to vector<8x128xf32>
    %189 = arith.addf %188, %187 : vector<8x128xf32>
    %190 = arith.divf %188, %189 : vector<8x128xf32>
    %191 = vector.extract_strided_slice %179 {offsets = [0, 128], sizes = [8, 128], strides = [1, 1]} : vector<8x384xf32> to vector<8x128xf32>
    %192 = vector.extract_strided_slice %182 {offsets = [0, 128], sizes = [8, 128], strides = [1, 1]} : vector<8x384xf32> to vector<8x128xf32>
    %193 = arith.addf %191, %192 : vector<8x128xf32>
    %194 = arith.negf %193 : vector<8x128xf32>
    %195 = math.exp %194 : vector<8x128xf32>
    %cst_116 = arith.constant 1.000000e+00 : f32
    %196 = vector.broadcast %cst_116 : f32 to vector<8x128xf32>
    %197 = arith.addf %196, %195 : vector<8x128xf32>
    %198 = arith.divf %196, %197 : vector<8x128xf32>
    %199 = vector.extract_strided_slice %179 {offsets = [0, 256], sizes = [8, 128], strides = [1, 1]} : vector<8x384xf32> to vector<8x128xf32>
    %200 = vector.extract_strided_slice %182 {offsets = [0, 256], sizes = [8, 128], strides = [1, 1]} : vector<8x384xf32> to vector<8x128xf32>
    %201 = arith.mulf %190, %200 : vector<8x128xf32>
    %202 = arith.addf %199, %201 : vector<8x128xf32>
    %203 = math.tanh %202 : vector<8x128xf32>
    %cst_117 = arith.constant 1.000000e+00 : f32
    %204 = vector.broadcast %cst_117 : f32 to vector<8x128xf32>
    %205 = arith.subf %204, %198 : vector<8x128xf32>
    %206 = arith.mulf %205, %203 : vector<8x128xf32>
    %207 = arith.mulf %198, %178 : vector<8x128xf32>
    %208 = arith.addf %206, %207 : vector<8x128xf32>
    %209 = vector.extract_strided_slice %175 {offsets = [8, 0], sizes = [8, 384], strides = [1, 1]} : vector<32x384xf32> to vector<8x384xf32>
    %cst_118 = arith.constant dense<0.000000e+00> : vector<8x384xf32>
    %210 = tpu.matmul %208, %176, %cst_118 {dimension_numbers = #tpu.dot_dimension_numbers<[1], [0], [0], [1], [0, 0, 1, 1], [], []>} : vector<8x128xf32>, vector<128x384xf32>, vector<8x384xf32> -> vector<8x384xf32>
    %211 = vector.broadcast %177 : vector<1x384xf32> to vector<8x384xf32>
    %212 = arith.addf %210, %211 : vector<8x384xf32>
    %213 = vector.extract_strided_slice %209 {offsets = [0, 0], sizes = [8, 128], strides = [1, 1]} : vector<8x384xf32> to vector<8x128xf32>
    %214 = vector.extract_strided_slice %212 {offsets = [0, 0], sizes = [8, 128], strides = [1, 1]} : vector<8x384xf32> to vector<8x128xf32>
    %215 = arith.addf %213, %214 : vector<8x128xf32>
    %216 = arith.negf %215 : vector<8x128xf32>
    %217 = math.exp %216 : vector<8x128xf32>
    %cst_119 = arith.constant 1.000000e+00 : f32
    %218 = vector.broadcast %cst_119 : f32 to vector<8x128xf32>
    %219 = arith.addf %218, %217 : vector<8x128xf32>
    %220 = arith.divf %218, %219 : vector<8x128xf32>
    %221 = vector.extract_strided_slice %209 {offsets = [0, 128], sizes = [8, 128], strides = [1, 1]} : vector<8x384xf32> to vector<8x128xf32>
    %222 = vector.extract_strided_slice %212 {offsets = [0, 128], sizes = [8, 128], strides = [1, 1]} : vector<8x384xf32> to vector<8x128xf32>
    %223 = arith.addf %221, %222 : vector<8x128xf32>
    %224 = arith.negf %223 : vector<8x128xf32>
    %225 = math.exp %224 : vector<8x128xf32>
    %cst_120 = arith.constant 1.000000e+00 : f32
    %226 = vector.broadcast %cst_120 : f32 to vector<8x128xf32>
    %227 = arith.addf %226, %225 : vector<8x128xf32>
    %228 = arith.divf %226, %227 : vector<8x128xf32>
    %229 = vector.extract_strided_slice %209 {offsets = [0, 256], sizes = [8, 128], strides = [1, 1]} : vector<8x384xf32> to vector<8x128xf32>
    %230 = vector.extract_strided_slice %212 {offsets = [0, 256], sizes = [8, 128], strides = [1, 1]} : vector<8x384xf32> to vector<8x128xf32>
    %231 = arith.mulf %220, %230 : vector<8x128xf32>
    %232 = arith.addf %229, %231 : vector<8x128xf32>
    %233 = math.tanh %232 : vector<8x128xf32>
    %cst_121 = arith.constant 1.000000e+00 : f32
    %234 = vector.broadcast %cst_121 : f32 to vector<8x128xf32>
    %235 = arith.subf %234, %228 : vector<8x128xf32>
    %236 = arith.mulf %235, %233 : vector<8x128xf32>
    %237 = arith.mulf %228, %208 : vector<8x128xf32>
    %238 = arith.addf %236, %237 : vector<8x128xf32>
    %239 = vector.extract_strided_slice %175 {offsets = [16, 0], sizes = [8, 384], strides = [1, 1]} : vector<32x384xf32> to vector<8x384xf32>
    %cst_122 = arith.constant dense<0.000000e+00> : vector<8x384xf32>
    %240 = tpu.matmul %238, %176, %cst_122 {dimension_numbers = #tpu.dot_dimension_numbers<[1], [0], [0], [1], [0, 0, 1, 1], [], []>} : vector<8x128xf32>, vector<128x384xf32>, vector<8x384xf32> -> vector<8x384xf32>
    %241 = vector.broadcast %177 : vector<1x384xf32> to vector<8x384xf32>
    %242 = arith.addf %240, %241 : vector<8x384xf32>
    %243 = vector.extract_strided_slice %239 {offsets = [0, 0], sizes = [8, 128], strides = [1, 1]} : vector<8x384xf32> to vector<8x128xf32>
    %244 = vector.extract_strided_slice %242 {offsets = [0, 0], sizes = [8, 128], strides = [1, 1]} : vector<8x384xf32> to vector<8x128xf32>
    %245 = arith.addf %243, %244 : vector<8x128xf32>
    %246 = arith.negf %245 : vector<8x128xf32>
    %247 = math.exp %246 : vector<8x128xf32>
    %cst_123 = arith.constant 1.000000e+00 : f32
    %248 = vector.broadcast %cst_123 : f32 to vector<8x128xf32>
    %249 = arith.addf %248, %247 : vector<8x128xf32>
    %250 = arith.divf %248, %249 : vector<8x128xf32>
    %251 = vector.extract_strided_slice %239 {offsets = [0, 128], sizes = [8, 128], strides = [1, 1]} : vector<8x384xf32> to vector<8x128xf32>
    %252 = vector.extract_strided_slice %242 {offsets = [0, 128], sizes = [8, 128], strides = [1, 1]} : vector<8x384xf32> to vector<8x128xf32>
    %253 = arith.addf %251, %252 : vector<8x128xf32>
    %254 = arith.negf %253 : vector<8x128xf32>
    %255 = math.exp %254 : vector<8x128xf32>
    %cst_124 = arith.constant 1.000000e+00 : f32
    %256 = vector.broadcast %cst_124 : f32 to vector<8x128xf32>
    %257 = arith.addf %256, %255 : vector<8x128xf32>
    %258 = arith.divf %256, %257 : vector<8x128xf32>
    %259 = vector.extract_strided_slice %239 {offsets = [0, 256], sizes = [8, 128], strides = [1, 1]} : vector<8x384xf32> to vector<8x128xf32>
    %260 = vector.extract_strided_slice %242 {offsets = [0, 256], sizes = [8, 128], strides = [1, 1]} : vector<8x384xf32> to vector<8x128xf32>
    %261 = arith.mulf %250, %260 : vector<8x128xf32>
    %262 = arith.addf %259, %261 : vector<8x128xf32>
    %263 = math.tanh %262 : vector<8x128xf32>
    %cst_125 = arith.constant 1.000000e+00 : f32
    %264 = vector.broadcast %cst_125 : f32 to vector<8x128xf32>
    %265 = arith.subf %264, %258 : vector<8x128xf32>
    %266 = arith.mulf %265, %263 : vector<8x128xf32>
    %267 = arith.mulf %258, %238 : vector<8x128xf32>
    %268 = arith.addf %266, %267 : vector<8x128xf32>
    %269 = vector.extract_strided_slice %175 {offsets = [24, 0], sizes = [8, 384], strides = [1, 1]} : vector<32x384xf32> to vector<8x384xf32>
    %cst_126 = arith.constant dense<0.000000e+00> : vector<8x384xf32>
    %270 = tpu.matmul %268, %176, %cst_126 {dimension_numbers = #tpu.dot_dimension_numbers<[1], [0], [0], [1], [0, 0, 1, 1], [], []>} : vector<8x128xf32>, vector<128x384xf32>, vector<8x384xf32> -> vector<8x384xf32>
    %271 = vector.broadcast %177 : vector<1x384xf32> to vector<8x384xf32>
    %272 = arith.addf %270, %271 : vector<8x384xf32>
    %273 = vector.extract_strided_slice %269 {offsets = [0, 0], sizes = [8, 128], strides = [1, 1]} : vector<8x384xf32> to vector<8x128xf32>
    %274 = vector.extract_strided_slice %272 {offsets = [0, 0], sizes = [8, 128], strides = [1, 1]} : vector<8x384xf32> to vector<8x128xf32>
    %275 = arith.addf %273, %274 : vector<8x128xf32>
    %276 = arith.negf %275 : vector<8x128xf32>
    %277 = math.exp %276 : vector<8x128xf32>
    %cst_127 = arith.constant 1.000000e+00 : f32
    %278 = vector.broadcast %cst_127 : f32 to vector<8x128xf32>
    %279 = arith.addf %278, %277 : vector<8x128xf32>
    %280 = arith.divf %278, %279 : vector<8x128xf32>
    %281 = vector.extract_strided_slice %269 {offsets = [0, 128], sizes = [8, 128], strides = [1, 1]} : vector<8x384xf32> to vector<8x128xf32>
    %282 = vector.extract_strided_slice %272 {offsets = [0, 128], sizes = [8, 128], strides = [1, 1]} : vector<8x384xf32> to vector<8x128xf32>
    %283 = arith.addf %281, %282 : vector<8x128xf32>
    %284 = arith.negf %283 : vector<8x128xf32>
    %285 = math.exp %284 : vector<8x128xf32>
    %cst_128 = arith.constant 1.000000e+00 : f32
    %286 = vector.broadcast %cst_128 : f32 to vector<8x128xf32>
    %287 = arith.addf %286, %285 : vector<8x128xf32>
    %288 = arith.divf %286, %287 : vector<8x128xf32>
    %289 = vector.extract_strided_slice %269 {offsets = [0, 256], sizes = [8, 128], strides = [1, 1]} : vector<8x384xf32> to vector<8x128xf32>
    %290 = vector.extract_strided_slice %272 {offsets = [0, 256], sizes = [8, 128], strides = [1, 1]} : vector<8x384xf32> to vector<8x128xf32>
    %291 = arith.mulf %280, %290 : vector<8x128xf32>
    %292 = arith.addf %289, %291 : vector<8x128xf32>
    %293 = math.tanh %292 : vector<8x128xf32>
    %cst_129 = arith.constant 1.000000e+00 : f32
    %294 = vector.broadcast %cst_129 : f32 to vector<8x128xf32>
    %295 = arith.subf %294, %288 : vector<8x128xf32>
    %296 = arith.mulf %295, %293 : vector<8x128xf32>
    %297 = arith.mulf %288, %268 : vector<8x128xf32>
    %298 = arith.addf %296, %297 : vector<8x128xf32>
    %c0_130 = arith.constant 0 : index
    %c0_131 = arith.constant 0 : index
    %299 = vector.load %arg34[%c0_130, %c0_131] : memref<8x128xf32, #tpu.memory_space<vmem>>, vector<8x128xf32>
    tpu.vector_store %arg34[%c0_130, %c0_131], %298 {strides = array<i32>} : memref<8x128xf32, #tpu.memory_space<vmem>>, vector<8x128xf32>,
    %300 = tpu.concatenate %208, %238, %268, %298 in 0 : vector<8x128xf32>, vector<8x128xf32>, vector<8x128xf32>, vector<8x128xf32> -> vector<32x128xf32>
    %c0_132 = arith.constant 0 : index
    %c0_133 = arith.constant 0 : index
    %301 = vector.load %arg31[%c0_132, %c0_133] : memref<128x128xf32, #tpu.memory_space<vmem>>, vector<128x128xf32>
    %cst_134 = arith.constant dense<0.000000e+00> : vector<32x128xf32>
    %302 = tpu.matmul %300, %301, %cst_134 {dimension_numbers = #tpu.dot_dimension_numbers<[1], [0], [0], [1], [0, 0, 1, 1], [], []>} : vector<32x128xf32>, vector<128x128xf32>, vector<32x128xf32> -> vector<32x128xf32>
    %c0_135 = arith.constant 0 : index
    %c0_136 = arith.constant 0 : index
    %303 = vector.load %arg32[%c0_135, %c0_136] : memref<1x128xf32, #tpu.memory_space<vmem>>, vector<1x128xf32>
    %304 = vector.broadcast %303 : vector<1x128xf32> to vector<32x128xf32>
    %305 = arith.addf %302, %304 : vector<32x128xf32>
    %c0_137 = arith.constant 0 : index
    %c0_138 = arith.constant 0 : index
    %306 = vector.load %arg33[%c0_137, %c0_138] : memref<32x128xf32, #tpu.memory_space<vmem>>, vector<32x128xf32>
    tpu.vector_store %arg33[%c0_137, %c0_138], %305 {strides = array<i32>} : memref<32x128xf32, #tpu.memory_space<vmem>>, vector<32x128xf32>,
    return
  }
}

</mosaic_0001>

<llo_original>
// kernel: eeg_model_2_forward.1
$region0: #{eeg_model_2_forward.1}
  #allocation0 [shape = 'u32[]', space=smem, size = 0x4, offset = 0x4, fixed_abs, tag = 'smem constant byte address 0x4 - core index']
  #allocation1 [shape = 'u32[144,128]{1,0:T(1,128)}', space=vmem, size = 0x12000, scoped, tag = 'internal scratch']
  %s0 = inlined_call_operand.smem [shape: u32[35], index: -1, kind: input, shape index: {}]
  %s1 = sld [smem:[%s0]]
  %s2 = scalar_lea.smem %s0, 1
  %s3 = sld [smem:[%s2]]
  %s4 = scalar_lea.smem %s0, 2
  %s5 = sld [smem:[%s4]]
  %s6 = scalar_lea.smem %s0, 3
  %s7 = sld [smem:[%s6]]
  %s8 = scalar_lea.smem %s0, 4
  %s9 = sld [smem:[%s8]]
  %s10 = scalar_lea.smem %s0, 5
  %s11 = sld [smem:[%s10]]
  %s12 = scalar_lea.smem %s0, 6
  %s13 = sld [smem:[%s12]]
  %s14 = scalar_lea.smem %s0, 7
  %s15 = sld [smem:[%s14]]
  %s16 = scalar_lea.smem %s0, 8
  %s17 = sld [smem:[%s16]]
  %s18 = scalar_lea.smem %s0, 9
  %s19 = sld [smem:[%s18]]
  %s20 = scalar_lea.smem %s0, 10
  %s21 = sld [smem:[%s20]]
  %s22 = scalar_lea.smem %s0, 11
  %s23 = sld [smem:[%s22]]
  %s24 = scalar_lea.smem %s0, 12
  %s25 = sld [smem:[%s24]]
  %s26 = scalar_lea.smem %s0, 13
  %s27 = sld [smem:[%s26]]
  %s28 = scalar_lea.smem %s0, 14
  %s29 = sld [smem:[%s28]]
  %s30 = scalar_lea.smem %s0, 15
  %s31 = sld [smem:[%s30]]
  %s32 = scalar_lea.smem %s0, 16
  %s33 = sld [smem:[%s32]]
  %s34 = scalar_lea.smem %s0, 17
  %s35 = sld [smem:[%s34]]
  %s36 = scalar_lea.smem %s0, 18
  %s37 = sld [smem:[%s36]]
  %s38 = scalar_lea.smem %s0, 19
  %s39 = sld [smem:[%s38]]
  %s40 = scalar_lea.smem %s0, 20
  %s41 = sld [smem:[%s40]]
  %s42 = scalar_lea.smem %s0, 21
  %s43 = sld [smem:[%s42]]
  %s44 = scalar_lea.smem %s0, 22
  %s45 = sld [smem:[%s44]]
  %s46 = scalar_lea.smem %s0, 23
  %s47 = sld [smem:[%s46]]
  %s48 = scalar_lea.smem %s0, 24
  %s49 = sld [smem:[%s48]]
  %s50 = scalar_lea.smem %s0, 25
  %s51 = sld [smem:[%s50]]
  %s52 = scalar_lea.smem %s0, 26
  %s53 = sld [smem:[%s52]]
  %s54 = scalar_lea.smem %s0, 27
  %s55 = sld [smem:[%s54]]
  %s56 = scalar_lea.smem %s0, 28
  %s57 = sld [smem:[%s56]]
  %s58 = scalar_lea.smem %s0, 29
  %s59 = sld [smem:[%s58]]
  %s60 = scalar_lea.smem %s0, 30
  %s61 = sld [smem:[%s60]]
  %s62 = scalar_lea.smem %s0, 31
  %s63 = sld [smem:[%s62]]
  %s64 = scalar_lea.smem %s0, 32
  %s65 = sld [smem:[%s64]]
  %s66 = scalar_lea.smem %s0, 33
  %s67 = sld [smem:[%s66]]
  %s68 = scalar_lea.smem %s0, 34
  %s69 = sld [smem:[%s68]]
  %70 = xla_tuple %s67, %s69
  %s71 = sld [smem:[#allocation0]]
  $region230: #{eeg_model_2_forward.1} parent=0
    _
  %s73 = ssub.s32 1, %s71
  %s74 = scalar_select 0, %s73, %s71
  $region1: #{eeg_model_2_forward.1} parent=0
    #allocation2 [shape = 'u8[16384]{0}', space=vmem, size = 0x4000, scoped, tag = 'input window, operand 4, single buffered']
    #allocation3 [shape = 's32[1]{0}', space=sflag, size = 0x4, scoped, tag = 'scoped memory for eeg_model_2_forward.1']
    #allocation4 [shape = 'u8[512]{0}', space=vmem, size = 0x400, scoped, tag = 'input window, operand 5, single buffered']
    #allocation5 [shape = 's32[1]{0}', space=sflag, size = 0x4, scoped, tag = 'scoped memory for eeg_model_2_forward.1']
    #allocation6 [shape = 'u8[512]{0}', space=vmem, size = 0x400, scoped, tag = 'input window, operand 6, single buffered']
    #allocation7 [shape = 'u8[1024]{0}', space=vmem, size = 0x400, scoped, tag = 'input window, operand 8, single buffered']
    #allocation8 [shape = 's32[1]{0}', space=sflag, size = 0x4, scoped, tag = 'scoped memory for eeg_model_2_forward.1']
    #allocation9 [shape = 'u8[16384]{0}', space=vmem, size = 0x4000, scoped, tag = 'input window, operand 10, single buffered']
    #allocation10 [shape = 'u8[512]{0}', space=vmem, size = 0x400, scoped, tag = 'input window, operand 11, single buffered']
    #allocation11 [shape = 's32[1]{0}', space=sflag, size = 0x4, scoped, tag = 'scoped memory for eeg_model_2_forward.1']
    #allocation12 [shape = 'u8[512]{0}', space=vmem, size = 0x400, scoped, tag = 'input window, operand 12, single buffered']
    #allocation13 [shape = 'u8[131072]{0}', space=vmem, size = 0x20000, scoped, tag = 'input window, operand 13, single buffered']
    #allocation14 [shape = 's32[1]{0}', space=sflag, size = 0x4, scoped, tag = 'scoped memory for eeg_model_2_forward.1']
    #allocation15 [shape = 'u8[512]{0}', space=vmem, size = 0x400, scoped, tag = 'input window, operand 14, single buffered']
    #allocation16 [shape = 'u8[8192]{0}', space=vmem, size = 0x2000, scoped, tag = 'input window, operand 16, single buffered']
    #allocation17 [shape = 's32[1]{0}', space=sflag, size = 0x4, scoped, tag = 'scoped memory for eeg_model_2_forward.1']
    #allocation18 [shape = 'u8[512]{0}', space=vmem, size = 0x400, scoped, tag = 'input window, operand 17, single buffered']
    #allocation19 [shape = 'u8[512]{0}', space=vmem, size = 0x400, scoped, tag = 'input window, operand 18, single buffered']
    #allocation20 [shape = 's32[1]{0}', space=sflag, size = 0x4, scoped, tag = 'scoped memory for eeg_model_2_forward.1']
    #allocation21 [shape = 'u8[512]{0}', space=vmem, size = 0x400, scoped, tag = 'input window, operand 20, single buffered']
    #allocation22 [shape = 'u8[4096]{0}', space=vmem, size = 0x1000, scoped, tag = 'input window, operand 22, single buffered']
    #allocation23 [shape = 's32[1]{0}', space=sflag, size = 0x4, scoped, tag = 'scoped memory for eeg_model_2_forward.1']
    #allocation24 [shape = 'u8[512]{0}', space=vmem, size = 0x400, scoped, tag = 'input window, operand 23, single buffered']
    #allocation25 [shape = 'u8[512]{0}', space=vmem, size = 0x400, scoped, tag = 'input window, operand 24, single buffered']
    #allocation26 [shape = 's32[1]{0}', space=sflag, size = 0x4, scoped, tag = 'scoped memory for eeg_model_2_forward.1']
    #allocation27 [shape = 'u8[196608]{0}', space=vmem, size = 0x30000, scoped, tag = 'input window, operand 28, single buffered']
    #allocation28 [shape = 'u8[1536]{0}', space=vmem, size = 0x800, scoped, tag = 'input window, operand 30, single buffered']
    #allocation29 [shape = 's32[1]{0}', space=sflag, size = 0x4, scoped, tag = 'scoped memory for eeg_model_2_forward.1']
    #allocation30 [shape = 'u8[65536]{0}', space=vmem, size = 0x10000, scoped, tag = 'input window, operand 31, single buffered']
    #allocation31 [shape = 'u8[512]{0}', space=vmem, size = 0x400, scoped, tag = 'input window, operand 32, single buffered']
    #allocation32 [shape = 's32[1]{0}', space=sflag, size = 0x4, scoped, tag = 'scoped memory for eeg_model_2_forward.1']
    %75 = vsyncpa [#allocation3], 0
    %76 = vsyncpa [#allocation5], 0
    %77 = vsyncpa [#allocation8], 0
    %78 = vsyncpa [#allocation11], 0
    %79 = vsyncpa [#allocation14], 0
    %80 = vsyncpa [#allocation17], 0
    %81 = vsyncpa [#allocation20], 0
    %82 = vsyncpa [#allocation23], 0
    %83 = vsyncpa [#allocation26], 0
    %84 = vsyncpa [#allocation29], 0
    %85 = vsyncpa [#allocation32], 0
    // Predicated region
    $region2: #{eeg_model_2_forward.1} parent=1 // pred_check
      _
    $region3: #{eeg_model_2_forward.1} parent=1 // pred_check_branch
      %87 = sbr.rel (0) target = $region5
    $region4: #{eeg_model_2_forward.1} parent=1 // pred_region
      _
    $region5: #{eeg_model_2_forward.1} parent=1 // pred_fallthru
      _
    // Predicated region
    $region6: #{eeg_model_2_forward.1} parent=1 // pred_check
      _
    $region7: #{eeg_model_2_forward.1} parent=1 // pred_check_branch
      %89 = sbr.rel (0) target = $region9
    $region8: #{eeg_model_2_forward.1} parent=1 // pred_region
      _
    $region9: #{eeg_model_2_forward.1} parent=1 // pred_fallthru
      _
    // Predicated region
    $region10: #{eeg_model_2_forward.1} parent=1 // pred_check
      _
    $region11: #{eeg_model_2_forward.1} parent=1 // pred_check_branch
      %91 = sbr.rel (0) target = $region13
    $region12: #{eeg_model_2_forward.1} parent=1 // pred_region
      _
    $region13: #{eeg_model_2_forward.1} parent=1 // pred_fallthru
      _
    // Predicated region
    $region14: #{eeg_model_2_forward.1} parent=1 // pred_check
      _
    $region15: #{eeg_model_2_forward.1} parent=1 // pred_check_branch
      %93 = sbr.rel (0) target = $region17
    $region16: #{eeg_model_2_forward.1} parent=1 // pred_region
      _
    $region17: #{eeg_model_2_forward.1} parent=1 // pred_fallthru
      _
    // Predicated region
    $region18: #{eeg_model_2_forward.1} parent=1 // pred_check
      _
    $region19: #{eeg_model_2_forward.1} parent=1 // pred_check_branch
      %95 = sbr.rel (0) target = $region21
    $region20: #{eeg_model_2_forward.1} parent=1 // pred_region
      %s97 = ssub.s32 512, 512
      %98 = vsyncadd [#allocation3], %s97
      %s99 = sshll.u32 [#allocation2], 4
      %s100 = int_to_ptr.vmem [resolvable:$true] %s99
      %105 = dma.hbm_to_vmem [thread:$0]  %s9, 512, %s100, [#allocation3], 256, 256, 16
    $region21: #{eeg_model_2_forward.1} parent=1 // pred_fallthru
      _
    // Predicated region
    $region22: #{eeg_model_2_forward.1} parent=1 // pred_check
      _
    $region23: #{eeg_model_2_forward.1} parent=1 // pred_check_branch
      %107 = sbr.rel (0) target = $region25
    $region24: #{eeg_model_2_forward.1} parent=1 // pred_region
      %s109 = ssub.s32 16, 16
      %110 = vsyncadd [#allocation5], %s109
      %s112 = sshll.u32 [#allocation4], 4
      %s113 = int_to_ptr.vmem [resolvable:$true] %s112
      %115 = dma.hbm_to_vmem [thread:$0]  %s11, 16, %s113, [#allocation5]
    $region25: #{eeg_model_2_forward.1} parent=1 // pred_fallthru
      _
    // Predicated region
    $region26: #{eeg_model_2_forward.1} parent=1 // pred_check
      _
    $region27: #{eeg_model_2_forward.1} parent=1 // pred_check_branch
      %117 = sbr.rel (0) target = $region29
    $region28: #{eeg_model_2_forward.1} parent=1 // pred_region
      %s119 = ssub.s32 16, 16
      %120 = vsyncadd [#allocation5], %s119
      %s122 = sshll.u32 [#allocation6], 4
      %s123 = int_to_ptr.vmem [resolvable:$true] %s122
      %125 = dma.hbm_to_vmem [thread:$0]  %s13, 16, %s123, [#allocation5]
    $region29: #{eeg_model_2_forward.1} parent=1 // pred_fallthru
      _
    // Predicated region
    $region30: #{eeg_model_2_forward.1} parent=1 // pred_check
      _
    $region31: #{eeg_model_2_forward.1} parent=1 // pred_check_branch
      %127 = sbr.rel (0) target = $region33
    $region32: #{eeg_model_2_forward.1} parent=1 // pred_region
      _
    $region33: #{eeg_model_2_forward.1} parent=1 // pred_fallthru
      _
    // Predicated region
    $region34: #{eeg_model_2_forward.1} parent=1 // pred_check
      _
    $region35: #{eeg_model_2_forward.1} parent=1 // pred_check_branch
      %129 = sbr.rel (0) target = $region37
    $region36: #{eeg_model_2_forward.1} parent=1 // pred_region
      %s131 = ssub.s32 32, 32
      %132 = vsyncadd [#allocation8], %s131
      %s134 = sshll.u32 [#allocation7], 4
      %s135 = int_to_ptr.vmem [resolvable:$true] %s134
      %137 = dma.hbm_to_vmem [thread:$0]  %s17, 32, %s135, [#allocation8]
    $region37: #{eeg_model_2_forward.1} parent=1 // pred_fallthru
      _
    // Predicated region
    $region38: #{eeg_model_2_forward.1} parent=1 // pred_check
      _
    $region39: #{eeg_model_2_forward.1} parent=1 // pred_check_branch
      %139 = sbr.rel (0) target = $region41
    $region40: #{eeg_model_2_forward.1} parent=1 // pred_region
      _
    $region41: #{eeg_model_2_forward.1} parent=1 // pred_fallthru
      _
    // Predicated region
    $region42: #{eeg_model_2_forward.1} parent=1 // pred_check
      _
    $region43: #{eeg_model_2_forward.1} parent=1 // pred_check_branch
      %141 = sbr.rel (0) target = $region45
    $region44: #{eeg_model_2_forward.1} parent=1 // pred_region
      %s143 = ssub.s32 512, 512
      %144 = vsyncadd [#allocation8], %s143
      %s145 = sshll.u32 [#allocation9], 4
      %s146 = int_to_ptr.vmem [resolvable:$true] %s145
      %151 = dma.hbm_to_vmem [thread:$0]  %s21, 512, %s146, [#allocation8], 256, 256, 16
    $region45: #{eeg_model_2_forward.1} parent=1 // pred_fallthru
      _
    // Predicated region
    $region46: #{eeg_model_2_forward.1} parent=1 // pred_check
      _
    $region47: #{eeg_model_2_forward.1} parent=1 // pred_check_branch
      %153 = sbr.rel (0) target = $region49
    $region48: #{eeg_model_2_forward.1} parent=1 // pred_region
      %s155 = ssub.s32 16, 16
      %156 = vsyncadd [#allocation11], %s155
      %s158 = sshll.u32 [#allocation10], 4
      %s159 = int_to_ptr.vmem [resolvable:$true] %s158
      %161 = dma.hbm_to_vmem [thread:$0]  %s23, 16, %s159, [#allocation11]
    $region49: #{eeg_model_2_forward.1} parent=1 // pred_fallthru
      _
    // Predicated region
    $region50: #{eeg_model_2_forward.1} parent=1 // pred_check
      _
    $region51: #{eeg_model_2_forward.1} parent=1 // pred_check_branch
      %163 = sbr.rel (0) target = $region53
    $region52: #{eeg_model_2_forward.1} parent=1 // pred_region
      %s165 = ssub.s32 16, 16
      %166 = vsyncadd [#allocation11], %s165
      %s168 = sshll.u32 [#allocation12], 4
      %s169 = int_to_ptr.vmem [resolvable:$true] %s168
      %171 = dma.hbm_to_vmem [thread:$0]  %s25, 16, %s169, [#allocation11]
    $region53: #{eeg_model_2_forward.1} parent=1 // pred_fallthru
      _
    // Predicated region
    $region54: #{eeg_model_2_forward.1} parent=1 // pred_check
      _
    $region55: #{eeg_model_2_forward.1} parent=1 // pred_check_branch
      %173 = sbr.rel (0) target = $region57
    $region56: #{eeg_model_2_forward.1} parent=1 // pred_region
      %s175 = ssub.s32 4096, 4096
      %176 = vsyncadd [#allocation14], %s175
      %s177 = sshll.u32 [#allocation13], 4
      %s178 = int_to_ptr.vmem [resolvable:$true] %s177
      %183 = dma.hbm_to_vmem [thread:$0]  %s27, 4096, %s178, [#allocation14], 128, 128, 8
    $region57: #{eeg_model_2_forward.1} parent=1 // pred_fallthru
      _
    // Predicated region
    $region58: #{eeg_model_2_forward.1} parent=1 // pred_check
      _
    $region59: #{eeg_model_2_forward.1} parent=1 // pred_check_branch
      %185 = sbr.rel (0) target = $region61
    $region60: #{eeg_model_2_forward.1} parent=1 // pred_region
      %s187 = ssub.s32 16, 16
      %188 = vsyncadd [#allocation14], %s187
      %s190 = sshll.u32 [#allocation15], 4
      %s191 = int_to_ptr.vmem [resolvable:$true] %s190
      %193 = dma.hbm_to_vmem [thread:$0]  %s29, 16, %s191, [#allocation14]
    $region61: #{eeg_model_2_forward.1} parent=1 // pred_fallthru
      _
    // Predicated region
    $region62: #{eeg_model_2_forward.1} parent=1 // pred_check
      _
    $region63: #{eeg_model_2_forward.1} parent=1 // pred_check_branch
      %195 = sbr.rel (0) target = $region65
    $region64: #{eeg_model_2_forward.1} parent=1 // pred_region
      _
    $region65: #{eeg_model_2_forward.1} parent=1 // pred_fallthru
      _
    // Predicated region
    $region66: #{eeg_model_2_forward.1} parent=1 // pred_check
      _
    $region67: #{eeg_model_2_forward.1} parent=1 // pred_check_branch
      %197 = sbr.rel (0) target = $region69
    $region68: #{eeg_model_2_forward.1} parent=1 // pred_region
      %s199 = ssub.s32 256, 256
      %200 = vsyncadd [#allocation17], %s199
      %s201 = sshll.u32 [#allocation16], 4
      %s202 = int_to_ptr.vmem [resolvable:$true] %s201
      %207 = dma.hbm_to_vmem [thread:$0]  %s33, 256, %s202, [#allocation17], 128, 128, 8
    $region69: #{eeg_model_2_forward.1} parent=1 // pred_fallthru
      _
    // Predicated region
    $region70: #{eeg_model_2_forward.1} parent=1 // pred_check
      _
    $region71: #{eeg_model_2_forward.1} parent=1 // pred_check_branch
      %209 = sbr.rel (0) target = $region73
    $region72: #{eeg_model_2_forward.1} parent=1 // pred_region
      %s211 = ssub.s32 16, 16
      %212 = vsyncadd [#allocation17], %s211
      %s214 = sshll.u32 [#allocation18], 4
      %s215 = int_to_ptr.vmem [resolvable:$true] %s214
      %217 = dma.hbm_to_vmem [thread:$0]  %s35, 16, %s215, [#allocation17]
    $region73: #{eeg_model_2_forward.1} parent=1 // pred_fallthru
      _
    // Predicated region
    $region74: #{eeg_model_2_forward.1} parent=1 // pred_check
      _
    $region75: #{eeg_model_2_forward.1} parent=1 // pred_check_branch
      %219 = sbr.rel (0) target = $region77
    $region76: #{eeg_model_2_forward.1} parent=1 // pred_region
      %s221 = ssub.s32 16, 16
      %222 = vsyncadd [#allocation20], %s221
      %s224 = sshll.u32 [#allocation19], 4
      %s225 = int_to_ptr.vmem [resolvable:$true] %s224
      %227 = dma.hbm_to_vmem [thread:$0]  %s37, 16, %s225, [#allocation20]
    $region77: #{eeg_model_2_forward.1} parent=1 // pred_fallthru
      _
    // Predicated region
    $region78: #{eeg_model_2_forward.1} parent=1 // pred_check
      _
    $region79: #{eeg_model_2_forward.1} parent=1 // pred_check_branch
      %229 = sbr.rel (0) target = $region81
    $region80: #{eeg_model_2_forward.1} parent=1 // pred_region
      _
    $region81: #{eeg_model_2_forward.1} parent=1 // pred_fallthru
      _
    // Predicated region
    $region82: #{eeg_model_2_forward.1} parent=1 // pred_check
      _
    $region83: #{eeg_model_2_forward.1} parent=1 // pred_check_branch
      %231 = sbr.rel (0) target = $region85
    $region84: #{eeg_model_2_forward.1} parent=1 // pred_region
      %s233 = ssub.s32 16, 16
      %234 = vsyncadd [#allocation20], %s233
      %s236 = sshll.u32 [#allocation21], 4
      %s237 = int_to_ptr.vmem [resolvable:$true] %s236
      %239 = dma.hbm_to_vmem [thread:$0]  %s41, 16, %s237, [#allocation20]
    $region85: #{eeg_model_2_forward.1} parent=1 // pred_fallthru
      _
    // Predicated region
    $region86: #{eeg_model_2_forward.1} parent=1 // pred_check
      _
    $region87: #{eeg_model_2_forward.1} parent=1 // pred_check_branch
      %241 = sbr.rel (0) target = $region89
    $region88: #{eeg_model_2_forward.1} parent=1 // pred_region
      _
    $region89: #{eeg_model_2_forward.1} parent=1 // pred_fallthru
      _
    // Predicated region
    $region90: #{eeg_model_2_forward.1} parent=1 // pred_check
      _
    $region91: #{eeg_model_2_forward.1} parent=1 // pred_check_branch
      %243 = sbr.rel (0) target = $region93
    $region92: #{eeg_model_2_forward.1} parent=1 // pred_region
      %s245 = ssub.s32 128, 128
      %246 = vsyncadd [#allocation23], %s245
      %s248 = sshll.u32 [#allocation22], 4
      %s249 = int_to_ptr.vmem [resolvable:$true] %s248
      %251 = dma.hbm_to_vmem [thread:$0]  %s45, 128, %s249, [#allocation23]
    $region93: #{eeg_model_2_forward.1} parent=1 // pred_fallthru
      _
    // Predicated region
    $region94: #{eeg_model_2_forward.1} parent=1 // pred_check
      _
    $region95: #{eeg_model_2_forward.1} parent=1 // pred_check_branch
      %253 = sbr.rel (0) target = $region97
    $region96: #{eeg_model_2_forward.1} parent=1 // pred_region
      %s255 = ssub.s32 16, 16
      %256 = vsyncadd [#allocation23], %s255
      %s258 = sshll.u32 [#allocation24], 4
      %s259 = int_to_ptr.vmem [resolvable:$true] %s258
      %261 = dma.hbm_to_vmem [thread:$0]  %s47, 16, %s259, [#allocation23]
    $region97: #{eeg_model_2_forward.1} parent=1 // pred_fallthru
      _
    // Predicated region
    $region98: #{eeg_model_2_forward.1} parent=1 // pred_check
      _
    $region99: #{eeg_model_2_forward.1} parent=1 // pred_check_branch
      %263 = sbr.rel (0) target = $region101
    $region100: #{eeg_model_2_forward.1} parent=1 // pred_region
      %s265 = ssub.s32 16, 16
      %266 = vsyncadd [#allocation26], %s265
      %s268 = sshll.u32 [#allocation25], 4
      %s269 = int_to_ptr.vmem [resolvable:$true] %s268
      %271 = dma.hbm_to_vmem [thread:$0]  %s49, 16, %s269, [#allocation26]
    $region101: #{eeg_model_2_forward.1} parent=1 // pred_fallthru
      _
    // Predicated region
    $region102: #{eeg_model_2_forward.1} parent=1 // pred_check
      _
    $region103: #{eeg_model_2_forward.1} parent=1 // pred_check_branch
      %273 = sbr.rel (0) target = $region105
    $region104: #{eeg_model_2_forward.1} parent=1 // pred_region
      _
    $region105: #{eeg_model_2_forward.1} parent=1 // pred_fallthru
      _
    // Predicated region
    $region106: #{eeg_model_2_forward.1} parent=1 // pred_check
      _
    $region107: #{eeg_model_2_forward.1} parent=1 // pred_check_branch
      %275 = sbr.rel (0) target = $region109
    $region108: #{eeg_model_2_forward.1} parent=1 // pred_region
      _
    $region109: #{eeg_model_2_forward.1} parent=1 // pred_fallthru
      _
    // Predicated region
    $region110: #{eeg_model_2_forward.1} parent=1 // pred_check
      _
    $region111: #{eeg_model_2_forward.1} parent=1 // pred_check_branch
      %277 = sbr.rel (0) target = $region113
    $region112: #{eeg_model_2_forward.1} parent=1 // pred_region
      _
    $region113: #{eeg_model_2_forward.1} parent=1 // pred_fallthru
      _
    // Predicated region
    $region114: #{eeg_model_2_forward.1} parent=1 // pred_check
      _
    $region115: #{eeg_model_2_forward.1} parent=1 // pred_check_branch
      %279 = sbr.rel (0) target = $region117
    $region116: #{eeg_model_2_forward.1} parent=1 // pred_region
      %s281 = ssub.s32 6144, 6144
      %282 = vsyncadd [#allocation26], %s281
      %s283 = sshll.u32 [#allocation27], 4
      %s284 = int_to_ptr.vmem [resolvable:$true] %s283
      %289 = dma.hbm_to_vmem [thread:$0]  %s57, 6144, %s284, [#allocation26], 384, 384, 24
    $region117: #{eeg_model_2_forward.1} parent=1 // pred_fallthru
      _
    // Predicated region
    $region118: #{eeg_model_2_forward.1} parent=1 // pred_check
      _
    $region119: #{eeg_model_2_forward.1} parent=1 // pred_check_branch
      %291 = sbr.rel (0) target = $region121
    $region120: #{eeg_model_2_forward.1} parent=1 // pred_region
      _
    $region121: #{eeg_model_2_forward.1} parent=1 // pred_fallthru
      _
    // Predicated region
    $region122: #{eeg_model_2_forward.1} parent=1 // pred_check
      _
    $region123: #{eeg_model_2_forward.1} parent=1 // pred_check_branch
      %293 = sbr.rel (0) target = $region125
    $region124: #{eeg_model_2_forward.1} parent=1 // pred_region
      %s295 = ssub.s32 48, 48
      %296 = vsyncadd [#allocation29], %s295
      %s298 = sshll.u32 [#allocation28], 4
      %s299 = int_to_ptr.vmem [resolvable:$true] %s298
      %301 = dma.hbm_to_vmem [thread:$0]  %s61, 48, %s299, [#allocation29]
    $region125: #{eeg_model_2_forward.1} parent=1 // pred_fallthru
      _
    // Predicated region
    $region126: #{eeg_model_2_forward.1} parent=1 // pred_check
      _
    $region127: #{eeg_model_2_forward.1} parent=1 // pred_check_branch
      %303 = sbr.rel (0) target = $region129
    $region128: #{eeg_model_2_forward.1} parent=1 // pred_region
      %s305 = ssub.s32 2048, 2048
      %306 = vsyncadd [#allocation29], %s305
      %s307 = sshll.u32 [#allocation30], 4
      %s308 = int_to_ptr.vmem [resolvable:$true] %s307
      %313 = dma.hbm_to_vmem [thread:$0]  %s63, 2048, %s308, [#allocation29], 128, 128, 8
    $region129: #{eeg_model_2_forward.1} parent=1 // pred_fallthru
      _
    // Predicated region
    $region130: #{eeg_model_2_forward.1} parent=1 // pred_check
      _
    $region131: #{eeg_model_2_forward.1} parent=1 // pred_check_branch
      %315 = sbr.rel (0) target = $region133
    $region132: #{eeg_model_2_forward.1} parent=1 // pred_region
      %s317 = ssub.s32 16, 16
      %318 = vsyncadd [#allocation32], %s317
      %s320 = sshll.u32 [#allocation31], 4
      %s321 = int_to_ptr.vmem [resolvable:$true] %s320
      %323 = dma.hbm_to_vmem [thread:$0]  %s65, 16, %s321, [#allocation32]
    $region133: #{eeg_model_2_forward.1} parent=1 // pred_fallthru
      _
    // Predicated region
    $region134: #{eeg_model_2_forward.1} parent=1 // pred_check
      _
    $region135: #{eeg_model_2_forward.1} parent=1 // pred_check_branch
      %325 = sbr.rel (0) target = $region137
    $region136: #{eeg_model_2_forward.1} parent=1 // pred_region
      %326 = dma.done [#allocation3], 512
    $region137: #{eeg_model_2_forward.1} parent=1 // pred_fallthru
      _
    // Predicated region
    $region138: #{eeg_model_2_forward.1} parent=1 // pred_check
      _
    $region139: #{eeg_model_2_forward.1} parent=1 // pred_check_branch
      %328 = sbr.rel (0) target = $region141
    $region140: #{eeg_model_2_forward.1} parent=1 // pred_region
      %329 = dma.done [#allocation5], 16
    $region141: #{eeg_model_2_forward.1} parent=1 // pred_fallthru
      _
    // Predicated region
    $region142: #{eeg_model_2_forward.1} parent=1 // pred_check
      _
    $region143: #{eeg_model_2_forward.1} parent=1 // pred_check_branch
      %331 = sbr.rel (0) target = $region145
    $region144: #{eeg_model_2_forward.1} parent=1 // pred_region
      %332 = dma.done [#allocation5], 16
    $region145: #{eeg_model_2_forward.1} parent=1 // pred_fallthru
      _
    // Predicated region
    $region146: #{eeg_model_2_forward.1} parent=1 // pred_check
      _
    $region147: #{eeg_model_2_forward.1} parent=1 // pred_check_branch
      %334 = sbr.rel (0) target = $region149
    $region148: #{eeg_model_2_forward.1} parent=1 // pred_region
      %335 = dma.done [#allocation8], 32
    $region149: #{eeg_model_2_forward.1} parent=1 // pred_fallthru
      _
    // Predicated region
    $region150: #{eeg_model_2_forward.1} parent=1 // pred_check
      _
    $region151: #{eeg_model_2_forward.1} parent=1 // pred_check_branch
      %337 = sbr.rel (0) target = $region153
    $region152: #{eeg_model_2_forward.1} parent=1 // pred_region
      %338 = dma.done [#allocation8], 512
    $region153: #{eeg_model_2_forward.1} parent=1 // pred_fallthru
      _
    // Predicated region
    $region154: #{eeg_model_2_forward.1} parent=1 // pred_check
      _
    $region155: #{eeg_model_2_forward.1} parent=1 // pred_check_branch
      %340 = sbr.rel (0) target = $region157
    $region156: #{eeg_model_2_forward.1} parent=1 // pred_region
      %341 = dma.done [#allocation11], 16
    $region157: #{eeg_model_2_forward.1} parent=1 // pred_fallthru
      _
    // Predicated region
    $region158: #{eeg_model_2_forward.1} parent=1 // pred_check
      _
    $region159: #{eeg_model_2_forward.1} parent=1 // pred_check_branch
      %343 = sbr.rel (0) target = $region161
    $region160: #{eeg_model_2_forward.1} parent=1 // pred_region
      %344 = dma.done [#allocation11], 16
    $region161: #{eeg_model_2_forward.1} parent=1 // pred_fallthru
      _
    // Predicated region
    $region162: #{eeg_model_2_forward.1} parent=1 // pred_check
      _
    $region163: #{eeg_model_2_forward.1} parent=1 // pred_check_branch
      %346 = sbr.rel (0) target = $region165
    $region164: #{eeg_model_2_forward.1} parent=1 // pred_region
      %347 = dma.done [#allocation14], 4096
    $region165: #{eeg_model_2_forward.1} parent=1 // pred_fallthru
      _
    // Predicated region
    $region166: #{eeg_model_2_forward.1} parent=1 // pred_check
      _
    $region167: #{eeg_model_2_forward.1} parent=1 // pred_check_branch
      %349 = sbr.rel (0) target = $region169
    $region168: #{eeg_model_2_forward.1} parent=1 // pred_region
      %350 = dma.done [#allocation14], 16
    $region169: #{eeg_model_2_forward.1} parent=1 // pred_fallthru
      _
    // Predicated region
    $region170: #{eeg_model_2_forward.1} parent=1 // pred_check
      _
    $region171: #{eeg_model_2_forward.1} parent=1 // pred_check_branch
      %352 = sbr.rel (0) target = $region173
    $region172: #{eeg_model_2_forward.1} parent=1 // pred_region
      %353 = dma.done [#allocation17], 256
    $region173: #{eeg_model_2_forward.1} parent=1 // pred_fallthru
      _
    // Predicated region
    $region174: #{eeg_model_2_forward.1} parent=1 // pred_check
      _
    $region175: #{eeg_model_2_forward.1} parent=1 // pred_check_branch
      %355 = sbr.rel (0) target = $region177
    $region176: #{eeg_model_2_forward.1} parent=1 // pred_region
      %356 = dma.done [#allocation17], 16
    $region177: #{eeg_model_2_forward.1} parent=1 // pred_fallthru
      _
    // Predicated region
    $region178: #{eeg_model_2_forward.1} parent=1 // pred_check
      _
    $region179: #{eeg_model_2_forward.1} parent=1 // pred_check_branch
      %358 = sbr.rel (0) target = $region181
    $region180: #{eeg_model_2_forward.1} parent=1 // pred_region
      %359 = dma.done [#allocation20], 16
    $region181: #{eeg_model_2_forward.1} parent=1 // pred_fallthru
      _
    // Predicated region
    $region182: #{eeg_model_2_forward.1} parent=1 // pred_check
      _
    $region183: #{eeg_model_2_forward.1} parent=1 // pred_check_branch
      %361 = sbr.rel (0) target = $region185
    $region184: #{eeg_model_2_forward.1} parent=1 // pred_region
      %362 = dma.done [#allocation20], 16
    $region185: #{eeg_model_2_forward.1} parent=1 // pred_fallthru
      _
    // Predicated region
    $region186: #{eeg_model_2_forward.1} parent=1 // pred_check
      _
    $region187: #{eeg_model_2_forward.1} parent=1 // pred_check_branch
      %364 = sbr.rel (0) target = $region189
    $region188: #{eeg_model_2_forward.1} parent=1 // pred_region
      %365 = dma.done [#allocation23], 128
    $region189: #{eeg_model_2_forward.1} parent=1 // pred_fallthru
      _
    // Predicated region
    $region190: #{eeg_model_2_forward.1} parent=1 // pred_check
      _
    $region191: #{eeg_model_2_forward.1} parent=1 // pred_check_branch
      %367 = sbr.rel (0) target = $region193
    $region192: #{eeg_model_2_forward.1} parent=1 // pred_region
      %368 = dma.done [#allocation23], 16
    $region193: #{eeg_model_2_forward.1} parent=1 // pred_fallthru
      _
    // Predicated region
    $region194: #{eeg_model_2_forward.1} parent=1 // pred_check
      _
    $region195: #{eeg_model_2_forward.1} parent=1 // pred_check_branch
      %370 = sbr.rel (0) target = $region197
    $region196: #{eeg_model_2_forward.1} parent=1 // pred_region
      %371 = dma.done [#allocation26], 16
    $region197: #{eeg_model_2_forward.1} parent=1 // pred_fallthru
      _
    // Predicated region
    $region198: #{eeg_model_2_forward.1} parent=1 // pred_check
      _
    $region199: #{eeg_model_2_forward.1} parent=1 // pred_check_branch
      %373 = sbr.rel (0) target = $region201
    $region200: #{eeg_model_2_forward.1} parent=1 // pred_region
      %374 = dma.done [#allocation26], 6144
    $region201: #{eeg_model_2_forward.1} parent=1 // pred_fallthru
      _
    // Predicated region
    $region202: #{eeg_model_2_forward.1} parent=1 // pred_check
      _
    $region203: #{eeg_model_2_forward.1} parent=1 // pred_check_branch
      %376 = sbr.rel (0) target = $region205
    $region204: #{eeg_model_2_forward.1} parent=1 // pred_region
      %377 = dma.done [#allocation29], 48
    $region205: #{eeg_model_2_forward.1} parent=1 // pred_fallthru
      _
    // Predicated region
    $region206: #{eeg_model_2_forward.1} parent=1 // pred_check
      _
    $region207: #{eeg_model_2_forward.1} parent=1 // pred_check_branch
      %379 = sbr.rel (0) target = $region209
    $region208: #{eeg_model_2_forward.1} parent=1 // pred_region
      %380 = dma.done [#allocation29], 2048
    $region209: #{eeg_model_2_forward.1} parent=1 // pred_fallthru
      _
    // Predicated region
    $region210: #{eeg_model_2_forward.1} parent=1 // pred_check
      _
    $region211: #{eeg_model_2_forward.1} parent=1 // pred_check_branch
      %382 = sbr.rel (0) target = $region213
    $region212: #{eeg_model_2_forward.1} parent=1 // pred_region
      %383 = dma.done [#allocation32], 16
    $region213: #{eeg_model_2_forward.1} parent=1 // pred_fallthru
      _
    %v384 = vld [vmem:[%s1] sm:$0xff]
    %v385 = vld [vmem:[%s1 + $0x8] sm:$0xff]
    %v386 = vld [vmem:[%s3] sm:$0xff]
    %v387 = vld [vmem:[%s3 + $0x8] sm:$0xff]
    %v388 = vld [vmem:[%s3 + $0x10] sm:$0xff]
    %v389 = vld [vmem:[%s3 + $0x18] sm:$0xff]
    %v390 = vld [vmem:[%s3 + $0x20] sm:$0xff]
    %v391 = vld [vmem:[%s3 + $0x28] sm:$0xff]
    %v392 = vld [vmem:[%s3 + $0x30] sm:$0xff]
    %v393 = vld [vmem:[%s3 + $0x38] sm:$0xff]
    %v394 = vld [vmem:[%s3 + $0x40] sm:$0xff]
    %v395 = vld [vmem:[%s3 + $0x48] sm:$0xff]
    %v396 = vld [vmem:[%s3 + $0x50] sm:$0xff]
    %v397 = vld [vmem:[%s3 + $0x58] sm:$0xff]
    %v398 = vld [vmem:[%s3 + $0x60] sm:$0xff]
    %v399 = vld [vmem:[%s3 + $0x68] sm:$0xff]
    %v400 = vld [vmem:[%s3 + $0x70] sm:$0xff]
    %v401 = vld [vmem:[%s3 + $0x78] sm:$0xff]
    %v402 = vld [vmem:[%s3 + $0x80] sm:$0xff]
    %v403 = vld [vmem:[%s3 + $0x88] sm:$0xff]
    %v404 = vld [vmem:[%s3 + $0x90] sm:$0xff]
    %v405 = vld [vmem:[%s3 + $0x98] sm:$0xff]
    %v406 = vld [vmem:[%s3 + $0xa0] sm:$0xff]
    %v407 = vld [vmem:[%s3 + $0xa8] sm:$0xff]
    %v408 = vld [vmem:[%s3 + $0xb0] sm:$0xff]
    %v409 = vld [vmem:[%s3 + $0xb8] sm:$0xff]
    %v410 = vld [vmem:[%s3 + $0xc0] sm:$0xff]
    %v411 = vld [vmem:[%s3 + $0xc8] sm:$0xff]
    %v412 = vld [vmem:[%s3 + $0xd0] sm:$0xff]
    %v413 = vld [vmem:[%s3 + $0xd8] sm:$0xff]
    %v414 = vld [vmem:[%s3 + $0xe0] sm:$0xff]
    %v415 = vld [vmem:[%s3 + $0xe8] sm:$0xff]
    %v416 = vld [vmem:[%s3 + $0xf0] sm:$0xff]
    %v417 = vld [vmem:[%s3 + $0xf8] sm:$0xff]
    %v418 = vld [vmem:[%s3 + $0x100] sm:$0xff]
    %v419 = vld [vmem:[%s3 + $0x108] sm:$0xff]
    %v420 = vld [vmem:[%s3 + $0x110] sm:$0xff]
    %v421 = vld [vmem:[%s3 + $0x118] sm:$0xff]
    %v422 = vld [vmem:[%s3 + $0x120] sm:$0xff]
    %v423 = vld [vmem:[%s3 + $0x128] sm:$0xff]
    %v424 = vld [vmem:[%s3 + $0x130] sm:$0xff]
    %v425 = vld [vmem:[%s3 + $0x138] sm:$0xff]
    %v426 = vld [vmem:[%s3 + $0x140] sm:$0xff]
    %v427 = vld [vmem:[%s3 + $0x148] sm:$0xff]
    %v428 = vld [vmem:[%s3 + $0x150] sm:$0xff]
    %v429 = vld [vmem:[%s3 + $0x158] sm:$0xff]
    %v430 = vld [vmem:[%s3 + $0x160] sm:$0xff]
    %v431 = vld [vmem:[%s3 + $0x168] sm:$0xff]
    %v432 = vld [vmem:[%s3 + $0x170] sm:$0xff]
    %v433 = vld [vmem:[%s3 + $0x178] sm:$0xff]
    %v434 = vld [vmem:[%s3 + $0x180] sm:$0xff]
    %v435 = vld [vmem:[%s3 + $0x188] sm:$0xff]
    %v436 = vld [vmem:[%s3 + $0x190] sm:$0xff]
    %v437 = vld [vmem:[%s3 + $0x198] sm:$0xff]
    %v438 = vld [vmem:[%s3 + $0x1a0] sm:$0xff]
    %v439 = vld [vmem:[%s3 + $0x1a8] sm:$0xff]
    %v440 = vld [vmem:[%s3 + $0x1b0] sm:$0xff]
    %v441 = vld [vmem:[%s3 + $0x1b8] sm:$0xff]
    %v442 = vld [vmem:[%s3 + $0x1c0] sm:$0xff]
    %v443 = vld [vmem:[%s3 + $0x1c8] sm:$0xff]
    %v444 = vld [vmem:[%s3 + $0x1d0] sm:$0xff]
    %v445 = vld [vmem:[%s3 + $0x1d8] sm:$0xff]
    %v446 = vld [vmem:[%s3 + $0x1e0] sm:$0xff]
    %v447 = vld [vmem:[%s3 + $0x1e8] sm:$0xff]
    %v448 = vld [vmem:[%s3 + $0x1f0] sm:$0xff]
    %v449 = vld [vmem:[%s3 + $0x1f8] sm:$0xff]
    %v450 = vld [vmem:[%s5] sm:$0x3]
    %v452 = vlaneseq
    %v453 = vshrl.u32 %v452, 7
    %v454 = vsub.s32 0, %v453
    %v455 = vrot.slane %v450, %v454
    %v456 = vlaneseq
    %v457 = vshrl.u32 %v456, 7
    %v458 = vsub.s32 1, %v457
    %v459 = vrot.slane %v450, %v458
    %462 = vmatprep.subr.mxu0 %v417
    %463 = vmatpush1.msra.mxu0 %v416
    %464 = vmatprep.subr.mxu0 %v415
    %465 = vmatpush1.msra.mxu0 %v414
    %466 = vmatprep.subr.mxu0 %v413
    %467 = vmatpush1.msra.mxu0 %v412
    %468 = vmatprep.subr.mxu0 %v411
    %469 = vmatpush1.msra.mxu0 %v410
    %470 = vmatprep.subr.mxu0 %v409
    %471 = vmatpush1.msra.mxu0 %v408
    %472 = vmatprep.subr.mxu0 %v407
    %473 = vmatpush1.msra.mxu0 %v406
    %474 = vmatprep.subr.mxu0 %v405
    %475 = vmatpush1.msra.mxu0 %v404
    %476 = vmatprep.subr.mxu0 %v403
    %477 = vmatpush1.msra.mxu0 %v402
    %478 = vmatprep.subr.mxu0 %v401
    %479 = vmatpush1.msra.mxu0 %v400
    %480 = vmatprep.subr.mxu0 %v399
    %481 = vmatpush1.msra.mxu0 %v398
    %482 = vmatprep.subr.mxu0 %v397
    %483 = vmatpush1.msra.mxu0 %v396
    %484 = vmatprep.subr.mxu0 %v395
    %485 = vmatpush1.msra.mxu0 %v394
    %486 = vmatprep.subr.mxu0 %v393
    %487 = vmatpush1.msra.mxu0 %v392
    %488 = vmatprep.subr.mxu0 %v391
    %489 = vmatpush1.msra.mxu0 %v390
    %490 = vmatprep.subr.mxu0 %v389
    %491 = vmatpush1.msra.mxu0 %v388
    %492 = vmatprep.subr.mxu0 %v387
    %493 = vmatpush1.msra.mxu0 %v386
    %494 = vmatprep.subr.mxu0 %v449
    %495 = vmatpush2.msra.mxu0 %v448
    %496 = vmatprep.subr.mxu0 %v447
    %497 = vmatpush2.msra.mxu0 %v446
    %498 = vmatprep.subr.mxu0 %v445
    %499 = vmatpush2.msra.mxu0 %v444
    %500 = vmatprep.subr.mxu0 %v443
    %501 = vmatpush2.msra.mxu0 %v442
    %502 = vmatprep.subr.mxu0 %v441
    %503 = vmatpush2.msra.mxu0 %v440
    %504 = vmatprep.subr.mxu0 %v439
    %505 = vmatpush2.msra.mxu0 %v438
    %506 = vmatprep.subr.mxu0 %v437
    %507 = vmatpush2.msra.mxu0 %v436
    %508 = vmatprep.subr.mxu0 %v435
    %509 = vmatpush2.msra.mxu0 %v434
    %510 = vmatprep.subr.mxu0 %v433
    %511 = vmatpush2.msra.mxu0 %v432
    %512 = vmatprep.subr.mxu0 %v431
    %513 = vmatpush2.msra.mxu0 %v430
    %514 = vmatprep.subr.mxu0 %v429
    %515 = vmatpush2.msra.mxu0 %v428
    %516 = vmatprep.subr.mxu0 %v427
    %517 = vmatpush2.msra.mxu0 %v426
    %518 = vmatprep.subr.mxu0 %v425
    %519 = vmatpush2.msra.mxu0 %v424
    %520 = vmatprep.subr.mxu0 %v423
    %521 = vmatpush2.msra.mxu0 %v422
    %522 = vmatprep.subr.mxu0 %v421
    %523 = vmatpush2.msra.mxu0 %v420
    %524 = vmatprep.subr.mxu0 %v419
    %525 = vmatpush2.msra.mxu0 %v418
    %526 = vmatprep.mubr.f32.mxu0 %v385
    %527 = vmatmul.mubr.f32.gmra.mxu0 %v384
    %v528 = vpop.f32.mrf.mxu0
    %v529 = vadd.f32 %v455, %v528
    %v530 = vpop.f32.mrf.mxu0
    %v531 = vadd.f32 %v459, %v530
    %532 = vdwg.mxu0
    %v533 = vmul.f32 %v529, %v529
    %v534 = vmul.f32 %v531, %v531
    %v535 = vld [vmem:[%s7] sm:$0xff]
    %v536 = vld [vmem:[%s7 + $0x8] sm:$0xff]
    %v537 = vld [vmem:[%s7 + $0x10] sm:$0xff]
    %v538 = vld [vmem:[%s7 + $0x18] sm:$0xff]
    %v539 = vld [vmem:[%s7 + $0x20] sm:$0xff]
    %v540 = vld [vmem:[%s7 + $0x28] sm:$0xff]
    %v541 = vld [vmem:[%s7 + $0x30] sm:$0xff]
    %v542 = vld [vmem:[%s7 + $0x38] sm:$0xff]
    %v543 = vld [vmem:[%s7 + $0x40] sm:$0xff]
    %v544 = vld [vmem:[%s7 + $0x48] sm:$0xff]
    %v545 = vld [vmem:[%s7 + $0x50] sm:$0xff]
    %v546 = vld [vmem:[%s7 + $0x58] sm:$0xff]
    %v547 = vld [vmem:[%s7 + $0x60] sm:$0xff]
    %v548 = vld [vmem:[%s7 + $0x68] sm:$0xff]
    %v549 = vld [vmem:[%s7 + $0x70] sm:$0xff]
    %v550 = vld [vmem:[%s7 + $0x78] sm:$0xff]
    %v551 = vld [vmem:[%s7 + $0x80] sm:$0xff]
    %v552 = vld [vmem:[%s7 + $0x88] sm:$0xff]
    %v553 = vld [vmem:[%s7 + $0x90] sm:$0xff]
    %v554 = vld [vmem:[%s7 + $0x98] sm:$0xff]
    %v555 = vld [vmem:[%s7 + $0xa0] sm:$0xff]
    %v556 = vld [vmem:[%s7 + $0xa8] sm:$0xff]
    %v557 = vld [vmem:[%s7 + $0xb0] sm:$0xff]
    %v558 = vld [vmem:[%s7 + $0xb8] sm:$0xff]
    %v559 = vld [vmem:[%s7 + $0xc0] sm:$0xff]
    %v560 = vld [vmem:[%s7 + $0xc8] sm:$0xff]
    %v561 = vld [vmem:[%s7 + $0xd0] sm:$0xff]
    %v562 = vld [vmem:[%s7 + $0xd8] sm:$0xff]
    %v563 = vld [vmem:[%s7 + $0xe0] sm:$0xff]
    %v564 = vld [vmem:[%s7 + $0xe8] sm:$0xff]
    %v565 = vld [vmem:[%s7 + $0xf0] sm:$0xff]
    %v566 = vld [vmem:[%s7 + $0xf8] sm:$0xff]
    %567 = vmatprep.subr.mxu0 0.0
    %568 = vmatpush1.msra.mxu0 %v550
    %569 = vmatprep.subr.mxu0 0.0
    %570 = vmatpush1.msra.mxu0 %v549
    %571 = vmatprep.subr.mxu0 0.0
    %572 = vmatpush1.msra.mxu0 %v548
    %573 = vmatprep.subr.mxu0 0.0
    %574 = vmatpush1.msra.mxu0 %v547
    %575 = vmatprep.subr.mxu0 0.0
    %576 = vmatpush1.msra.mxu0 %v546
    %577 = vmatprep.subr.mxu0 0.0
    %578 = vmatpush1.msra.mxu0 %v545
    %579 = vmatprep.subr.mxu0 0.0
    %580 = vmatpush1.msra.mxu0 %v544
    %581 = vmatprep.subr.mxu0 0.0
    %582 = vmatpush1.msra.mxu0 %v543
    %583 = vmatprep.subr.mxu0 0.0
    %584 = vmatpush1.msra.mxu0 %v542
    %585 = vmatprep.subr.mxu0 0.0
    %586 = vmatpush1.msra.mxu0 %v541
    %587 = vmatprep.subr.mxu0 0.0
    %588 = vmatpush1.msra.mxu0 %v540
    %589 = vmatprep.subr.mxu0 0.0
    %590 = vmatpush1.msra.mxu0 %v539
    %591 = vmatprep.subr.mxu0 0.0
    %592 = vmatpush1.msra.mxu0 %v538
    %593 = vmatprep.subr.mxu0 0.0
    %594 = vmatpush1.msra.mxu0 %v537
    %595 = vmatprep.subr.mxu0 0.0
    %596 = vmatpush1.msra.mxu0 %v536
    %597 = vmatprep.subr.mxu0 0.0
    %598 = vmatpush1.msra.mxu0 %v535
    %599 = vmatprep.subr.mxu0 0.0
    %600 = vmatpush2.msra.mxu0 %v566
    %601 = vmatprep.subr.mxu0 0.0
    %602 = vmatpush2.msra.mxu0 %v565
    %603 = vmatprep.subr.mxu0 0.0
    %604 = vmatpush2.msra.mxu0 %v564
    %605 = vmatprep.subr.mxu0 0.0
    %606 = vmatpush2.msra.mxu0 %v563
    %607 = vmatprep.subr.mxu0 0.0
    %608 = vmatpush2.msra.mxu0 %v562
    %609 = vmatprep.subr.mxu0 0.0
    %610 = vmatpush2.msra.mxu0 %v561
    %611 = vmatprep.subr.mxu0 0.0
    %612 = vmatpush2.msra.mxu0 %v560
    %613 = vmatprep.subr.mxu0 0.0
    %614 = vmatpush2.msra.mxu0 %v559
    %615 = vmatprep.subr.mxu0 0.0
    %616 = vmatpush2.msra.mxu0 %v558
    %617 = vmatprep.subr.mxu0 0.0
    %618 = vmatpush2.msra.mxu0 %v557
    %619 = vmatprep.subr.mxu0 0.0
    %620 = vmatpush2.msra.mxu0 %v556
    %621 = vmatprep.subr.mxu0 0.0
    %622 = vmatpush2.msra.mxu0 %v555
    %623 = vmatprep.subr.mxu0 0.0
    %624 = vmatpush2.msra.mxu0 %v554
    %625 = vmatprep.subr.mxu0 0.0
    %626 = vmatpush2.msra.mxu0 %v553
    %627 = vmatprep.subr.mxu0 0.0
    %628 = vmatpush2.msra.mxu0 %v552
    %629 = vmatprep.subr.mxu0 0.0
    %630 = vmatpush2.msra.mxu0 %v551
    %631 = vmatprep.mubr.f32.mxu0 %v531
    %632 = vmatmul.mubr.f32.gmra.mxu0 %v529
    %v633 = vpop.f32.mrf.mxu0
    %v634 = vadd.f32 0.0, %v633
    %v635 = vpop.f32.mrf.mxu0
    %636 = vmatprep.mubr.f32.mxu0 %v534
    %637 = vmatmul.mubr.f32.gmra.mxu0 %v533
    %v638 = vpop.f32.mrf.mxu0
    %v639 = vadd.f32 0.0, %v638
    %v640 = vpop.f32.mrf.mxu0
    %641 = vdwg.mxu0
    %vm642 = vcmask 130048
    %v643 = vsel %vm642, %v634, 0.0
    %v644 = vrot.slane %v643, 4
    %v645 = vadd.f32 %v643, %v644
    %v646 = vrot.slane %v645, 2
    %v647 = vadd.f32 %v645, %v646
    %v648 = vrot.slane %v647, 1
    %v649 = vadd.f32 %v647, %v648
    %v650 = vrcp.pop 8.0
    %v651 = vmul.f32 %v649, %v650
    %v652 = vsel %vm642, %v639, 0.0
    %v653 = vrot.slane %v652, 4
    %v654 = vadd.f32 %v652, %v653
    %v655 = vrot.slane %v654, 2
    %v656 = vadd.f32 %v654, %v655
    %v657 = vrot.slane %v656, 1
    %v658 = vadd.f32 %v656, %v657
    %v659 = vmul.f32 %v658, %v650
    %v660 = vmul.f32 %v651, %v651
    %v661 = vsub.f32 %v659, %v660
    %v662 = vmax.f32 %v661, 0.0
    %v663 = vld [vmem:[#allocation4] sm:$0x1]
    %v664 = vadd.f32 %v662, 1e-05
    %v665 = vrsqrt.pop %v664
    %v666 = vmul.f32 %v663, %v665
    %v667 = vld [vmem:[#allocation6] sm:$0x1]
    %v668 = vmul.f32 %v666, %v651
    %v669 = vsub.f32 %v667, %v668
    %v670 = vld [vmem:[#allocation2] sm:$0xff]
    %v671 = vld [vmem:[#allocation2 + $0x8] sm:$0xff]
    %v672 = vld [vmem:[#allocation2 + $0x10] sm:$0xff]
    %v673 = vld [vmem:[#allocation2 + $0x18] sm:$0xff]
    %v675 = vsel %vm642, %v666, 0
    %677 = vmatprep.subr.mxu0 0.0
    %678 = vmatpush1.msra.mxu0 0.0
    %679 = vmatprep.subr.mxu0 0.0
    %680 = vmatpush1.msra.mxu0 0.0
    %681 = vmatprep.subr.mxu0 0.0
    %682 = vmatpush1.msra.mxu0 0.0
    %683 = vmatprep.subr.mxu0 0.0
    %684 = vmatpush1.msra.mxu0 0.0
    %685 = vmatprep.subr.mxu0 0.0
    %686 = vmatpush1.msra.mxu0 0.0
    %687 = vmatprep.subr.mxu0 0.0
    %688 = vmatpush1.msra.mxu0 0.0
    %689 = vmatprep.subr.mxu0 0.0
    %690 = vmatpush1.msra.mxu0 0.0
    %691 = vmatprep.subr.mxu0 0.0
    %692 = vmatpush1.msra.mxu0 0.0
    %693 = vmatprep.subr.mxu0 0.0
    %694 = vmatpush1.msra.mxu0 0.0
    %695 = vmatprep.subr.mxu0 0.0
    %696 = vmatpush1.msra.mxu0 0.0
    %697 = vmatprep.subr.mxu0 0.0
    %698 = vmatpush1.msra.mxu0 0.0
    %699 = vmatprep.subr.mxu0 0.0
    %700 = vmatpush1.msra.mxu0 0.0
    %701 = vmatprep.subr.mxu0 0.0
    %702 = vmatpush1.msra.mxu0 0.0
    %703 = vmatprep.subr.mxu0 0.0
    %704 = vmatpush1.msra.mxu0 0.0
    %705 = vmatprep.subr.mxu0 %v673
    %706 = vmatpush1.msra.mxu0 %v672
    %707 = vmatprep.subr.mxu0 %v671
    %708 = vmatpush1.msra.mxu0 %v670
    %709 = vmatprep.subr.mxu0 0.0
    %710 = vmatpush2.msra.mxu0 0.0
    %711 = vmatprep.subr.mxu0 0.0
    %712 = vmatpush2.msra.mxu0 0.0
    %713 = vmatprep.subr.mxu0 0.0
    %714 = vmatpush2.msra.mxu0 0.0
    %715 = vmatprep.subr.mxu0 0.0
    %716 = vmatpush2.msra.mxu0 0.0
    %717 = vmatprep.subr.mxu0 0.0
    %718 = vmatpush2.msra.mxu0 0.0
    %719 = vmatprep.subr.mxu0 0.0
    %720 = vmatpush2.msra.mxu0 0.0
    %721 = vmatprep.subr.mxu0 0.0
    %722 = vmatpush2.msra.mxu0 0.0
    %723 = vmatprep.subr.mxu0 0.0
    %724 = vmatpush2.msra.mxu0 0.0
    %725 = vmatprep.subr.mxu0 0.0
    %726 = vmatpush2.msra.mxu0 0.0
    %727 = vmatprep.subr.mxu0 0.0
    %728 = vmatpush2.msra.mxu0 0.0
    %729 = vmatprep.subr.mxu0 0.0
    %730 = vmatpush2.msra.mxu0 0.0
    %731 = vmatprep.subr.mxu0 0.0
    %732 = vmatpush2.msra.mxu0 0.0
    %733 = vmatprep.subr.mxu0 0.0
    %734 = vmatpush2.msra.mxu0 0.0
    %735 = vmatprep.subr.mxu0 0.0
    %736 = vmatpush2.msra.mxu0 0.0
    %737 = vmatprep.subr.mxu0 0.0
    %738 = vmatpush2.msra.mxu0 0.0
    %739 = vmatprep.subr.mxu0 0.0
    %740 = vmatpush2.msra.mxu0 0.0
    %741 = vmatprep.mubr.f32.mxu0 0.0
    %742 = vmatmul.mubr.f32.gmra.mxu0 %v675
    %v743 = vpop.f32.mrf.mxu0
    %v744 = vadd.f32 0.0, %v743
    %v745 = vpop.f32.mrf.mxu0
    %v746 = vadd.f32 0.0, %v745
    %747 = vdwg.mxu0
    %v749 = vsel %vm642, %v669, 0
    %751 = vmatprep.subr.mxu0 0.0
    %752 = vmatpush1.msra.mxu0 0.0
    %753 = vmatprep.subr.mxu0 0.0
    %754 = vmatpush1.msra.mxu0 0.0
    %755 = vmatprep.subr.mxu0 0.0
    %756 = vmatpush1.msra.mxu0 0.0
    %757 = vmatprep.subr.mxu0 0.0
    %758 = vmatpush1.msra.mxu0 0.0
    %759 = vmatprep.subr.mxu0 0.0
    %760 = vmatpush1.msra.mxu0 0.0
    %761 = vmatprep.subr.mxu0 0.0
    %762 = vmatpush1.msra.mxu0 0.0
    %763 = vmatprep.subr.mxu0 0.0
    %764 = vmatpush1.msra.mxu0 0.0
    %765 = vmatprep.subr.mxu0 0.0
    %766 = vmatpush1.msra.mxu0 0.0
    %767 = vmatprep.subr.mxu0 0.0
    %768 = vmatpush1.msra.mxu0 0.0
    %769 = vmatprep.subr.mxu0 0.0
    %770 = vmatpush1.msra.mxu0 0.0
    %771 = vmatprep.subr.mxu0 0.0
    %772 = vmatpush1.msra.mxu0 0.0
    %773 = vmatprep.subr.mxu0 0.0
    %774 = vmatpush1.msra.mxu0 0.0
    %775 = vmatprep.subr.mxu0 0.0
    %776 = vmatpush1.msra.mxu0 0.0
    %777 = vmatprep.subr.mxu0 0.0
    %778 = vmatpush1.msra.mxu0 0.0
    %779 = vmatprep.subr.mxu0 %v673
    %780 = vmatpush1.msra.mxu0 %v672
    %781 = vmatprep.subr.mxu0 %v671
    %782 = vmatpush1.msra.mxu0 %v670
    %783 = vmatprep.subr.mxu0 0.0
    %784 = vmatpush2.msra.mxu0 0.0
    %785 = vmatprep.subr.mxu0 0.0
    %786 = vmatpush2.msra.mxu0 0.0
    %787 = vmatprep.subr.mxu0 0.0
    %788 = vmatpush2.msra.mxu0 0.0
    %789 = vmatprep.subr.mxu0 0.0
    %790 = vmatpush2.msra.mxu0 0.0
    %791 = vmatprep.subr.mxu0 0.0
    %792 = vmatpush2.msra.mxu0 0.0
    %793 = vmatprep.subr.mxu0 0.0
    %794 = vmatpush2.msra.mxu0 0.0
    %795 = vmatprep.subr.mxu0 0.0
    %796 = vmatpush2.msra.mxu0 0.0
    %797 = vmatprep.subr.mxu0 0.0
    %798 = vmatpush2.msra.mxu0 0.0
    %799 = vmatprep.subr.mxu0 0.0
    %800 = vmatpush2.msra.mxu0 0.0
    %801 = vmatprep.subr.mxu0 0.0
    %802 = vmatpush2.msra.mxu0 0.0
    %803 = vmatprep.subr.mxu0 0.0
    %804 = vmatpush2.msra.mxu0 0.0
    %805 = vmatprep.subr.mxu0 0.0
    %806 = vmatpush2.msra.mxu0 0.0
    %807 = vmatprep.subr.mxu0 0.0
    %808 = vmatpush2.msra.mxu0 0.0
    %809 = vmatprep.subr.mxu0 0.0
    %810 = vmatpush2.msra.mxu0 0.0
    %811 = vmatprep.subr.mxu0 0.0
    %812 = vmatpush2.msra.mxu0 0.0
    %813 = vmatprep.subr.mxu0 0.0
    %814 = vmatpush2.msra.mxu0 0.0
    %815 = vmatprep.mubr.f32.mxu0 0.0
    %816 = vmatmul.mubr.f32.gmra.mxu0 %v749
    %v817 = vpop.f32.mrf.mxu0
    %v818 = vadd.f32 0.0, %v817
    %v819 = vpop.f32.mrf.mxu0
    %v820 = vadd.f32 0.0, %v819
    %821 = vdwg.mxu0
    %v822 = vlaneseq
    %v823 = vshrl.u32 %v822, 7
    %v824 = vsub.s32 0, %v823
    %v825 = vrot.slane %v744, %v824
    %v826 = vlaneseq
    %v827 = vshrl.u32 %v826, 7
    %v828 = vsub.s32 0, %v827
    %v829 = vrot.slane %v746, %v828
    %v830 = vmul.f32 %v529, %v825
    %v831 = vmul.f32 %v531, %v829
    %v832 = vlaneseq
    %v833 = vshrl.u32 %v832, 7
    %v834 = vsub.s32 0, %v833
    %v835 = vrot.slane %v818, %v834
    %v836 = vlaneseq
    %v837 = vshrl.u32 %v836, 7
    %v838 = vsub.s32 0, %v837
    %v839 = vrot.slane %v820, %v838
    %v840 = vadd.f32 %v830, %v835
    %v841 = vadd.f32 %v831, %v839
    %v842 = vmul.f32 %v840, 0.2
    %v843 = vmul.f32 %v841, 0.2
    %v844 = vmax.f32 %v840, %v842
    %v845 = vmax.f32 %v841, %v843
    %v846 = vld [vmem:[%s15] sm:$0xff]
    %v847 = vld [vmem:[%s15 + $0x8] sm:$0xff]
    %v848 = vld [vmem:[%s15 + $0x10] sm:$0xff]
    %v849 = vld [vmem:[%s15 + $0x18] sm:$0xff]
    %v850 = vld [vmem:[%s15 + $0x20] sm:$0xff]
    %v851 = vld [vmem:[%s15 + $0x28] sm:$0xff]
    %v852 = vld [vmem:[%s15 + $0x30] sm:$0xff]
    %v853 = vld [vmem:[%s15 + $0x38] sm:$0xff]
    %v854 = vld [vmem:[%s15 + $0x40] sm:$0xff]
    %v855 = vld [vmem:[%s15 + $0x48] sm:$0xff]
    %v856 = vld [vmem:[%s15 + $0x50] sm:$0xff]
    %v857 = vld [vmem:[%s15 + $0x58] sm:$0xff]
    %v858 = vld [vmem:[%s15 + $0x60] sm:$0xff]
    %v859 = vld [vmem:[%s15 + $0x68] sm:$0xff]
    %v860 = vld [vmem:[%s15 + $0x70] sm:$0xff]
    %v861 = vld [vmem:[%s15 + $0x78] sm:$0xff]
    %v862 = vld [vmem:[%s15 + $0x80] sm:$0xff]
    %v863 = vld [vmem:[%s15 + $0x88] sm:$0xff]
    %v864 = vld [vmem:[%s15 + $0x90] sm:$0xff]
    %v865 = vld [vmem:[%s15 + $0x98] sm:$0xff]
    %v866 = vld [vmem:[%s15 + $0xa0] sm:$0xff]
    %v867 = vld [vmem:[%s15 + $0xa8] sm:$0xff]
    %v868 = vld [vmem:[%s15 + $0xb0] sm:$0xff]
    %v869 = vld [vmem:[%s15 + $0xb8] sm:$0xff]
    %v870 = vld [vmem:[%s15 + $0xc0] sm:$0xff]
    %v871 = vld [vmem:[%s15 + $0xc8] sm:$0xff]
    %v872 = vld [vmem:[%s15 + $0xd0] sm:$0xff]
    %v873 = vld [vmem:[%s15 + $0xd8] sm:$0xff]
    %v874 = vld [vmem:[%s15 + $0xe0] sm:$0xff]
    %v875 = vld [vmem:[%s15 + $0xe8] sm:$0xff]
    %v876 = vld [vmem:[%s15 + $0xf0] sm:$0xff]
    %v877 = vld [vmem:[%s15 + $0xf8] sm:$0xff]
    %v878 = vld [vmem:[%s15 + $0x100] sm:$0xff]
    %v879 = vld [vmem:[%s15 + $0x108] sm:$0xff]
    %v880 = vld [vmem:[%s15 + $0x110] sm:$0xff]
    %v881 = vld [vmem:[%s15 + $0x118] sm:$0xff]
    %v882 = vld [vmem:[%s15 + $0x120] sm:$0xff]
    %v883 = vld [vmem:[%s15 + $0x128] sm:$0xff]
    %v884 = vld [vmem:[%s15 + $0x130] sm:$0xff]
    %v885 = vld [vmem:[%s15 + $0x138] sm:$0xff]
    %v886 = vld [vmem:[%s15 + $0x140] sm:$0xff]
    %v887 = vld [vmem:[%s15 + $0x148] sm:$0xff]
    %v888 = vld [vmem:[%s15 + $0x150] sm:$0xff]
    %v889 = vld [vmem:[%s15 + $0x158] sm:$0xff]
    %v890 = vld [vmem:[%s15 + $0x160] sm:$0xff]
    %v891 = vld [vmem:[%s15 + $0x168] sm:$0xff]
    %v892 = vld [vmem:[%s15 + $0x170] sm:$0xff]
    %v893 = vld [vmem:[%s15 + $0x178] sm:$0xff]
    %v894 = vld [vmem:[%s15 + $0x180] sm:$0xff]
    %v895 = vld [vmem:[%s15 + $0x188] sm:$0xff]
    %v896 = vld [vmem:[%s15 + $0x190] sm:$0xff]
    %v897 = vld [vmem:[%s15 + $0x198] sm:$0xff]
    %v898 = vld [vmem:[%s15 + $0x1a0] sm:$0xff]
    %v899 = vld [vmem:[%s15 + $0x1a8] sm:$0xff]
    %v900 = vld [vmem:[%s15 + $0x1b0] sm:$0xff]
    %v901 = vld [vmem:[%s15 + $0x1b8] sm:$0xff]
    %v902 = vld [vmem:[%s15 + $0x1c0] sm:$0xff]
    %v903 = vld [vmem:[%s15 + $0x1c8] sm:$0xff]
    %v904 = vld [vmem:[%s15 + $0x1d0] sm:$0xff]
    %v905 = vld [vmem:[%s15 + $0x1d8] sm:$0xff]
    %v906 = vld [vmem:[%s15 + $0x1e0] sm:$0xff]
    %v907 = vld [vmem:[%s15 + $0x1e8] sm:$0xff]
    %v908 = vld [vmem:[%s15 + $0x1f0] sm:$0xff]
    %v909 = vld [vmem:[%s15 + $0x1f8] sm:$0xff]
    %v910 = vld [vmem:[#allocation7] sm:$0x3]
    %v912 = vlaneseq
    %v913 = vshrl.u32 %v912, 7
    %v914 = vsub.s32 0, %v913
    %v915 = vrot.slane %v910, %v914
    %v916 = vlaneseq
    %v917 = vshrl.u32 %v916, 7
    %v918 = vsub.s32 1, %v917
    %v919 = vrot.slane %v910, %v918
    %922 = vmatprep.subr.mxu0 %v877
    %923 = vmatpush1.msra.mxu0 %v876
    %924 = vmatprep.subr.mxu0 %v875
    %925 = vmatpush1.msra.mxu0 %v874
    %926 = vmatprep.subr.mxu0 %v873
    %927 = vmatpush1.msra.mxu0 %v872
    %928 = vmatprep.subr.mxu0 %v871
    %929 = vmatpush1.msra.mxu0 %v870
    %930 = vmatprep.subr.mxu0 %v869
    %931 = vmatpush1.msra.mxu0 %v868
    %932 = vmatprep.subr.mxu0 %v867
    %933 = vmatpush1.msra.mxu0 %v866
    %934 = vmatprep.subr.mxu0 %v865
    %935 = vmatpush1.msra.mxu0 %v864
    %936 = vmatprep.subr.mxu0 %v863
    %937 = vmatpush1.msra.mxu0 %v862
    %938 = vmatprep.subr.mxu0 %v861
    %939 = vmatpush1.msra.mxu0 %v860
    %940 = vmatprep.subr.mxu0 %v859
    %941 = vmatpush1.msra.mxu0 %v858
    %942 = vmatprep.subr.mxu0 %v857
    %943 = vmatpush1.msra.mxu0 %v856
    %944 = vmatprep.subr.mxu0 %v855
    %945 = vmatpush1.msra.mxu0 %v854
    %946 = vmatprep.subr.mxu0 %v853
    %947 = vmatpush1.msra.mxu0 %v852
    %948 = vmatprep.subr.mxu0 %v851
    %949 = vmatpush1.msra.mxu0 %v850
    %950 = vmatprep.subr.mxu0 %v849
    %951 = vmatpush1.msra.mxu0 %v848
    %952 = vmatprep.subr.mxu0 %v847
    %953 = vmatpush1.msra.mxu0 %v846
    %954 = vmatprep.subr.mxu0 %v909
    %955 = vmatpush2.msra.mxu0 %v908
    %956 = vmatprep.subr.mxu0 %v907
    %957 = vmatpush2.msra.mxu0 %v906
    %958 = vmatprep.subr.mxu0 %v905
    %959 = vmatpush2.msra.mxu0 %v904
    %960 = vmatprep.subr.mxu0 %v903
    %961 = vmatpush2.msra.mxu0 %v902
    %962 = vmatprep.subr.mxu0 %v901
    %963 = vmatpush2.msra.mxu0 %v900
    %964 = vmatprep.subr.mxu0 %v899
    %965 = vmatpush2.msra.mxu0 %v898
    %966 = vmatprep.subr.mxu0 %v897
    %967 = vmatpush2.msra.mxu0 %v896
    %968 = vmatprep.subr.mxu0 %v895
    %969 = vmatpush2.msra.mxu0 %v894
    %970 = vmatprep.subr.mxu0 %v893
    %971 = vmatpush2.msra.mxu0 %v892
    %972 = vmatprep.subr.mxu0 %v891
    %973 = vmatpush2.msra.mxu0 %v890
    %974 = vmatprep.subr.mxu0 %v889
    %975 = vmatpush2.msra.mxu0 %v888
    %976 = vmatprep.subr.mxu0 %v887
    %977 = vmatpush2.msra.mxu0 %v886
    %978 = vmatprep.subr.mxu0 %v885
    %979 = vmatpush2.msra.mxu0 %v884
    %980 = vmatprep.subr.mxu0 %v883
    %981 = vmatpush2.msra.mxu0 %v882
    %982 = vmatprep.subr.mxu0 %v881
    %983 = vmatpush2.msra.mxu0 %v880
    %984 = vmatprep.subr.mxu0 %v879
    %985 = vmatpush2.msra.mxu0 %v878
    %986 = vmatprep.mubr.f32.mxu0 %v845
    %987 = vmatmul.mubr.f32.gmra.mxu0 %v844
    %v988 = vpop.f32.mrf.mxu0
    %v989 = vadd.f32 %v915, %v988
    %v990 = vpop.f32.mrf.mxu0
    %v991 = vadd.f32 %v919, %v990
    %992 = vdwg.mxu0
    %v993 = vmul.f32 %v989, %v989
    %v994 = vmul.f32 %v991, %v991
    %v995 = vld [vmem:[%s19] sm:$0xff]
    %v996 = vld [vmem:[%s19 + $0x8] sm:$0xff]
    %v997 = vld [vmem:[%s19 + $0x10] sm:$0xff]
    %v998 = vld [vmem:[%s19 + $0x18] sm:$0xff]
    %v999 = vld [vmem:[%s19 + $0x20] sm:$0xff]
    %v1000 = vld [vmem:[%s19 + $0x28] sm:$0xff]
    %v1001 = vld [vmem:[%s19 + $0x30] sm:$0xff]
    %v1002 = vld [vmem:[%s19 + $0x38] sm:$0xff]
    %v1003 = vld [vmem:[%s19 + $0x40] sm:$0xff]
    %v1004 = vld [vmem:[%s19 + $0x48] sm:$0xff]
    %v1005 = vld [vmem:[%s19 + $0x50] sm:$0xff]
    %v1006 = vld [vmem:[%s19 + $0x58] sm:$0xff]
    %v1007 = vld [vmem:[%s19 + $0x60] sm:$0xff]
    %v1008 = vld [vmem:[%s19 + $0x68] sm:$0xff]
    %v1009 = vld [vmem:[%s19 + $0x70] sm:$0xff]
    %v1010 = vld [vmem:[%s19 + $0x78] sm:$0xff]
    %v1011 = vld [vmem:[%s19 + $0x80] sm:$0xff]
    %v1012 = vld [vmem:[%s19 + $0x88] sm:$0xff]
    %v1013 = vld [vmem:[%s19 + $0x90] sm:$0xff]
    %v1014 = vld [vmem:[%s19 + $0x98] sm:$0xff]
    %v1015 = vld [vmem:[%s19 + $0xa0] sm:$0xff]
    %v1016 = vld [vmem:[%s19 + $0xa8] sm:$0xff]
    %v1017 = vld [vmem:[%s19 + $0xb0] sm:$0xff]
    %v1018 = vld [vmem:[%s19 + $0xb8] sm:$0xff]
    %v1019 = vld [vmem:[%s19 + $0xc0] sm:$0xff]
    %v1020 = vld [vmem:[%s19 + $0xc8] sm:$0xff]
    %v1021 = vld [vmem:[%s19 + $0xd0] sm:$0xff]
    %v1022 = vld [vmem:[%s19 + $0xd8] sm:$0xff]
    %v1023 = vld [vmem:[%s19 + $0xe0] sm:$0xff]
    %v1024 = vld [vmem:[%s19 + $0xe8] sm:$0xff]
    %v1025 = vld [vmem:[%s19 + $0xf0] sm:$0xff]
    %v1026 = vld [vmem:[%s19 + $0xf8] sm:$0xff]
    %1027 = vmatprep.subr.mxu0 0.0
    %1028 = vmatpush1.msra.mxu0 %v1010
    %1029 = vmatprep.subr.mxu0 0.0
    %1030 = vmatpush1.msra.mxu0 %v1009
    %1031 = vmatprep.subr.mxu0 0.0
    %1032 = vmatpush1.msra.mxu0 %v1008
    %1033 = vmatprep.subr.mxu0 0.0
    %1034 = vmatpush1.msra.mxu0 %v1007
    %1035 = vmatprep.subr.mxu0 0.0
    %1036 = vmatpush1.msra.mxu0 %v1006
    %1037 = vmatprep.subr.mxu0 0.0
    %1038 = vmatpush1.msra.mxu0 %v1005
    %1039 = vmatprep.subr.mxu0 0.0
    %1040 = vmatpush1.msra.mxu0 %v1004
    %1041 = vmatprep.subr.mxu0 0.0
    %1042 = vmatpush1.msra.mxu0 %v1003
    %1043 = vmatprep.subr.mxu0 0.0
    %1044 = vmatpush1.msra.mxu0 %v1002
    %1045 = vmatprep.subr.mxu0 0.0
    %1046 = vmatpush1.msra.mxu0 %v1001
    %1047 = vmatprep.subr.mxu0 0.0
    %1048 = vmatpush1.msra.mxu0 %v1000
    %1049 = vmatprep.subr.mxu0 0.0
    %1050 = vmatpush1.msra.mxu0 %v999
    %1051 = vmatprep.subr.mxu0 0.0
    %1052 = vmatpush1.msra.mxu0 %v998
    %1053 = vmatprep.subr.mxu0 0.0
    %1054 = vmatpush1.msra.mxu0 %v997
    %1055 = vmatprep.subr.mxu0 0.0
    %1056 = vmatpush1.msra.mxu0 %v996
    %1057 = vmatprep.subr.mxu0 0.0
    %1058 = vmatpush1.msra.mxu0 %v995
    %1059 = vmatprep.subr.mxu0 0.0
    %1060 = vmatpush2.msra.mxu0 %v1026
    %1061 = vmatprep.subr.mxu0 0.0
    %1062 = vmatpush2.msra.mxu0 %v1025
    %1063 = vmatprep.subr.mxu0 0.0
    %1064 = vmatpush2.msra.mxu0 %v1024
    %1065 = vmatprep.subr.mxu0 0.0
    %1066 = vmatpush2.msra.mxu0 %v1023
    %1067 = vmatprep.subr.mxu0 0.0
    %1068 = vmatpush2.msra.mxu0 %v1022
    %1069 = vmatprep.subr.mxu0 0.0
    %1070 = vmatpush2.msra.mxu0 %v1021
    %1071 = vmatprep.subr.mxu0 0.0
    %1072 = vmatpush2.msra.mxu0 %v1020
    %1073 = vmatprep.subr.mxu0 0.0
    %1074 = vmatpush2.msra.mxu0 %v1019
    %1075 = vmatprep.subr.mxu0 0.0
    %1076 = vmatpush2.msra.mxu0 %v1018
    %1077 = vmatprep.subr.mxu0 0.0
    %1078 = vmatpush2.msra.mxu0 %v1017
    %1079 = vmatprep.subr.mxu0 0.0
    %1080 = vmatpush2.msra.mxu0 %v1016
    %1081 = vmatprep.subr.mxu0 0.0
    %1082 = vmatpush2.msra.mxu0 %v1015
    %1083 = vmatprep.subr.mxu0 0.0
    %1084 = vmatpush2.msra.mxu0 %v1014
    %1085 = vmatprep.subr.mxu0 0.0
    %1086 = vmatpush2.msra.mxu0 %v1013
    %1087 = vmatprep.subr.mxu0 0.0
    %1088 = vmatpush2.msra.mxu0 %v1012
    %1089 = vmatprep.subr.mxu0 0.0
    %1090 = vmatpush2.msra.mxu0 %v1011
    %1091 = vmatprep.mubr.f32.mxu0 %v991
    %1092 = vmatmul.mubr.f32.gmra.mxu0 %v989
    %v1093 = vpop.f32.mrf.mxu0
    %v1094 = vadd.f32 0.0, %v1093
    %v1095 = vpop.f32.mrf.mxu0
    %1096 = vmatprep.mubr.f32.mxu0 %v994
    %1097 = vmatmul.mubr.f32.gmra.mxu0 %v993
    %v1098 = vpop.f32.mrf.mxu0
    %v1099 = vadd.f32 0.0, %v1098
    %v1100 = vpop.f32.mrf.mxu0
    %1101 = vdwg.mxu0
    %v1102 = vsel %vm642, %v1094, 0.0
    %v1103 = vrot.slane %v1102, 4
    %v1104 = vadd.f32 %v1102, %v1103
    %v1105 = vrot.slane %v1104, 2
    %v1106 = vadd.f32 %v1104, %v1105
    %v1107 = vrot.slane %v1106, 1
    %v1108 = vadd.f32 %v1106, %v1107
    %v1109 = vmul.f32 %v1108, %v650
    %v1110 = vsel %vm642, %v1099, 0.0
    %v1111 = vrot.slane %v1110, 4
    %v1112 = vadd.f32 %v1110, %v1111
    %v1113 = vrot.slane %v1112, 2
    %v1114 = vadd.f32 %v1112, %v1113
    %v1115 = vrot.slane %v1114, 1
    %v1116 = vadd.f32 %v1114, %v1115
    %v1117 = vmul.f32 %v1116, %v650
    %v1118 = vmul.f32 %v1109, %v1109
    %v1119 = vsub.f32 %v1117, %v1118
    %v1120 = vmax.f32 %v1119, 0.0
    %v1121 = vld [vmem:[#allocation10] sm:$0x1]
    %v1122 = vadd.f32 %v1120, 1e-05
    %v1123 = vrsqrt.pop %v1122
    %v1124 = vmul.f32 %v1121, %v1123
    %v1125 = vld [vmem:[#allocation12] sm:$0x1]
    %v1126 = vmul.f32 %v1124, %v1109
    %v1127 = vsub.f32 %v1125, %v1126
    %v1128 = vld [vmem:[#allocation9] sm:$0xff]
    %v1129 = vld [vmem:[#allocation9 + $0x8] sm:$0xff]
    %v1130 = vld [vmem:[#allocation9 + $0x10] sm:$0xff]
    %v1131 = vld [vmem:[#allocation9 + $0x18] sm:$0xff]
    %v1133 = vsel %vm642, %v1124, 0
    %1135 = vmatprep.subr.mxu0 0.0
    %1136 = vmatpush1.msra.mxu0 0.0
    %1137 = vmatprep.subr.mxu0 0.0
    %1138 = vmatpush1.msra.mxu0 0.0
    %1139 = vmatprep.subr.mxu0 0.0
    %1140 = vmatpush1.msra.mxu0 0.0
    %1141 = vmatprep.subr.mxu0 0.0
    %1142 = vmatpush1.msra.mxu0 0.0
    %1143 = vmatprep.subr.mxu0 0.0
    %1144 = vmatpush1.msra.mxu0 0.0
    %1145 = vmatprep.subr.mxu0 0.0
    %1146 = vmatpush1.msra.mxu0 0.0
    %1147 = vmatprep.subr.mxu0 0.0
    %1148 = vmatpush1.msra.mxu0 0.0
    %1149 = vmatprep.subr.mxu0 0.0
    %1150 = vmatpush1.msra.mxu0 0.0
    %1151 = vmatprep.subr.mxu0 0.0
    %1152 = vmatpush1.msra.mxu0 0.0
    %1153 = vmatprep.subr.mxu0 0.0
    %1154 = vmatpush1.msra.mxu0 0.0
    %1155 = vmatprep.subr.mxu0 0.0
    %1156 = vmatpush1.msra.mxu0 0.0
    %1157 = vmatprep.subr.mxu0 0.0
    %1158 = vmatpush1.msra.mxu0 0.0
    %1159 = vmatprep.subr.mxu0 0.0
    %1160 = vmatpush1.msra.mxu0 0.0
    %1161 = vmatprep.subr.mxu0 0.0
    %1162 = vmatpush1.msra.mxu0 0.0
    %1163 = vmatprep.subr.mxu0 %v1131
    %1164 = vmatpush1.msra.mxu0 %v1130
    %1165 = vmatprep.subr.mxu0 %v1129
    %1166 = vmatpush1.msra.mxu0 %v1128
    %1167 = vmatprep.subr.mxu0 0.0
    %1168 = vmatpush2.msra.mxu0 0.0
    %1169 = vmatprep.subr.mxu0 0.0
    %1170 = vmatpush2.msra.mxu0 0.0
    %1171 = vmatprep.subr.mxu0 0.0
    %1172 = vmatpush2.msra.mxu0 0.0
    %1173 = vmatprep.subr.mxu0 0.0
    %1174 = vmatpush2.msra.mxu0 0.0
    %1175 = vmatprep.subr.mxu0 0.0
    %1176 = vmatpush2.msra.mxu0 0.0
    %1177 = vmatprep.subr.mxu0 0.0
    %1178 = vmatpush2.msra.mxu0 0.0
    %1179 = vmatprep.subr.mxu0 0.0
    %1180 = vmatpush2.msra.mxu0 0.0
    %1181 = vmatprep.subr.mxu0 0.0
    %1182 = vmatpush2.msra.mxu0 0.0
    %1183 = vmatprep.subr.mxu0 0.0
    %1184 = vmatpush2.msra.mxu0 0.0
    %1185 = vmatprep.subr.mxu0 0.0
    %1186 = vmatpush2.msra.mxu0 0.0
    %1187 = vmatprep.subr.mxu0 0.0
    %1188 = vmatpush2.msra.mxu0 0.0
    %1189 = vmatprep.subr.mxu0 0.0
    %1190 = vmatpush2.msra.mxu0 0.0
    %1191 = vmatprep.subr.mxu0 0.0
    %1192 = vmatpush2.msra.mxu0 0.0
    %1193 = vmatprep.subr.mxu0 0.0
    %1194 = vmatpush2.msra.mxu0 0.0
    %1195 = vmatprep.subr.mxu0 0.0
    %1196 = vmatpush2.msra.mxu0 0.0
    %1197 = vmatprep.subr.mxu0 0.0
    %1198 = vmatpush2.msra.mxu0 0.0
    %1199 = vmatprep.mubr.f32.mxu0 0.0
    %1200 = vmatmul.mubr.f32.gmra.mxu0 %v1133
    %v1201 = vpop.f32.mrf.mxu0
    %v1202 = vadd.f32 0.0, %v1201
    %v1203 = vpop.f32.mrf.mxu0
    %v1204 = vadd.f32 0.0, %v1203
    %1205 = vdwg.mxu0
    %v1207 = vsel %vm642, %v1127, 0
    %1209 = vmatprep.subr.mxu0 0.0
    %1210 = vmatpush1.msra.mxu0 0.0
    %1211 = vmatprep.subr.mxu0 0.0
    %1212 = vmatpush1.msra.mxu0 0.0
    %1213 = vmatprep.subr.mxu0 0.0
    %1214 = vmatpush1.msra.mxu0 0.0
    %1215 = vmatprep.subr.mxu0 0.0
    %1216 = vmatpush1.msra.mxu0 0.0
    %1217 = vmatprep.subr.mxu0 0.0
    %1218 = vmatpush1.msra.mxu0 0.0
    %1219 = vmatprep.subr.mxu0 0.0
    %1220 = vmatpush1.msra.mxu0 0.0
    %1221 = vmatprep.subr.mxu0 0.0
    %1222 = vmatpush1.msra.mxu0 0.0
    %1223 = vmatprep.subr.mxu0 0.0
    %1224 = vmatpush1.msra.mxu0 0.0
    %1225 = vmatprep.subr.mxu0 0.0
    %1226 = vmatpush1.msra.mxu0 0.0
    %1227 = vmatprep.subr.mxu0 0.0
    %1228 = vmatpush1.msra.mxu0 0.0
    %1229 = vmatprep.subr.mxu0 0.0
    %1230 = vmatpush1.msra.mxu0 0.0
    %1231 = vmatprep.subr.mxu0 0.0
    %1232 = vmatpush1.msra.mxu0 0.0
    %1233 = vmatprep.subr.mxu0 0.0
    %1234 = vmatpush1.msra.mxu0 0.0
    %1235 = vmatprep.subr.mxu0 0.0
    %1236 = vmatpush1.msra.mxu0 0.0
    %1237 = vmatprep.subr.mxu0 %v1131
    %1238 = vmatpush1.msra.mxu0 %v1130
    %1239 = vmatprep.subr.mxu0 %v1129
    %1240 = vmatpush1.msra.mxu0 %v1128
    %1241 = vmatprep.subr.mxu0 0.0
    %1242 = vmatpush2.msra.mxu0 0.0
    %1243 = vmatprep.subr.mxu0 0.0
    %1244 = vmatpush2.msra.mxu0 0.0
    %1245 = vmatprep.subr.mxu0 0.0
    %1246 = vmatpush2.msra.mxu0 0.0
    %1247 = vmatprep.subr.mxu0 0.0
    %1248 = vmatpush2.msra.mxu0 0.0
    %1249 = vmatprep.subr.mxu0 0.0
    %1250 = vmatpush2.msra.mxu0 0.0
    %1251 = vmatprep.subr.mxu0 0.0
    %1252 = vmatpush2.msra.mxu0 0.0
    %1253 = vmatprep.subr.mxu0 0.0
    %1254 = vmatpush2.msra.mxu0 0.0
    %1255 = vmatprep.subr.mxu0 0.0
    %1256 = vmatpush2.msra.mxu0 0.0
    %1257 = vmatprep.subr.mxu0 0.0
    %1258 = vmatpush2.msra.mxu0 0.0
    %1259 = vmatprep.subr.mxu0 0.0
    %1260 = vmatpush2.msra.mxu0 0.0
    %1261 = vmatprep.subr.mxu0 0.0
    %1262 = vmatpush2.msra.mxu0 0.0
    %1263 = vmatprep.subr.mxu0 0.0
    %1264 = vmatpush2.msra.mxu0 0.0
    %1265 = vmatprep.subr.mxu0 0.0
    %1266 = vmatpush2.msra.mxu0 0.0
    %1267 = vmatprep.subr.mxu0 0.0
    %1268 = vmatpush2.msra.mxu0 0.0
    %1269 = vmatprep.subr.mxu0 0.0
    %1270 = vmatpush2.msra.mxu0 0.0
    %1271 = vmatprep.subr.mxu0 0.0
    %1272 = vmatpush2.msra.mxu0 0.0
    %1273 = vmatprep.mubr.f32.mxu0 0.0
    %1274 = vmatmul.mubr.f32.gmra.mxu0 %v1207
    %v1275 = vpop.f32.mrf.mxu0
    %v1276 = vadd.f32 0.0, %v1275
    %v1277 = vpop.f32.mrf.mxu0
    %v1278 = vadd.f32 0.0, %v1277
    %1279 = vdwg.mxu0
    %v1280 = vlaneseq
    %v1281 = vshrl.u32 %v1280, 7
    %v1282 = vsub.s32 0, %v1281
    %v1283 = vrot.slane %v1202, %v1282
    %v1284 = vlaneseq
    %v1285 = vshrl.u32 %v1284, 7
    %v1286 = vsub.s32 0, %v1285
    %v1287 = vrot.slane %v1204, %v1286
    %v1288 = vmul.f32 %v989, %v1283
    %v1289 = vmul.f32 %v991, %v1287
    %v1290 = vlaneseq
    %v1291 = vshrl.u32 %v1290, 7
    %v1292 = vsub.s32 0, %v1291
    %v1293 = vrot.slane %v1276, %v1292
    %v1294 = vlaneseq
    %v1295 = vshrl.u32 %v1294, 7
    %v1296 = vsub.s32 0, %v1295
    %v1297 = vrot.slane %v1278, %v1296
    %v1298 = vadd.f32 %v1288, %v1293
    %v1299 = vadd.f32 %v1289, %v1297
    %v1300 = vmul.f32 %v1298, 0.2
    %v1301 = vmul.f32 %v1299, 0.2
    %v1302 = vmax.f32 %v1298, %v1300
    %v1303 = vmax.f32 %v1299, %v1301
    %v1304 = vld [vmem:[#allocation13] sm:$0xff]
    %v1305 = vld [vmem:[#allocation13 + $0x8] sm:$0xff]
    %v1306 = vld [vmem:[#allocation13 + $0x10] sm:$0xff]
    %v1307 = vld [vmem:[#allocation13 + $0x18] sm:$0xff]
    %v1308 = vld [vmem:[#allocation13 + $0x20] sm:$0xff]
    %v1309 = vld [vmem:[#allocation13 + $0x28] sm:$0xff]
    %v1310 = vld [vmem:[#allocation13 + $0x30] sm:$0xff]
    %v1311 = vld [vmem:[#allocation13 + $0x38] sm:$0xff]
    %v1312 = vld [vmem:[#allocation13 + $0x40] sm:$0xff]
    %v1313 = vld [vmem:[#allocation13 + $0x48] sm:$0xff]
    %v1314 = vld [vmem:[#allocation13 + $0x50] sm:$0xff]
    %v1315 = vld [vmem:[#allocation13 + $0x58] sm:$0xff]
    %v1316 = vld [vmem:[#allocation13 + $0x60] sm:$0xff]
    %v1317 = vld [vmem:[#allocation13 + $0x68] sm:$0xff]
    %v1318 = vld [vmem:[#allocation13 + $0x70] sm:$0xff]
    %v1319 = vld [vmem:[#allocation13 + $0x78] sm:$0xff]
    %v1320 = vld [vmem:[#allocation13 + $0x80] sm:$0xff]
    %v1321 = vld [vmem:[#allocation13 + $0x88] sm:$0xff]
    %v1322 = vld [vmem:[#allocation13 + $0x90] sm:$0xff]
    %v1323 = vld [vmem:[#allocation13 + $0x98] sm:$0xff]
    %v1324 = vld [vmem:[#allocation13 + $0xa0] sm:$0xff]
    %v1325 = vld [vmem:[#allocation13 + $0xa8] sm:$0xff]
    %v1326 = vld [vmem:[#allocation13 + $0xb0] sm:$0xff]
    %v1327 = vld [vmem:[#allocation13 + $0xb8] sm:$0xff]
    %v1328 = vld [vmem:[#allocation13 + $0xc0] sm:$0xff]
    %v1329 = vld [vmem:[#allocation13 + $0xc8] sm:$0xff]
    %v1330 = vld [vmem:[#allocation13 + $0xd0] sm:$0xff]
    %v1331 = vld [vmem:[#allocation13 + $0xd8] sm:$0xff]
    %v1332 = vld [vmem:[#allocation13 + $0xe0] sm:$0xff]
    %v1333 = vld [vmem:[#allocation13 + $0xe8] sm:$0xff]
    %v1334 = vld [vmem:[#allocation13 + $0xf0] sm:$0xff]
    %v1335 = vld [vmem:[#allocation13 + $0xf8] sm:$0xff]
    %v1336 = vld [vmem:[#allocation15] sm:$0x1]
    %v1338 = vlaneseq
    %v1339 = vshrl.u32 %v1338, 7
    %v1340 = vsub.s32 0, %v1339
    %v1341 = vrot.slane %v1336, %v1340
    %1343 = vmatprep.subr.mxu0 0.0
    %1344 = vmatpush1.msra.mxu0 %v1319
    %1345 = vmatprep.subr.mxu0 0.0
    %1346 = vmatpush1.msra.mxu0 %v1318
    %1347 = vmatprep.subr.mxu0 0.0
    %1348 = vmatpush1.msra.mxu0 %v1317
    %1349 = vmatprep.subr.mxu0 0.0
    %1350 = vmatpush1.msra.mxu0 %v1316
    %1351 = vmatprep.subr.mxu0 0.0
    %1352 = vmatpush1.msra.mxu0 %v1315
    %1353 = vmatprep.subr.mxu0 0.0
    %1354 = vmatpush1.msra.mxu0 %v1314
    %1355 = vmatprep.subr.mxu0 0.0
    %1356 = vmatpush1.msra.mxu0 %v1313
    %1357 = vmatprep.subr.mxu0 0.0
    %1358 = vmatpush1.msra.mxu0 %v1312
    %1359 = vmatprep.subr.mxu0 0.0
    %1360 = vmatpush1.msra.mxu0 %v1311
    %1361 = vmatprep.subr.mxu0 0.0
    %1362 = vmatpush1.msra.mxu0 %v1310
    %1363 = vmatprep.subr.mxu0 0.0
    %1364 = vmatpush1.msra.mxu0 %v1309
    %1365 = vmatprep.subr.mxu0 0.0
    %1366 = vmatpush1.msra.mxu0 %v1308
    %1367 = vmatprep.subr.mxu0 0.0
    %1368 = vmatpush1.msra.mxu0 %v1307
    %1369 = vmatprep.subr.mxu0 0.0
    %1370 = vmatpush1.msra.mxu0 %v1306
    %1371 = vmatprep.subr.mxu0 0.0
    %1372 = vmatpush1.msra.mxu0 %v1305
    %1373 = vmatprep.subr.mxu0 0.0
    %1374 = vmatpush1.msra.mxu0 %v1304
    %1375 = vmatprep.subr.mxu0 0.0
    %1376 = vmatpush2.msra.mxu0 %v1335
    %1377 = vmatprep.subr.mxu0 0.0
    %1378 = vmatpush2.msra.mxu0 %v1334
    %1379 = vmatprep.subr.mxu0 0.0
    %1380 = vmatpush2.msra.mxu0 %v1333
    %1381 = vmatprep.subr.mxu0 0.0
    %1382 = vmatpush2.msra.mxu0 %v1332
    %1383 = vmatprep.subr.mxu0 0.0
    %1384 = vmatpush2.msra.mxu0 %v1331
    %1385 = vmatprep.subr.mxu0 0.0
    %1386 = vmatpush2.msra.mxu0 %v1330
    %1387 = vmatprep.subr.mxu0 0.0
    %1388 = vmatpush2.msra.mxu0 %v1329
    %1389 = vmatprep.subr.mxu0 0.0
    %1390 = vmatpush2.msra.mxu0 %v1328
    %1391 = vmatprep.subr.mxu0 0.0
    %1392 = vmatpush2.msra.mxu0 %v1327
    %1393 = vmatprep.subr.mxu0 0.0
    %1394 = vmatpush2.msra.mxu0 %v1326
    %1395 = vmatprep.subr.mxu0 0.0
    %1396 = vmatpush2.msra.mxu0 %v1325
    %1397 = vmatprep.subr.mxu0 0.0
    %1398 = vmatpush2.msra.mxu0 %v1324
    %1399 = vmatprep.subr.mxu0 0.0
    %1400 = vmatpush2.msra.mxu0 %v1323
    %1401 = vmatprep.subr.mxu0 0.0
    %1402 = vmatpush2.msra.mxu0 %v1322
    %1403 = vmatprep.subr.mxu0 0.0
    %1404 = vmatpush2.msra.mxu0 %v1321
    %1405 = vmatprep.subr.mxu0 0.0
    %1406 = vmatpush2.msra.mxu0 %v1320
    %1407 = vmatprep.mubr.f32.mxu0 %v1303
    %1408 = vmatmul.mubr.f32.gmra.mxu0 %v1302
    %v1409 = vpop.f32.mrf.mxu0
    %v1410 = vadd.f32 %v1341, %v1409
    %v1411 = vpop.f32.mrf.mxu0
    %1412 = vdwg.mxu0
    %v1413 = vmul.f32 %v1410, %v1410
    %v1414 = vld [vmem:[%s31] sm:$0xff]
    %v1415 = vld [vmem:[%s31 + $0x8] sm:$0xff]
    %v1416 = vld [vmem:[%s31 + $0x10] sm:$0xff]
    %v1417 = vld [vmem:[%s31 + $0x18] sm:$0xff]
    %v1418 = vld [vmem:[%s31 + $0x20] sm:$0xff]
    %v1419 = vld [vmem:[%s31 + $0x28] sm:$0xff]
    %v1420 = vld [vmem:[%s31 + $0x30] sm:$0xff]
    %v1421 = vld [vmem:[%s31 + $0x38] sm:$0xff]
    %v1422 = vld [vmem:[%s31 + $0x40] sm:$0xff]
    %v1423 = vld [vmem:[%s31 + $0x48] sm:$0xff]
    %v1424 = vld [vmem:[%s31 + $0x50] sm:$0xff]
    %v1425 = vld [vmem:[%s31 + $0x58] sm:$0xff]
    %v1426 = vld [vmem:[%s31 + $0x60] sm:$0xff]
    %v1427 = vld [vmem:[%s31 + $0x68] sm:$0xff]
    %v1428 = vld [vmem:[%s31 + $0x70] sm:$0xff]
    %v1429 = vld [vmem:[%s31 + $0x78] sm:$0xff]
    %1430 = vmatprep.subr.mxu0 0.0
    %1431 = vmatpush1.msra.mxu0 %v1429
    %1432 = vmatprep.subr.mxu0 0.0
    %1433 = vmatpush1.msra.mxu0 %v1428
    %1434 = vmatprep.subr.mxu0 0.0
    %1435 = vmatpush1.msra.mxu0 %v1427
    %1436 = vmatprep.subr.mxu0 0.0
    %1437 = vmatpush1.msra.mxu0 %v1426
    %1438 = vmatprep.subr.mxu0 0.0
    %1439 = vmatpush1.msra.mxu0 %v1425
    %1440 = vmatprep.subr.mxu0 0.0
    %1441 = vmatpush1.msra.mxu0 %v1424
    %1442 = vmatprep.subr.mxu0 0.0
    %1443 = vmatpush1.msra.mxu0 %v1423
    %1444 = vmatprep.subr.mxu0 0.0
    %1445 = vmatpush1.msra.mxu0 %v1422
    %1446 = vmatprep.subr.mxu0 0.0
    %1447 = vmatpush1.msra.mxu0 %v1421
    %1448 = vmatprep.subr.mxu0 0.0
    %1449 = vmatpush1.msra.mxu0 %v1420
    %1450 = vmatprep.subr.mxu0 0.0
    %1451 = vmatpush1.msra.mxu0 %v1419
    %1452 = vmatprep.subr.mxu0 0.0
    %1453 = vmatpush1.msra.mxu0 %v1418
    %1454 = vmatprep.subr.mxu0 0.0
    %1455 = vmatpush1.msra.mxu0 %v1417
    %1456 = vmatprep.subr.mxu0 0.0
    %1457 = vmatpush1.msra.mxu0 %v1416
    %1458 = vmatprep.subr.mxu0 0.0
    %1459 = vmatpush1.msra.mxu0 %v1415
    %1460 = vmatprep.subr.mxu0 0.0
    %1461 = vmatpush1.msra.mxu0 %v1414
    %1462 = vmatprep.subr.mxu0 0.0
    %1463 = vmatpush2.msra.mxu0 0.0
    %1464 = vmatprep.subr.mxu0 0.0
    %1465 = vmatpush2.msra.mxu0 0.0
    %1466 = vmatprep.subr.mxu0 0.0
    %1467 = vmatpush2.msra.mxu0 0.0
    %1468 = vmatprep.subr.mxu0 0.0
    %1469 = vmatpush2.msra.mxu0 0.0
    %1470 = vmatprep.subr.mxu0 0.0
    %1471 = vmatpush2.msra.mxu0 0.0
    %1472 = vmatprep.subr.mxu0 0.0
    %1473 = vmatpush2.msra.mxu0 0.0
    %1474 = vmatprep.subr.mxu0 0.0
    %1475 = vmatpush2.msra.mxu0 0.0
    %1476 = vmatprep.subr.mxu0 0.0
    %1477 = vmatpush2.msra.mxu0 0.0
    %1478 = vmatprep.subr.mxu0 0.0
    %1479 = vmatpush2.msra.mxu0 0.0
    %1480 = vmatprep.subr.mxu0 0.0
    %1481 = vmatpush2.msra.mxu0 0.0
    %1482 = vmatprep.subr.mxu0 0.0
    %1483 = vmatpush2.msra.mxu0 0.0
    %1484 = vmatprep.subr.mxu0 0.0
    %1485 = vmatpush2.msra.mxu0 0.0
    %1486 = vmatprep.subr.mxu0 0.0
    %1487 = vmatpush2.msra.mxu0 0.0
    %1488 = vmatprep.subr.mxu0 0.0
    %1489 = vmatpush2.msra.mxu0 0.0
    %1490 = vmatprep.subr.mxu0 0.0
    %1491 = vmatpush2.msra.mxu0 0.0
    %1492 = vmatprep.subr.mxu0 0.0
    %1493 = vmatpush2.msra.mxu0 0.0
    %1494 = vmatprep.mubr.f32.mxu0 0.0
    %1495 = vmatmul.mubr.f32.gmra.mxu0 %v1410
    %v1496 = vpop.f32.mrf.mxu0
    %v1497 = vadd.f32 0.0, %v1496
    %v1498 = vpop.f32.mrf.mxu0
    %1499 = vmatprep.mubr.f32.mxu0 0.0
    %1500 = vmatmul.mubr.f32.gmra.mxu0 %v1413
    %v1501 = vpop.f32.mrf.mxu0
    %v1502 = vadd.f32 0.0, %v1501
    %v1503 = vpop.f32.mrf.mxu0
    %1504 = vdwg.mxu0
    %v1505 = vsel %vm642, %v1497, 0.0
    %v1506 = vrot.slane %v1505, 4
    %v1507 = vadd.f32 %v1505, %v1506
    %v1508 = vrot.slane %v1507, 2
    %v1509 = vadd.f32 %v1507, %v1508
    %v1510 = vrot.slane %v1509, 1
    %v1511 = vadd.f32 %v1509, %v1510
    %v1512 = vmul.f32 %v1511, %v650
    %v1513 = vsel %vm642, %v1502, 0.0
    %v1514 = vrot.slane %v1513, 4
    %v1515 = vadd.f32 %v1513, %v1514
    %v1516 = vrot.slane %v1515, 2
    %v1517 = vadd.f32 %v1515, %v1516
    %v1518 = vrot.slane %v1517, 1
    %v1519 = vadd.f32 %v1517, %v1518
    %v1520 = vmul.f32 %v1519, %v650
    %v1521 = vmul.f32 %v1512, %v1512
    %v1522 = vsub.f32 %v1520, %v1521
    %v1523 = vmax.f32 %v1522, 0.0
    %v1524 = vld [vmem:[#allocation18] sm:$0x1]
    %v1525 = vadd.f32 %v1523, 1e-05
    %v1526 = vrsqrt.pop %v1525
    %v1527 = vmul.f32 %v1524, %v1526
    %v1528 = vld [vmem:[#allocation19] sm:$0x1]
    %v1529 = vmul.f32 %v1527, %v1512
    %v1530 = vsub.f32 %v1528, %v1529
    %v1531 = vld [vmem:[#allocation16] sm:$0xff]
    %v1532 = vld [vmem:[#allocation16 + $0x8] sm:$0xff]
    %v1534 = vsel %vm642, %v1527, 0
    %1536 = vmatprep.subr.mxu0 0.0
    %1537 = vmatpush1.msra.mxu0 0.0
    %1538 = vmatprep.subr.mxu0 0.0
    %1539 = vmatpush1.msra.mxu0 0.0
    %1540 = vmatprep.subr.mxu0 0.0
    %1541 = vmatpush1.msra.mxu0 0.0
    %1542 = vmatprep.subr.mxu0 0.0
    %1543 = vmatpush1.msra.mxu0 0.0
    %1544 = vmatprep.subr.mxu0 0.0
    %1545 = vmatpush1.msra.mxu0 0.0
    %1546 = vmatprep.subr.mxu0 0.0
    %1547 = vmatpush1.msra.mxu0 0.0
    %1548 = vmatprep.subr.mxu0 0.0
    %1549 = vmatpush1.msra.mxu0 0.0
    %1550 = vmatprep.subr.mxu0 0.0
    %1551 = vmatpush1.msra.mxu0 0.0
    %1552 = vmatprep.subr.mxu0 0.0
    %1553 = vmatpush1.msra.mxu0 0.0
    %1554 = vmatprep.subr.mxu0 0.0
    %1555 = vmatpush1.msra.mxu0 0.0
    %1556 = vmatprep.subr.mxu0 0.0
    %1557 = vmatpush1.msra.mxu0 0.0
    %1558 = vmatprep.subr.mxu0 0.0
    %1559 = vmatpush1.msra.mxu0 0.0
    %1560 = vmatprep.subr.mxu0 0.0
    %1561 = vmatpush1.msra.mxu0 0.0
    %1562 = vmatprep.subr.mxu0 0.0
    %1563 = vmatpush1.msra.mxu0 0.0
    %1564 = vmatprep.subr.mxu0 0.0
    %1565 = vmatpush1.msra.mxu0 %v1532
    %1566 = vmatprep.subr.mxu0 0.0
    %1567 = vmatpush1.msra.mxu0 %v1531
    %1568 = vmatprep.subr.mxu0 0.0
    %1569 = vmatpush2.msra.mxu0 0.0
    %1570 = vmatprep.subr.mxu0 0.0
    %1571 = vmatpush2.msra.mxu0 0.0
    %1572 = vmatprep.subr.mxu0 0.0
    %1573 = vmatpush2.msra.mxu0 0.0
    %1574 = vmatprep.subr.mxu0 0.0
    %1575 = vmatpush2.msra.mxu0 0.0
    %1576 = vmatprep.subr.mxu0 0.0
    %1577 = vmatpush2.msra.mxu0 0.0
    %1578 = vmatprep.subr.mxu0 0.0
    %1579 = vmatpush2.msra.mxu0 0.0
    %1580 = vmatprep.subr.mxu0 0.0
    %1581 = vmatpush2.msra.mxu0 0.0
    %1582 = vmatprep.subr.mxu0 0.0
    %1583 = vmatpush2.msra.mxu0 0.0
    %1584 = vmatprep.subr.mxu0 0.0
    %1585 = vmatpush2.msra.mxu0 0.0
    %1586 = vmatprep.subr.mxu0 0.0
    %1587 = vmatpush2.msra.mxu0 0.0
    %1588 = vmatprep.subr.mxu0 0.0
    %1589 = vmatpush2.msra.mxu0 0.0
    %1590 = vmatprep.subr.mxu0 0.0
    %1591 = vmatpush2.msra.mxu0 0.0
    %1592 = vmatprep.subr.mxu0 0.0
    %1593 = vmatpush2.msra.mxu0 0.0
    %1594 = vmatprep.subr.mxu0 0.0
    %1595 = vmatpush2.msra.mxu0 0.0
    %1596 = vmatprep.subr.mxu0 0.0
    %1597 = vmatpush2.msra.mxu0 0.0
    %1598 = vmatprep.subr.mxu0 0.0
    %1599 = vmatpush2.msra.mxu0 0.0
    %1600 = vmatprep.mubr.f32.mxu0 0.0
    %1601 = vmatmul.mubr.f32.gmra.mxu0 %v1534
    %v1602 = vpop.f32.mrf.mxu0
    %v1603 = vadd.f32 0.0, %v1602
    %v1604 = vpop.f32.mrf.mxu0
    %1605 = vdwg.mxu0
    %v1607 = vsel %vm642, %v1530, 0
    %1609 = vmatprep.subr.mxu0 0.0
    %1610 = vmatpush1.msra.mxu0 0.0
    %1611 = vmatprep.subr.mxu0 0.0
    %1612 = vmatpush1.msra.mxu0 0.0
    %1613 = vmatprep.subr.mxu0 0.0
    %1614 = vmatpush1.msra.mxu0 0.0
    %1615 = vmatprep.subr.mxu0 0.0
    %1616 = vmatpush1.msra.mxu0 0.0
    %1617 = vmatprep.subr.mxu0 0.0
    %1618 = vmatpush1.msra.mxu0 0.0
    %1619 = vmatprep.subr.mxu0 0.0
    %1620 = vmatpush1.msra.mxu0 0.0
    %1621 = vmatprep.subr.mxu0 0.0
    %1622 = vmatpush1.msra.mxu0 0.0
    %1623 = vmatprep.subr.mxu0 0.0
    %1624 = vmatpush1.msra.mxu0 0.0
    %1625 = vmatprep.subr.mxu0 0.0
    %1626 = vmatpush1.msra.mxu0 0.0
    %1627 = vmatprep.subr.mxu0 0.0
    %1628 = vmatpush1.msra.mxu0 0.0
    %1629 = vmatprep.subr.mxu0 0.0
    %1630 = vmatpush1.msra.mxu0 0.0
    %1631 = vmatprep.subr.mxu0 0.0
    %1632 = vmatpush1.msra.mxu0 0.0
    %1633 = vmatprep.subr.mxu0 0.0
    %1634 = vmatpush1.msra.mxu0 0.0
    %1635 = vmatprep.subr.mxu0 0.0
    %1636 = vmatpush1.msra.mxu0 0.0
    %1637 = vmatprep.subr.mxu0 0.0
    %1638 = vmatpush1.msra.mxu0 %v1532
    %1639 = vmatprep.subr.mxu0 0.0
    %1640 = vmatpush1.msra.mxu0 %v1531
    %1641 = vmatprep.subr.mxu0 0.0
    %1642 = vmatpush2.msra.mxu0 0.0
    %1643 = vmatprep.subr.mxu0 0.0
    %1644 = vmatpush2.msra.mxu0 0.0
    %1645 = vmatprep.subr.mxu0 0.0
    %1646 = vmatpush2.msra.mxu0 0.0
    %1647 = vmatprep.subr.mxu0 0.0
    %1648 = vmatpush2.msra.mxu0 0.0
    %1649 = vmatprep.subr.mxu0 0.0
    %1650 = vmatpush2.msra.mxu0 0.0
    %1651 = vmatprep.subr.mxu0 0.0
    %1652 = vmatpush2.msra.mxu0 0.0
    %1653 = vmatprep.subr.mxu0 0.0
    %1654 = vmatpush2.msra.mxu0 0.0
    %1655 = vmatprep.subr.mxu0 0.0
    %1656 = vmatpush2.msra.mxu0 0.0
    %1657 = vmatprep.subr.mxu0 0.0
    %1658 = vmatpush2.msra.mxu0 0.0
    %1659 = vmatprep.subr.mxu0 0.0
    %1660 = vmatpush2.msra.mxu0 0.0
    %1661 = vmatprep.subr.mxu0 0.0
    %1662 = vmatpush2.msra.mxu0 0.0
    %1663 = vmatprep.subr.mxu0 0.0
    %1664 = vmatpush2.msra.mxu0 0.0
    %1665 = vmatprep.subr.mxu0 0.0
    %1666 = vmatpush2.msra.mxu0 0.0
    %1667 = vmatprep.subr.mxu0 0.0
    %1668 = vmatpush2.msra.mxu0 0.0
    %1669 = vmatprep.subr.mxu0 0.0
    %1670 = vmatpush2.msra.mxu0 0.0
    %1671 = vmatprep.subr.mxu0 0.0
    %1672 = vmatpush2.msra.mxu0 0.0
    %1673 = vmatprep.mubr.f32.mxu0 0.0
    %1674 = vmatmul.mubr.f32.gmra.mxu0 %v1607
    %v1675 = vpop.f32.mrf.mxu0
    %v1676 = vadd.f32 0.0, %v1675
    %v1677 = vpop.f32.mrf.mxu0
    %1678 = vdwg.mxu0
    %v1679 = vlaneseq
    %v1680 = vshrl.u32 %v1679, 7
    %v1681 = vsub.s32 0, %v1680
    %v1682 = vrot.slane %v1603, %v1681
    %v1683 = vmul.f32 %v1410, %v1682
    %v1684 = vlaneseq
    %v1685 = vshrl.u32 %v1684, 7
    %v1686 = vsub.s32 0, %v1685
    %v1687 = vrot.slane %v1676, %v1686
    %v1688 = vadd.f32 %v1683, %v1687
    %v1689 = vmul.f32 %v1688, 0.2
    %v1690 = vmax.f32 %v1688, %v1689
    %v1691 = vld [vmem:[%s39] sm:$0xff]
    %v1692 = vld [vmem:[%s39 + $0x8] sm:$0xff]
    %v1693 = vld [vmem:[%s39 + $0x10] sm:$0xff]
    %v1694 = vld [vmem:[%s39 + $0x18] sm:$0xff]
    %v1695 = vld [vmem:[%s39 + $0x20] sm:$0xff]
    %v1696 = vld [vmem:[%s39 + $0x28] sm:$0xff]
    %v1697 = vld [vmem:[%s39 + $0x30] sm:$0xff]
    %v1698 = vld [vmem:[%s39 + $0x38] sm:$0xff]
    %v1699 = vld [vmem:[%s39 + $0x40] sm:$0xff]
    %v1700 = vld [vmem:[%s39 + $0x48] sm:$0xff]
    %v1701 = vld [vmem:[%s39 + $0x50] sm:$0xff]
    %v1702 = vld [vmem:[%s39 + $0x58] sm:$0xff]
    %v1703 = vld [vmem:[%s39 + $0x60] sm:$0xff]
    %v1704 = vld [vmem:[%s39 + $0x68] sm:$0xff]
    %v1705 = vld [vmem:[%s39 + $0x70] sm:$0xff]
    %v1706 = vld [vmem:[%s39 + $0x78] sm:$0xff]
    %v1707 = vld [vmem:[#allocation21] sm:$0x1]
    %v1709 = vlaneseq
    %v1710 = vshrl.u32 %v1709, 7
    %v1711 = vsub.s32 0, %v1710
    %v1712 = vrot.slane %v1707, %v1711
    %1714 = vmatprep.subr.mxu0 0.0
    %1715 = vmatpush1.msra.mxu0 %v1706
    %1716 = vmatprep.subr.mxu0 0.0
    %1717 = vmatpush1.msra.mxu0 %v1705
    %1718 = vmatprep.subr.mxu0 0.0
    %1719 = vmatpush1.msra.mxu0 %v1704
    %1720 = vmatprep.subr.mxu0 0.0
    %1721 = vmatpush1.msra.mxu0 %v1703
    %1722 = vmatprep.subr.mxu0 0.0
    %1723 = vmatpush1.msra.mxu0 %v1702
    %1724 = vmatprep.subr.mxu0 0.0
    %1725 = vmatpush1.msra.mxu0 %v1701
    %1726 = vmatprep.subr.mxu0 0.0
    %1727 = vmatpush1.msra.mxu0 %v1700
    %1728 = vmatprep.subr.mxu0 0.0
    %1729 = vmatpush1.msra.mxu0 %v1699
    %1730 = vmatprep.subr.mxu0 0.0
    %1731 = vmatpush1.msra.mxu0 %v1698
    %1732 = vmatprep.subr.mxu0 0.0
    %1733 = vmatpush1.msra.mxu0 %v1697
    %1734 = vmatprep.subr.mxu0 0.0
    %1735 = vmatpush1.msra.mxu0 %v1696
    %1736 = vmatprep.subr.mxu0 0.0
    %1737 = vmatpush1.msra.mxu0 %v1695
    %1738 = vmatprep.subr.mxu0 0.0
    %1739 = vmatpush1.msra.mxu0 %v1694
    %1740 = vmatprep.subr.mxu0 0.0
    %1741 = vmatpush1.msra.mxu0 %v1693
    %1742 = vmatprep.subr.mxu0 0.0
    %1743 = vmatpush1.msra.mxu0 %v1692
    %1744 = vmatprep.subr.mxu0 0.0
    %1745 = vmatpush1.msra.mxu0 %v1691
    %1746 = vmatprep.subr.mxu0 0.0
    %1747 = vmatpush2.msra.mxu0 0.0
    %1748 = vmatprep.subr.mxu0 0.0
    %1749 = vmatpush2.msra.mxu0 0.0
    %1750 = vmatprep.subr.mxu0 0.0
    %1751 = vmatpush2.msra.mxu0 0.0
    %1752 = vmatprep.subr.mxu0 0.0
    %1753 = vmatpush2.msra.mxu0 0.0
    %1754 = vmatprep.subr.mxu0 0.0
    %1755 = vmatpush2.msra.mxu0 0.0
    %1756 = vmatprep.subr.mxu0 0.0
    %1757 = vmatpush2.msra.mxu0 0.0
    %1758 = vmatprep.subr.mxu0 0.0
    %1759 = vmatpush2.msra.mxu0 0.0
    %1760 = vmatprep.subr.mxu0 0.0
    %1761 = vmatpush2.msra.mxu0 0.0
    %1762 = vmatprep.subr.mxu0 0.0
    %1763 = vmatpush2.msra.mxu0 0.0
    %1764 = vmatprep.subr.mxu0 0.0
    %1765 = vmatpush2.msra.mxu0 0.0
    %1766 = vmatprep.subr.mxu0 0.0
    %1767 = vmatpush2.msra.mxu0 0.0
    %1768 = vmatprep.subr.mxu0 0.0
    %1769 = vmatpush2.msra.mxu0 0.0
    %1770 = vmatprep.subr.mxu0 0.0
    %1771 = vmatpush2.msra.mxu0 0.0
    %1772 = vmatprep.subr.mxu0 0.0
    %1773 = vmatpush2.msra.mxu0 0.0
    %1774 = vmatprep.subr.mxu0 0.0
    %1775 = vmatpush2.msra.mxu0 0.0
    %1776 = vmatprep.subr.mxu0 0.0
    %1777 = vmatpush2.msra.mxu0 0.0
    %1778 = vmatprep.mubr.f32.mxu0 0.0
    %1779 = vmatmul.mubr.f32.gmra.mxu0 %v1690
    %v1780 = vpop.f32.mrf.mxu0
    %v1781 = vadd.f32 %v1712, %v1780
    %v1782 = vpop.f32.mrf.mxu0
    %1783 = vdwg.mxu0
    %v1784 = vmul.f32 %v1781, %v1781
    %v1785 = vld [vmem:[%s43] sm:$0xff]
    %v1786 = vld [vmem:[%s43 + $0x8] sm:$0xff]
    %v1787 = vld [vmem:[%s43 + $0x10] sm:$0xff]
    %v1788 = vld [vmem:[%s43 + $0x18] sm:$0xff]
    %v1789 = vld [vmem:[%s43 + $0x20] sm:$0xff]
    %v1790 = vld [vmem:[%s43 + $0x28] sm:$0xff]
    %v1791 = vld [vmem:[%s43 + $0x30] sm:$0xff]
    %v1792 = vld [vmem:[%s43 + $0x38] sm:$0xff]
    %vm1793 = vcmask 523264
    %v1795 = vsel %vm1793, %v1781, 0
    %v1798 = vsel %vm1793, %v1784, 0
    %1800 = vmatprep.subr.mxu0 0.0
    %1801 = vmatpush1.msra.mxu0 0.0
    %1802 = vmatprep.subr.mxu0 0.0
    %1803 = vmatpush1.msra.mxu0 0.0
    %1804 = vmatprep.subr.mxu0 0.0
    %1805 = vmatpush1.msra.mxu0 0.0
    %1806 = vmatprep.subr.mxu0 0.0
    %1807 = vmatpush1.msra.mxu0 0.0
    %1808 = vmatprep.subr.mxu0 0.0
    %1809 = vmatpush1.msra.mxu0 0.0
    %1810 = vmatprep.subr.mxu0 0.0
    %1811 = vmatpush1.msra.mxu0 0.0
    %1812 = vmatprep.subr.mxu0 0.0
    %1813 = vmatpush1.msra.mxu0 0.0
    %1814 = vmatprep.subr.mxu0 0.0
    %1815 = vmatpush1.msra.mxu0 0.0
    %1816 = vmatprep.subr.mxu0 0.0
    %1817 = vmatpush1.msra.mxu0 %v1792
    %1818 = vmatprep.subr.mxu0 0.0
    %1819 = vmatpush1.msra.mxu0 %v1791
    %1820 = vmatprep.subr.mxu0 0.0
    %1821 = vmatpush1.msra.mxu0 %v1790
    %1822 = vmatprep.subr.mxu0 0.0
    %1823 = vmatpush1.msra.mxu0 %v1789
    %1824 = vmatprep.subr.mxu0 0.0
    %1825 = vmatpush1.msra.mxu0 %v1788
    %1826 = vmatprep.subr.mxu0 0.0
    %1827 = vmatpush1.msra.mxu0 %v1787
    %1828 = vmatprep.subr.mxu0 0.0
    %1829 = vmatpush1.msra.mxu0 %v1786
    %1830 = vmatprep.subr.mxu0 0.0
    %1831 = vmatpush1.msra.mxu0 %v1785
    %1832 = vmatprep.subr.mxu0 0.0
    %1833 = vmatpush2.msra.mxu0 0.0
    %1834 = vmatprep.subr.mxu0 0.0
    %1835 = vmatpush2.msra.mxu0 0.0
    %1836 = vmatprep.subr.mxu0 0.0
    %1837 = vmatpush2.msra.mxu0 0.0
    %1838 = vmatprep.subr.mxu0 0.0
    %1839 = vmatpush2.msra.mxu0 0.0
    %1840 = vmatprep.subr.mxu0 0.0
    %1841 = vmatpush2.msra.mxu0 0.0
    %1842 = vmatprep.subr.mxu0 0.0
    %1843 = vmatpush2.msra.mxu0 0.0
    %1844 = vmatprep.subr.mxu0 0.0
    %1845 = vmatpush2.msra.mxu0 0.0
    %1846 = vmatprep.subr.mxu0 0.0
    %1847 = vmatpush2.msra.mxu0 0.0
    %1848 = vmatprep.subr.mxu0 0.0
    %1849 = vmatpush2.msra.mxu0 0.0
    %1850 = vmatprep.subr.mxu0 0.0
    %1851 = vmatpush2.msra.mxu0 0.0
    %1852 = vmatprep.subr.mxu0 0.0
    %1853 = vmatpush2.msra.mxu0 0.0
    %1854 = vmatprep.subr.mxu0 0.0
    %1855 = vmatpush2.msra.mxu0 0.0
    %1856 = vmatprep.subr.mxu0 0.0
    %1857 = vmatpush2.msra.mxu0 0.0
    %1858 = vmatprep.subr.mxu0 0.0
    %1859 = vmatpush2.msra.mxu0 0.0
    %1860 = vmatprep.subr.mxu0 0.0
    %1861 = vmatpush2.msra.mxu0 0.0
    %1862 = vmatprep.subr.mxu0 0.0
    %1863 = vmatpush2.msra.mxu0 0.0
    %1864 = vmatprep.mubr.f32.mxu0 0.0
    %1865 = vmatmul.mubr.f32.gmra.mxu0 %v1795
    %v1866 = vpop.f32.mrf.mxu0
    %v1867 = vadd.f32 0.0, %v1866
    %v1868 = vpop.f32.mrf.mxu0
    %1869 = vmatprep.mubr.f32.mxu0 0.0
    %1870 = vmatmul.mubr.f32.gmra.mxu0 %v1798
    %v1871 = vpop.f32.mrf.mxu0
    %v1872 = vadd.f32 0.0, %v1871
    %v1873 = vpop.f32.mrf.mxu0
    %1874 = vdwg.mxu0
    %vm1875 = vcmask 64512
    %v1876 = vsel %vm1875, %v1867, 0.0
    %v1877 = vrot.slane %v1876, 4
    %v1878 = vadd.f32 %v1876, %v1877
    %v1879 = vrot.slane %v1878, 2
    %v1880 = vadd.f32 %v1878, %v1879
    %v1881 = vrot.slane %v1880, 1
    %v1882 = vadd.f32 %v1880, %v1881
    %v1883 = vmul.f32 %v1882, %v650
    %v1884 = vsel %vm1875, %v1872, 0.0
    %v1885 = vrot.slane %v1884, 4
    %v1886 = vadd.f32 %v1884, %v1885
    %v1887 = vrot.slane %v1886, 2
    %v1888 = vadd.f32 %v1886, %v1887
    %v1889 = vrot.slane %v1888, 1
    %v1890 = vadd.f32 %v1888, %v1889
    %v1891 = vmul.f32 %v1890, %v650
    %v1892 = vmul.f32 %v1883, %v1883
    %v1893 = vsub.f32 %v1891, %v1892
    %v1894 = vmax.f32 %v1893, 0.0
    %v1895 = vld [vmem:[#allocation24] sm:$0x1]
    %v1896 = vadd.f32 %v1894, 1e-05
    %v1897 = vrsqrt.pop %v1896
    %v1898 = vmul.f32 %v1895, %v1897
    %v1899 = vld [vmem:[#allocation25] sm:$0x1]
    %v1900 = vmul.f32 %v1898, %v1883
    %v1901 = vsub.f32 %v1899, %v1900
    %v1902 = vld [vmem:[#allocation22] sm:$0xff]
    %v1904 = vsel %vm1875, %v1898, 0
    %1906 = vmatprep.subr.mxu0 0.0
    %1907 = vmatpush1.msra.mxu0 0.0
    %1908 = vmatprep.subr.mxu0 0.0
    %1909 = vmatpush1.msra.mxu0 0.0
    %1910 = vmatprep.subr.mxu0 0.0
    %1911 = vmatpush1.msra.mxu0 0.0
    %1912 = vmatprep.subr.mxu0 0.0
    %1913 = vmatpush1.msra.mxu0 0.0
    %1914 = vmatprep.subr.mxu0 0.0
    %1915 = vmatpush1.msra.mxu0 0.0
    %1916 = vmatprep.subr.mxu0 0.0
    %1917 = vmatpush1.msra.mxu0 0.0
    %1918 = vmatprep.subr.mxu0 0.0
    %1919 = vmatpush1.msra.mxu0 0.0
    %1920 = vmatprep.subr.mxu0 0.0
    %1921 = vmatpush1.msra.mxu0 0.0
    %1922 = vmatprep.subr.mxu0 0.0
    %1923 = vmatpush1.msra.mxu0 0.0
    %1924 = vmatprep.subr.mxu0 0.0
    %1925 = vmatpush1.msra.mxu0 0.0
    %1926 = vmatprep.subr.mxu0 0.0
    %1927 = vmatpush1.msra.mxu0 0.0
    %1928 = vmatprep.subr.mxu0 0.0
    %1929 = vmatpush1.msra.mxu0 0.0
    %1930 = vmatprep.subr.mxu0 0.0
    %1931 = vmatpush1.msra.mxu0 0.0
    %1932 = vmatprep.subr.mxu0 0.0
    %1933 = vmatpush1.msra.mxu0 0.0
    %1934 = vmatprep.subr.mxu0 0.0
    %1935 = vmatpush1.msra.mxu0 0.0
    %1936 = vmatprep.subr.mxu0 0.0
    %1937 = vmatpush1.msra.mxu0 %v1902
    %1938 = vmatprep.subr.mxu0 0.0
    %1939 = vmatpush2.msra.mxu0 0.0
    %1940 = vmatprep.subr.mxu0 0.0
    %1941 = vmatpush2.msra.mxu0 0.0
    %1942 = vmatprep.subr.mxu0 0.0
    %1943 = vmatpush2.msra.mxu0 0.0
    %1944 = vmatprep.subr.mxu0 0.0
    %1945 = vmatpush2.msra.mxu0 0.0
    %1946 = vmatprep.subr.mxu0 0.0
    %1947 = vmatpush2.msra.mxu0 0.0
    %1948 = vmatprep.subr.mxu0 0.0
    %1949 = vmatpush2.msra.mxu0 0.0
    %1950 = vmatprep.subr.mxu0 0.0
    %1951 = vmatpush2.msra.mxu0 0.0
    %1952 = vmatprep.subr.mxu0 0.0
    %1953 = vmatpush2.msra.mxu0 0.0
    %1954 = vmatprep.subr.mxu0 0.0
    %1955 = vmatpush2.msra.mxu0 0.0
    %1956 = vmatprep.subr.mxu0 0.0
    %1957 = vmatpush2.msra.mxu0 0.0
    %1958 = vmatprep.subr.mxu0 0.0
    %1959 = vmatpush2.msra.mxu0 0.0
    %1960 = vmatprep.subr.mxu0 0.0
    %1961 = vmatpush2.msra.mxu0 0.0
    %1962 = vmatprep.subr.mxu0 0.0
    %1963 = vmatpush2.msra.mxu0 0.0
    %1964 = vmatprep.subr.mxu0 0.0
    %1965 = vmatpush2.msra.mxu0 0.0
    %1966 = vmatprep.subr.mxu0 0.0
    %1967 = vmatpush2.msra.mxu0 0.0
    %1968 = vmatprep.subr.mxu0 0.0
    %1969 = vmatpush2.msra.mxu0 0.0
    %1970 = vmatprep.mubr.f32.mxu0 0.0
    %1971 = vmatmul.mubr.f32.gmra.mxu0 %v1904
    %v1972 = vpop.f32.mrf.mxu0
    %v1973 = vadd.f32 0.0, %v1972
    %v1974 = vpop.f32.mrf.mxu0
    %1975 = vdwg.mxu0
    %v1977 = vsel %vm1875, %v1901, 0
    %1979 = vmatprep.subr.mxu0 0.0
    %1980 = vmatpush1.msra.mxu0 0.0
    %1981 = vmatprep.subr.mxu0 0.0
    %1982 = vmatpush1.msra.mxu0 0.0
    %1983 = vmatprep.subr.mxu0 0.0
    %1984 = vmatpush1.msra.mxu0 0.0
    %1985 = vmatprep.subr.mxu0 0.0
    %1986 = vmatpush1.msra.mxu0 0.0
    %1987 = vmatprep.subr.mxu0 0.0
    %1988 = vmatpush1.msra.mxu0 0.0
    %1989 = vmatprep.subr.mxu0 0.0
    %1990 = vmatpush1.msra.mxu0 0.0
    %1991 = vmatprep.subr.mxu0 0.0
    %1992 = vmatpush1.msra.mxu0 0.0
    %1993 = vmatprep.subr.mxu0 0.0
    %1994 = vmatpush1.msra.mxu0 0.0
    %1995 = vmatprep.subr.mxu0 0.0
    %1996 = vmatpush1.msra.mxu0 0.0
    %1997 = vmatprep.subr.mxu0 0.0
    %1998 = vmatpush1.msra.mxu0 0.0
    %1999 = vmatprep.subr.mxu0 0.0
    %2000 = vmatpush1.msra.mxu0 0.0
    %2001 = vmatprep.subr.mxu0 0.0
    %2002 = vmatpush1.msra.mxu0 0.0
    %2003 = vmatprep.subr.mxu0 0.0
    %2004 = vmatpush1.msra.mxu0 0.0
    %2005 = vmatprep.subr.mxu0 0.0
    %2006 = vmatpush1.msra.mxu0 0.0
    %2007 = vmatprep.subr.mxu0 0.0
    %2008 = vmatpush1.msra.mxu0 0.0
    %2009 = vmatprep.subr.mxu0 0.0
    %2010 = vmatpush1.msra.mxu0 %v1902
    %2011 = vmatprep.subr.mxu0 0.0
    %2012 = vmatpush2.msra.mxu0 0.0
    %2013 = vmatprep.subr.mxu0 0.0
    %2014 = vmatpush2.msra.mxu0 0.0
    %2015 = vmatprep.subr.mxu0 0.0
    %2016 = vmatpush2.msra.mxu0 0.0
    %2017 = vmatprep.subr.mxu0 0.0
    %2018 = vmatpush2.msra.mxu0 0.0
    %2019 = vmatprep.subr.mxu0 0.0
    %2020 = vmatpush2.msra.mxu0 0.0
    %2021 = vmatprep.subr.mxu0 0.0
    %2022 = vmatpush2.msra.mxu0 0.0
    %2023 = vmatprep.subr.mxu0 0.0
    %2024 = vmatpush2.msra.mxu0 0.0
    %2025 = vmatprep.subr.mxu0 0.0
    %2026 = vmatpush2.msra.mxu0 0.0
    %2027 = vmatprep.subr.mxu0 0.0
    %2028 = vmatpush2.msra.mxu0 0.0
    %2029 = vmatprep.subr.mxu0 0.0
    %2030 = vmatpush2.msra.mxu0 0.0
    %2031 = vmatprep.subr.mxu0 0.0
    %2032 = vmatpush2.msra.mxu0 0.0
    %2033 = vmatprep.subr.mxu0 0.0
    %2034 = vmatpush2.msra.mxu0 0.0
    %2035 = vmatprep.subr.mxu0 0.0
    %2036 = vmatpush2.msra.mxu0 0.0
    %2037 = vmatprep.subr.mxu0 0.0
    %2038 = vmatpush2.msra.mxu0 0.0
    %2039 = vmatprep.subr.mxu0 0.0
    %2040 = vmatpush2.msra.mxu0 0.0
    %2041 = vmatprep.subr.mxu0 0.0
    %2042 = vmatpush2.msra.mxu0 0.0
    %2043 = vmatprep.mubr.f32.mxu0 0.0
    %2044 = vmatmul.mubr.f32.gmra.mxu0 %v1977
    %v2045 = vpop.f32.mrf.mxu0
    %v2046 = vadd.f32 0.0, %v2045
    %v2047 = vpop.f32.mrf.mxu0
    %2048 = vdwg.mxu0
    %v2049 = vlaneseq
    %v2050 = vshrl.u32 %v2049, 7
    %v2051 = vsub.s32 0, %v2050
    %v2052 = vrot.slane %v1973, %v2051
    %v2053 = vmul.f32 %v1781, %v2052
    %v2054 = vlaneseq
    %v2055 = vshrl.u32 %v2054, 7
    %v2056 = vsub.s32 0, %v2055
    %v2057 = vrot.slane %v2046, %v2056
    %v2058 = vadd.f32 %v2053, %v2057
    %v2059 = vmul.f32 %v2058, 0.2
    %v2060 = vmax.f32 %v2058, %v2059
    %v2061 = vld [vmem:[%s51] sm:$0xff]
    %v2062 = vld [vmem:[%s51 + $0x8] sm:$0xff]
    %v2063 = vld [vmem:[%s51 + $0x10] sm:$0xff]
    %v2064 = vld [vmem:[%s51 + $0x18] sm:$0xff]
    %v2066 = vsel %vm1875, %v2061, 0
    %v2069 = vsel %vm1875, %v2062, 0
    %v2072 = vsel %vm1875, %v2063, 0
    %v2075 = vsel %vm1875, %v2064, 0
    %2077 = vmatprep.subr.mxu0 0.0
    %2078 = vmatpush1.msra.mxu0 0.0
    %2079 = vmatprep.subr.mxu0 0.0
    %2080 = vmatpush1.msra.mxu0 0.0
    %2081 = vmatprep.subr.mxu0 0.0
    %2082 = vmatpush1.msra.mxu0 0.0
    %2083 = vmatprep.subr.mxu0 0.0
    %2084 = vmatpush1.msra.mxu0 0.0
    %2085 = vmatprep.subr.mxu0 0.0
    %2086 = vmatpush1.msra.mxu0 0.0
    %2087 = vmatprep.subr.mxu0 0.0
    %2088 = vmatpush1.msra.mxu0 0.0
    %2089 = vmatprep.subr.mxu0 0.0
    %2090 = vmatpush1.msra.mxu0 0.0
    %2091 = vmatprep.subr.mxu0 0.0
    %2092 = vmatpush1.msra.mxu0 0.0
    %2093 = vmatprep.subr.mxu0 0.0
    %2094 = vmatpush1.msra.mxu0 0.0
    %2095 = vmatprep.subr.mxu0 0.0
    %2096 = vmatpush1.msra.mxu0 0.0
    %2097 = vmatprep.subr.mxu0 0.0
    %2098 = vmatpush1.msra.mxu0 0.0
    %2099 = vmatprep.subr.mxu0 0.0
    %2100 = vmatpush1.msra.mxu0 0.0
    %2101 = vmatprep.subr.mxu0 0.0
    %2102 = vmatpush1.msra.mxu0 0.0
    %2103 = vmatprep.subr.mxu0 0.0
    %2104 = vmatpush1.msra.mxu0 0.0
    %2105 = vmatprep.subr.mxu0 0.0
    %2106 = vmatpush1.msra.mxu0 0.0
    %2107 = vmatprep.subr.mxu0 0.0
    %2108 = vmatpush1.msra.mxu0 %v2060
    %2109 = vmatprep.subr.mxu0 0.0
    %2110 = vmatpush2.msra.mxu0 0.0
    %2111 = vmatprep.subr.mxu0 0.0
    %2112 = vmatpush2.msra.mxu0 0.0
    %2113 = vmatprep.subr.mxu0 0.0
    %2114 = vmatpush2.msra.mxu0 0.0
    %2115 = vmatprep.subr.mxu0 0.0
    %2116 = vmatpush2.msra.mxu0 0.0
    %2117 = vmatprep.subr.mxu0 0.0
    %2118 = vmatpush2.msra.mxu0 0.0
    %2119 = vmatprep.subr.mxu0 0.0
    %2120 = vmatpush2.msra.mxu0 0.0
    %2121 = vmatprep.subr.mxu0 0.0
    %2122 = vmatpush2.msra.mxu0 0.0
    %2123 = vmatprep.subr.mxu0 0.0
    %2124 = vmatpush2.msra.mxu0 0.0
    %2125 = vmatprep.subr.mxu0 0.0
    %2126 = vmatpush2.msra.mxu0 0.0
    %2127 = vmatprep.subr.mxu0 0.0
    %2128 = vmatpush2.msra.mxu0 0.0
    %2129 = vmatprep.subr.mxu0 0.0
    %2130 = vmatpush2.msra.mxu0 0.0
    %2131 = vmatprep.subr.mxu0 0.0
    %2132 = vmatpush2.msra.mxu0 0.0
    %2133 = vmatprep.subr.mxu0 0.0
    %2134 = vmatpush2.msra.mxu0 0.0
    %2135 = vmatprep.subr.mxu0 0.0
    %2136 = vmatpush2.msra.mxu0 0.0
    %2137 = vmatprep.subr.mxu0 0.0
    %2138 = vmatpush2.msra.mxu0 0.0
    %2139 = vmatprep.subr.mxu0 0.0
    %2140 = vmatpush2.msra.mxu0 0.0
    %2141 = vmatprep.mubr.f32.mxu0 0.0
    %2142 = vmatmul.mubr.f32.gmra.mxu0 %v2066
    %v2143 = vpop.f32.mrf.mxu0
    %v2144 = vadd.f32 0.0, %v2143
    %v2145 = vpop.f32.mrf.mxu0
    %2146 = vmatprep.mubr.f32.mxu0 0.0
    %2147 = vmatmul.mubr.f32.gmra.mxu0 %v2069
    %v2148 = vpop.f32.mrf.mxu0
    %v2149 = vadd.f32 0.0, %v2148
    %v2150 = vpop.f32.mrf.mxu0
    %2151 = vmatprep.mubr.f32.mxu0 0.0
    %2152 = vmatmul.mubr.f32.gmra.mxu0 %v2072
    %v2153 = vpop.f32.mrf.mxu0
    %v2154 = vadd.f32 0.0, %v2153
    %v2155 = vpop.f32.mrf.mxu0
    %2156 = vmatprep.mubr.f32.mxu0 0.0
    %2157 = vmatmul.mubr.f32.gmra.mxu0 %v2075
    %v2158 = vpop.f32.mrf.mxu0
    %v2159 = vadd.f32 0.0, %v2158
    %v2160 = vpop.f32.mrf.mxu0
    %2161 = vdwg.mxu0
    %v2162 = vld [vmem:[%s55] sm:$0xff]
    %v2163 = vld [vmem:[%s55 + $0x8] sm:$0xff]
    %v2164 = vld [vmem:[%s55 + $0x10] sm:$0xff]
    %v2165 = vld [vmem:[%s55 + $0x18] sm:$0xff]
    %v2166 = vld [vmem:[%s55 + $0x20] sm:$0xff]
    %v2167 = vld [vmem:[%s55 + $0x28] sm:$0xff]
    %v2168 = vld [vmem:[%s55 + $0x30] sm:$0xff]
    %v2169 = vld [vmem:[%s55 + $0x38] sm:$0xff]
    %v2170 = vld [vmem:[%s55 + $0x40] sm:$0xff]
    %v2171 = vld [vmem:[%s55 + $0x48] sm:$0xff]
    %v2172 = vld [vmem:[%s55 + $0x50] sm:$0xff]
    %v2173 = vld [vmem:[%s55 + $0x58] sm:$0xff]
    %v2174 = vld [vmem:[%s55 + $0x60] sm:$0xff]
    %v2175 = vld [vmem:[%s55 + $0x68] sm:$0xff]
    %v2176 = vld [vmem:[%s55 + $0x70] sm:$0xff]
    %v2177 = vld [vmem:[%s55 + $0x78] sm:$0xff]
    %v2178 = vld [vmem:[%s55 + $0x80] sm:$0xff]
    %v2179 = vld [vmem:[%s55 + $0x88] sm:$0xff]
    %v2180 = vld [vmem:[%s55 + $0x90] sm:$0xff]
    %v2181 = vld [vmem:[%s55 + $0x98] sm:$0xff]
    %v2182 = vld [vmem:[%s55 + $0xa0] sm:$0xff]
    %v2183 = vld [vmem:[%s55 + $0xa8] sm:$0xff]
    %v2184 = vld [vmem:[%s55 + $0xb0] sm:$0xff]
    %v2185 = vld [vmem:[%s55 + $0xb8] sm:$0xff]
    %v2186 = vld [vmem:[%s59] sm:$0x7]
    %v2188 = vlaneseq
    %v2189 = vshrl.u32 %v2188, 7
    %v2190 = vsub.s32 0, %v2189
    %v2191 = vrot.slane %v2186, %v2190
    %v2192 = vlaneseq
    %v2193 = vshrl.u32 %v2192, 7
    %v2194 = vsub.s32 1, %v2193
    %v2195 = vrot.slane %v2186, %v2194
    %v2196 = vlaneseq
    %v2197 = vshrl.u32 %v2196, 7
    %v2198 = vsub.s32 2, %v2197
    %v2199 = vrot.slane %v2186, %v2198
    %v2204 = vsel %vm1793, %v2144, 0
    %v2207 = vsel %vm1793, %v2149, 0
    %v2210 = vsel %vm1793, %v2154, 0
    %v2213 = vsel %vm1793, %v2159, 0
    %2215 = vmatprep.subr.mxu0 0.0
    %2216 = vmatpush1.msra.mxu0 0.0
    %2217 = vmatprep.subr.mxu0 0.0
    %2218 = vmatpush1.msra.mxu0 0.0
    %2219 = vmatprep.subr.mxu0 0.0
    %2220 = vmatpush1.msra.mxu0 0.0
    %2221 = vmatprep.subr.mxu0 0.0
    %2222 = vmatpush1.msra.mxu0 0.0
    %2223 = vmatprep.subr.mxu0 0.0
    %2224 = vmatpush1.msra.mxu0 0.0
    %2225 = vmatprep.subr.mxu0 0.0
    %2226 = vmatpush1.msra.mxu0 0.0
    %2227 = vmatprep.subr.mxu0 0.0
    %2228 = vmatpush1.msra.mxu0 0.0
    %2229 = vmatprep.subr.mxu0 0.0
    %2230 = vmatpush1.msra.mxu0 0.0
    %2231 = vmatprep.subr.mxu0 %v2184
    %2232 = vmatpush1.msra.mxu0 %v2183
    %2233 = vmatprep.subr.mxu0 %v2181
    %2234 = vmatpush1.msra.mxu0 %v2180
    %2235 = vmatprep.subr.mxu0 %v2178
    %2236 = vmatpush1.msra.mxu0 %v2177
    %2237 = vmatprep.subr.mxu0 %v2175
    %2238 = vmatpush1.msra.mxu0 %v2174
    %2239 = vmatprep.subr.mxu0 %v2172
    %2240 = vmatpush1.msra.mxu0 %v2171
    %2241 = vmatprep.subr.mxu0 %v2169
    %2242 = vmatpush1.msra.mxu0 %v2168
    %2243 = vmatprep.subr.mxu0 %v2166
    %2244 = vmatpush1.msra.mxu0 %v2165
    %2245 = vmatprep.subr.mxu0 %v2163
    %2246 = vmatpush1.msra.mxu0 %v2162
    %2247 = vmatprep.subr.mxu0 0.0
    %2248 = vmatpush2.msra.mxu0 0.0
    %2249 = vmatprep.subr.mxu0 0.0
    %2250 = vmatpush2.msra.mxu0 0.0
    %2251 = vmatprep.subr.mxu0 0.0
    %2252 = vmatpush2.msra.mxu0 0.0
    %2253 = vmatprep.subr.mxu0 0.0
    %2254 = vmatpush2.msra.mxu0 0.0
    %2255 = vmatprep.subr.mxu0 0.0
    %2256 = vmatpush2.msra.mxu0 0.0
    %2257 = vmatprep.subr.mxu0 0.0
    %2258 = vmatpush2.msra.mxu0 0.0
    %2259 = vmatprep.subr.mxu0 0.0
    %2260 = vmatpush2.msra.mxu0 0.0
    %2261 = vmatprep.subr.mxu0 0.0
    %2262 = vmatpush2.msra.mxu0 0.0
    %2263 = vmatprep.subr.mxu0 0.0
    %2264 = vmatpush2.msra.mxu0 0.0
    %2265 = vmatprep.subr.mxu0 0.0
    %2266 = vmatpush2.msra.mxu0 0.0
    %2267 = vmatprep.subr.mxu0 0.0
    %2268 = vmatpush2.msra.mxu0 0.0
    %2269 = vmatprep.subr.mxu0 0.0
    %2270 = vmatpush2.msra.mxu0 0.0
    %2271 = vmatprep.subr.mxu0 0.0
    %2272 = vmatpush2.msra.mxu0 0.0
    %2273 = vmatprep.subr.mxu0 0.0
    %2274 = vmatpush2.msra.mxu0 0.0
    %2275 = vmatprep.subr.mxu0 0.0
    %2276 = vmatpush2.msra.mxu0 0.0
    %2277 = vmatprep.subr.mxu0 0.0
    %2278 = vmatpush2.msra.mxu0 0.0
    %2279 = vmatprep.mubr.f32.mxu0 0.0
    %2280 = vmatmul.mubr.f32.gmra.mxu0 %v2204
    %v2281 = vpop.f32.mrf.mxu0
    %v2282 = vadd.f32 %v2191, %v2281
    %v2283 = vpop.f32.mrf.mxu0
    %v2284 = vadd.f32 %v2195, %v2283
    %2285 = vmatprep.mubr.f32.mxu0 0.0
    %2286 = vmatmul.mubr.f32.gmra.mxu0 %v2207
    %v2287 = vpop.f32.mrf.mxu0
    %v2288 = vadd.f32 %v2191, %v2287
    %v2289 = vpop.f32.mrf.mxu0
    %v2290 = vadd.f32 %v2195, %v2289
    %2291 = vmatprep.mubr.f32.mxu0 0.0
    %2292 = vmatmul.mubr.f32.gmra.mxu0 %v2210
    %v2293 = vpop.f32.mrf.mxu0
    %v2294 = vadd.f32 %v2191, %v2293
    %v2295 = vpop.f32.mrf.mxu0
    %v2296 = vadd.f32 %v2195, %v2295
    %2297 = vmatprep.mubr.f32.mxu0 0.0
    %2298 = vmatmul.mubr.f32.gmra.mxu0 %v2213
    %v2299 = vpop.f32.mrf.mxu0
    %v2300 = vadd.f32 %v2191, %v2299
    %v2301 = vpop.f32.mrf.mxu0
    %v2302 = vadd.f32 %v2195, %v2301
    %2303 = vdwg.mxu0
    %2304 = vmatprep.subr.mxu0 0.0
    %2305 = vmatpush1.msra.mxu0 0.0
    %2306 = vmatprep.subr.mxu0 0.0
    %2307 = vmatpush1.msra.mxu0 0.0
    %2308 = vmatprep.subr.mxu0 0.0
    %2309 = vmatpush1.msra.mxu0 0.0
    %2310 = vmatprep.subr.mxu0 0.0
    %2311 = vmatpush1.msra.mxu0 0.0
    %2312 = vmatprep.subr.mxu0 0.0
    %2313 = vmatpush1.msra.mxu0 0.0
    %2314 = vmatprep.subr.mxu0 0.0
    %2315 = vmatpush1.msra.mxu0 0.0
    %2316 = vmatprep.subr.mxu0 0.0
    %2317 = vmatpush1.msra.mxu0 0.0
    %2318 = vmatprep.subr.mxu0 0.0
    %2319 = vmatpush1.msra.mxu0 0.0
    %2320 = vmatprep.subr.mxu0 0.0
    %2321 = vmatpush1.msra.mxu0 %v2185
    %2322 = vmatprep.subr.mxu0 0.0
    %2323 = vmatpush1.msra.mxu0 %v2182
    %2324 = vmatprep.subr.mxu0 0.0
    %2325 = vmatpush1.msra.mxu0 %v2179
    %2326 = vmatprep.subr.mxu0 0.0
    %2327 = vmatpush1.msra.mxu0 %v2176
    %2328 = vmatprep.subr.mxu0 0.0
    %2329 = vmatpush1.msra.mxu0 %v2173
    %2330 = vmatprep.subr.mxu0 0.0
    %2331 = vmatpush1.msra.mxu0 %v2170
    %2332 = vmatprep.subr.mxu0 0.0
    %2333 = vmatpush1.msra.mxu0 %v2167
    %2334 = vmatprep.subr.mxu0 0.0
    %2335 = vmatpush1.msra.mxu0 %v2164
    %2336 = vmatprep.subr.mxu0 0.0
    %2337 = vmatpush2.msra.mxu0 0.0
    %2338 = vmatprep.subr.mxu0 0.0
    %2339 = vmatpush2.msra.mxu0 0.0
    %2340 = vmatprep.subr.mxu0 0.0
    %2341 = vmatpush2.msra.mxu0 0.0
    %2342 = vmatprep.subr.mxu0 0.0
    %2343 = vmatpush2.msra.mxu0 0.0
    %2344 = vmatprep.subr.mxu0 0.0
    %2345 = vmatpush2.msra.mxu0 0.0
    %2346 = vmatprep.subr.mxu0 0.0
    %2347 = vmatpush2.msra.mxu0 0.0
    %2348 = vmatprep.subr.mxu0 0.0
    %2349 = vmatpush2.msra.mxu0 0.0
    %2350 = vmatprep.subr.mxu0 0.0
    %2351 = vmatpush2.msra.mxu0 0.0
    %2352 = vmatprep.subr.mxu0 0.0
    %2353 = vmatpush2.msra.mxu0 0.0
    %2354 = vmatprep.subr.mxu0 0.0
    %2355 = vmatpush2.msra.mxu0 0.0
    %2356 = vmatprep.subr.mxu0 0.0
    %2357 = vmatpush2.msra.mxu0 0.0
    %2358 = vmatprep.subr.mxu0 0.0
    %2359 = vmatpush2.msra.mxu0 0.0
    %2360 = vmatprep.subr.mxu0 0.0
    %2361 = vmatpush2.msra.mxu0 0.0
    %2362 = vmatprep.subr.mxu0 0.0
    %2363 = vmatpush2.msra.mxu0 0.0
    %2364 = vmatprep.subr.mxu0 0.0
    %2365 = vmatpush2.msra.mxu0 0.0
    %2366 = vmatprep.subr.mxu0 0.0
    %2367 = vmatpush2.msra.mxu0 0.0
    %2368 = vmatprep.mubr.f32.mxu0 0.0
    %2369 = vmatmul.mubr.f32.gmra.mxu0 %v2204
    %v2370 = vpop.f32.mrf.mxu0
    %v2371 = vadd.f32 %v2199, %v2370
    %v2372 = vpop.f32.mrf.mxu0
    %2373 = vmatprep.mubr.f32.mxu0 0.0
    %2374 = vmatmul.mubr.f32.gmra.mxu0 %v2207
    %v2375 = vpop.f32.mrf.mxu0
    %v2376 = vadd.f32 %v2199, %v2375
    %v2377 = vpop.f32.mrf.mxu0
    %2378 = vmatprep.mubr.f32.mxu0 0.0
    %2379 = vmatmul.mubr.f32.gmra.mxu0 %v2210
    %v2380 = vpop.f32.mrf.mxu0
    %v2381 = vadd.f32 %v2199, %v2380
    %v2382 = vpop.f32.mrf.mxu0
    %2383 = vmatprep.mubr.f32.mxu0 0.0
    %2384 = vmatmul.mubr.f32.gmra.mxu0 %v2213
    %v2385 = vpop.f32.mrf.mxu0
    %v2386 = vadd.f32 %v2199, %v2385
    %v2387 = vpop.f32.mrf.mxu0
    %2388 = vdwg.mxu0
    %v2389 = vld [vmem:[#allocation27] sm:$0xff]
    %v2390 = vld [vmem:[#allocation27 + $0x8] sm:$0xff]
    %v2391 = vld [vmem:[#allocation27 + $0x10] sm:$0xff]
    %v2392 = vld [vmem:[#allocation27 + $0x18] sm:$0xff]
    %v2393 = vld [vmem:[#allocation27 + $0x20] sm:$0xff]
    %v2394 = vld [vmem:[#allocation27 + $0x28] sm:$0xff]
    %v2395 = vld [vmem:[#allocation27 + $0x30] sm:$0xff]
    %v2396 = vld [vmem:[#allocation27 + $0x38] sm:$0xff]
    %v2397 = vld [vmem:[#allocation27 + $0x40] sm:$0xff]
    %v2398 = vld [vmem:[#allocation27 + $0x48] sm:$0xff]
    %v2399 = vld [vmem:[#allocation27 + $0x50] sm:$0xff]
    %v2400 = vld [vmem:[#allocation27 + $0x58] sm:$0xff]
    %v2401 = vld [vmem:[#allocation27 + $0x60] sm:$0xff]
    %v2402 = vld [vmem:[#allocation27 + $0x68] sm:$0xff]
    %v2403 = vld [vmem:[#allocation27 + $0x70] sm:$0xff]
    %v2404 = vld [vmem:[#allocation27 + $0x78] sm:$0xff]
    %v2405 = vld [vmem:[#allocation27 + $0x80] sm:$0xff]
    %v2406 = vld [vmem:[#allocation27 + $0x88] sm:$0xff]
    %v2407 = vld [vmem:[#allocation27 + $0x90] sm:$0xff]
    %v2408 = vld [vmem:[#allocation27 + $0x98] sm:$0xff]
    %v2409 = vld [vmem:[#allocation27 + $0xa0] sm:$0xff]
    %v2410 = vld [vmem:[#allocation27 + $0xa8] sm:$0xff]
    %v2411 = vld [vmem:[#allocation27 + $0xb0] sm:$0xff]
    %v2412 = vld [vmem:[#allocation27 + $0xb8] sm:$0xff]
    %v2413 = vld [vmem:[#allocation27 + $0xc0] sm:$0xff]
    %v2414 = vld [vmem:[#allocation27 + $0xc8] sm:$0xff]
    %v2415 = vld [vmem:[#allocation27 + $0xd0] sm:$0xff]
    %v2416 = vld [vmem:[#allocation27 + $0xd8] sm:$0xff]
    %v2417 = vld [vmem:[#allocation27 + $0xe0] sm:$0xff]
    %v2418 = vld [vmem:[#allocation27 + $0xe8] sm:$0xff]
    %v2419 = vld [vmem:[#allocation27 + $0xf0] sm:$0xff]
    %v2420 = vld [vmem:[#allocation27 + $0xf8] sm:$0xff]
    %v2421 = vld [vmem:[#allocation27 + $0x100] sm:$0xff]
    %v2422 = vld [vmem:[#allocation27 + $0x108] sm:$0xff]
    %v2423 = vld [vmem:[#allocation27 + $0x110] sm:$0xff]
    %v2424 = vld [vmem:[#allocation27 + $0x118] sm:$0xff]
    %v2425 = vld [vmem:[#allocation27 + $0x120] sm:$0xff]
    %v2426 = vld [vmem:[#allocation27 + $0x128] sm:$0xff]
    %v2427 = vld [vmem:[#allocation27 + $0x130] sm:$0xff]
    %v2428 = vld [vmem:[#allocation27 + $0x138] sm:$0xff]
    %v2429 = vld [vmem:[#allocation27 + $0x140] sm:$0xff]
    %v2430 = vld [vmem:[#allocation27 + $0x148] sm:$0xff]
    %v2431 = vld [vmem:[#allocation27 + $0x150] sm:$0xff]
    %v2432 = vld [vmem:[#allocation27 + $0x158] sm:$0xff]
    %v2433 = vld [vmem:[#allocation27 + $0x160] sm:$0xff]
    %v2434 = vld [vmem:[#allocation27 + $0x168] sm:$0xff]
    %v2435 = vld [vmem:[#allocation27 + $0x170] sm:$0xff]
    %v2436 = vld [vmem:[#allocation27 + $0x178] sm:$0xff]
    %v2437 = vld [vmem:[#allocation28] sm:$0x7]
    %v2438 = vld [vmem:[%s53] sm:$0xff]
    %v2440 = vlaneseq
    %v2441 = vshrl.u32 %v2440, 7
    %v2442 = vsub.s32 0, %v2441
    %v2443 = vrot.slane %v2437, %v2442
    %v2444 = vlaneseq
    %v2445 = vshrl.u32 %v2444, 7
    %v2446 = vsub.s32 1, %v2445
    %v2447 = vrot.slane %v2437, %v2446
    %v2448 = vlaneseq
    %v2449 = vshrl.u32 %v2448, 7
    %v2450 = vsub.s32 2, %v2449
    %v2451 = vrot.slane %v2437, %v2450
    %2455 = vmatprep.subr.mxu0 %v2435
    %2456 = vmatpush1.msra.mxu0 %v2434
    %2457 = vmatprep.subr.mxu0 %v2432
    %2458 = vmatpush1.msra.mxu0 %v2431
    %2459 = vmatprep.subr.mxu0 %v2429
    %2460 = vmatpush1.msra.mxu0 %v2428
    %2461 = vmatprep.subr.mxu0 %v2426
    %2462 = vmatpush1.msra.mxu0 %v2425
    %2463 = vmatprep.subr.mxu0 %v2423
    %2464 = vmatpush1.msra.mxu0 %v2422
    %2465 = vmatprep.subr.mxu0 %v2420
    %2466 = vmatpush1.msra.mxu0 %v2419
    %2467 = vmatprep.subr.mxu0 %v2417
    %2468 = vmatpush1.msra.mxu0 %v2416
    %2469 = vmatprep.subr.mxu0 %v2414
    %2470 = vmatpush1.msra.mxu0 %v2413
    %2471 = vmatprep.subr.mxu0 %v2411
    %2472 = vmatpush1.msra.mxu0 %v2410
    %2473 = vmatprep.subr.mxu0 %v2408
    %2474 = vmatpush1.msra.mxu0 %v2407
    %2475 = vmatprep.subr.mxu0 %v2405
    %2476 = vmatpush1.msra.mxu0 %v2404
    %2477 = vmatprep.subr.mxu0 %v2402
    %2478 = vmatpush1.msra.mxu0 %v2401
    %2479 = vmatprep.subr.mxu0 %v2399
    %2480 = vmatpush1.msra.mxu0 %v2398
    %2481 = vmatprep.subr.mxu0 %v2396
    %2482 = vmatpush1.msra.mxu0 %v2395
    %2483 = vmatprep.subr.mxu0 %v2393
    %2484 = vmatpush1.msra.mxu0 %v2392
    %2485 = vmatprep.subr.mxu0 %v2390
    %2486 = vmatpush1.msra.mxu0 %v2389
    %2487 = vmatprep.subr.mxu0 0.0
    %2488 = vmatpush2.msra.mxu0 0.0
    %2489 = vmatprep.subr.mxu0 0.0
    %2490 = vmatpush2.msra.mxu0 0.0
    %2491 = vmatprep.subr.mxu0 0.0
    %2492 = vmatpush2.msra.mxu0 0.0
    %2493 = vmatprep.subr.mxu0 0.0
    %2494 = vmatpush2.msra.mxu0 0.0
    %2495 = vmatprep.subr.mxu0 0.0
    %2496 = vmatpush2.msra.mxu0 0.0
    %2497 = vmatprep.subr.mxu0 0.0
    %2498 = vmatpush2.msra.mxu0 0.0
    %2499 = vmatprep.subr.mxu0 0.0
    %2500 = vmatpush2.msra.mxu0 0.0
    %2501 = vmatprep.subr.mxu0 0.0
    %2502 = vmatpush2.msra.mxu0 0.0
    %2503 = vmatprep.subr.mxu0 0.0
    %2504 = vmatpush2.msra.mxu0 0.0
    %2505 = vmatprep.subr.mxu0 0.0
    %2506 = vmatpush2.msra.mxu0 0.0
    %2507 = vmatprep.subr.mxu0 0.0
    %2508 = vmatpush2.msra.mxu0 0.0
    %2509 = vmatprep.subr.mxu0 0.0
    %2510 = vmatpush2.msra.mxu0 0.0
    %2511 = vmatprep.subr.mxu0 0.0
    %2512 = vmatpush2.msra.mxu0 0.0
    %2513 = vmatprep.subr.mxu0 0.0
    %2514 = vmatpush2.msra.mxu0 0.0
    %2515 = vmatprep.subr.mxu0 0.0
    %2516 = vmatpush2.msra.mxu0 0.0
    %2517 = vmatprep.subr.mxu0 0.0
    %2518 = vmatpush2.msra.mxu0 0.0
    %2519 = vmatprep.mubr.f32.mxu0 0.0
    %2520 = vmatmul.mubr.f32.gmra.mxu0 %v2438
    %v2521 = vpop.f32.mrf.mxu0
    %v2522 = vadd.f32 %v2443, %v2521
    %v2523 = vpop.f32.mrf.mxu0
    %v2524 = vadd.f32 %v2447, %v2523
    %2525 = vdwg.mxu0
    %2526 = vmatprep.subr.mxu0 0.0
    %2527 = vmatpush1.msra.mxu0 %v2436
    %2528 = vmatprep.subr.mxu0 0.0
    %2529 = vmatpush1.msra.mxu0 %v2433
    %2530 = vmatprep.subr.mxu0 0.0
    %2531 = vmatpush1.msra.mxu0 %v2430
    %2532 = vmatprep.subr.mxu0 0.0
    %2533 = vmatpush1.msra.mxu0 %v2427
    %2534 = vmatprep.subr.mxu0 0.0
    %2535 = vmatpush1.msra.mxu0 %v2424
    %2536 = vmatprep.subr.mxu0 0.0
    %2537 = vmatpush1.msra.mxu0 %v2421
    %2538 = vmatprep.subr.mxu0 0.0
    %2539 = vmatpush1.msra.mxu0 %v2418
    %2540 = vmatprep.subr.mxu0 0.0
    %2541 = vmatpush1.msra.mxu0 %v2415
    %2542 = vmatprep.subr.mxu0 0.0
    %2543 = vmatpush1.msra.mxu0 %v2412
    %2544 = vmatprep.subr.mxu0 0.0
    %2545 = vmatpush1.msra.mxu0 %v2409
    %2546 = vmatprep.subr.mxu0 0.0
    %2547 = vmatpush1.msra.mxu0 %v2406
    %2548 = vmatprep.subr.mxu0 0.0
    %2549 = vmatpush1.msra.mxu0 %v2403
    %2550 = vmatprep.subr.mxu0 0.0
    %2551 = vmatpush1.msra.mxu0 %v2400
    %2552 = vmatprep.subr.mxu0 0.0
    %2553 = vmatpush1.msra.mxu0 %v2397
    %2554 = vmatprep.subr.mxu0 0.0
    %2555 = vmatpush1.msra.mxu0 %v2394
    %2556 = vmatprep.subr.mxu0 0.0
    %2557 = vmatpush1.msra.mxu0 %v2391
    %2558 = vmatprep.subr.mxu0 0.0
    %2559 = vmatpush2.msra.mxu0 0.0
    %2560 = vmatprep.subr.mxu0 0.0
    %2561 = vmatpush2.msra.mxu0 0.0
    %2562 = vmatprep.subr.mxu0 0.0
    %2563 = vmatpush2.msra.mxu0 0.0
    %2564 = vmatprep.subr.mxu0 0.0
    %2565 = vmatpush2.msra.mxu0 0.0
    %2566 = vmatprep.subr.mxu0 0.0
    %2567 = vmatpush2.msra.mxu0 0.0
    %2568 = vmatprep.subr.mxu0 0.0
    %2569 = vmatpush2.msra.mxu0 0.0
    %2570 = vmatprep.subr.mxu0 0.0
    %2571 = vmatpush2.msra.mxu0 0.0
    %2572 = vmatprep.subr.mxu0 0.0
    %2573 = vmatpush2.msra.mxu0 0.0
    %2574 = vmatprep.subr.mxu0 0.0
    %2575 = vmatpush2.msra.mxu0 0.0
    %2576 = vmatprep.subr.mxu0 0.0
    %2577 = vmatpush2.msra.mxu0 0.0
    %2578 = vmatprep.subr.mxu0 0.0
    %2579 = vmatpush2.msra.mxu0 0.0
    %2580 = vmatprep.subr.mxu0 0.0
    %2581 = vmatpush2.msra.mxu0 0.0
    %2582 = vmatprep.subr.mxu0 0.0
    %2583 = vmatpush2.msra.mxu0 0.0
    %2584 = vmatprep.subr.mxu0 0.0
    %2585 = vmatpush2.msra.mxu0 0.0
    %2586 = vmatprep.subr.mxu0 0.0
    %2587 = vmatpush2.msra.mxu0 0.0
    %2588 = vmatprep.subr.mxu0 0.0
    %2589 = vmatpush2.msra.mxu0 0.0
    %2590 = vmatprep.mubr.f32.mxu0 0.0
    %2591 = vmatmul.mubr.f32.gmra.mxu0 %v2438
    %v2592 = vpop.f32.mrf.mxu0
    %v2593 = vadd.f32 %v2451, %v2592
    %v2594 = vpop.f32.mrf.mxu0
    %2595 = vdwg.mxu0
    %v2596 = vadd.f32 %v2282, %v2522
    %v2597 = vxor.u32 %v2596, 2147483648
    %v2598 = vmul.f32 %v2597, 1.442695
    %v2599 = vpow.pop %v2598
    %v2600 = vadd.f32 %v2599, 1.0
    %v2601 = vrcp.pop %v2600
    %v2602 = vmul.f32 1.0, %v2601
    %v2603 = vadd.f32 %v2284, %v2524
    %v2604 = vxor.u32 %v2603, 2147483648
    %v2605 = vmul.f32 %v2604, 1.442695
    %v2606 = vpow.pop %v2605
    %v2607 = vadd.f32 %v2606, 1.0
    %v2608 = vrcp.pop %v2607
    %v2609 = vmul.f32 1.0, %v2608
    %v2610 = vmul.f32 %v2602, %v2593
    %v2611 = vadd.f32 %v2371, %v2610
    %v2612 = vtanh.pop %v2611
    %v2613 = vsub.f32 1.0, %v2609
    %v2614 = vmul.f32 %v2613, %v2612
    %v2615 = vmul.f32 %v2609, %v2438
    %v2616 = vadd.f32 %v2614, %v2615
    %2617 = vmatprep.subr.mxu0 %v2435
    %2618 = vmatpush1.msra.mxu0 %v2434
    %2619 = vmatprep.subr.mxu0 %v2432
    %2620 = vmatpush1.msra.mxu0 %v2431
    %2621 = vmatprep.subr.mxu0 %v2429
    %2622 = vmatpush1.msra.mxu0 %v2428
    %2623 = vmatprep.subr.mxu0 %v2426
    %2624 = vmatpush1.msra.mxu0 %v2425
    %2625 = vmatprep.subr.mxu0 %v2423
    %2626 = vmatpush1.msra.mxu0 %v2422
    %2627 = vmatprep.subr.mxu0 %v2420
    %2628 = vmatpush1.msra.mxu0 %v2419
    %2629 = vmatprep.subr.mxu0 %v2417
    %2630 = vmatpush1.msra.mxu0 %v2416
    %2631 = vmatprep.subr.mxu0 %v2414
    %2632 = vmatpush1.msra.mxu0 %v2413
    %2633 = vmatprep.subr.mxu0 %v2411
    %2634 = vmatpush1.msra.mxu0 %v2410
    %2635 = vmatprep.subr.mxu0 %v2408
    %2636 = vmatpush1.msra.mxu0 %v2407
    %2637 = vmatprep.subr.mxu0 %v2405
    %2638 = vmatpush1.msra.mxu0 %v2404
    %2639 = vmatprep.subr.mxu0 %v2402
    %2640 = vmatpush1.msra.mxu0 %v2401
    %2641 = vmatprep.subr.mxu0 %v2399
    %2642 = vmatpush1.msra.mxu0 %v2398
    %2643 = vmatprep.subr.mxu0 %v2396
    %2644 = vmatpush1.msra.mxu0 %v2395
    %2645 = vmatprep.subr.mxu0 %v2393
    %2646 = vmatpush1.msra.mxu0 %v2392
    %2647 = vmatprep.subr.mxu0 %v2390
    %2648 = vmatpush1.msra.mxu0 %v2389
    %2649 = vmatprep.subr.mxu0 0.0
    %2650 = vmatpush2.msra.mxu0 0.0
    %2651 = vmatprep.subr.mxu0 0.0
    %2652 = vmatpush2.msra.mxu0 0.0
    %2653 = vmatprep.subr.mxu0 0.0
    %2654 = vmatpush2.msra.mxu0 0.0
    %2655 = vmatprep.subr.mxu0 0.0
    %2656 = vmatpush2.msra.mxu0 0.0
    %2657 = vmatprep.subr.mxu0 0.0
    %2658 = vmatpush2.msra.mxu0 0.0
    %2659 = vmatprep.subr.mxu0 0.0
    %2660 = vmatpush2.msra.mxu0 0.0
    %2661 = vmatprep.subr.mxu0 0.0
    %2662 = vmatpush2.msra.mxu0 0.0
    %2663 = vmatprep.subr.mxu0 0.0
    %2664 = vmatpush2.msra.mxu0 0.0
    %2665 = vmatprep.subr.mxu0 0.0
    %2666 = vmatpush2.msra.mxu0 0.0
    %2667 = vmatprep.subr.mxu0 0.0
    %2668 = vmatpush2.msra.mxu0 0.0
    %2669 = vmatprep.subr.mxu0 0.0
    %2670 = vmatpush2.msra.mxu0 0.0
    %2671 = vmatprep.subr.mxu0 0.0
    %2672 = vmatpush2.msra.mxu0 0.0
    %2673 = vmatprep.subr.mxu0 0.0
    %2674 = vmatpush2.msra.mxu0 0.0
    %2675 = vmatprep.subr.mxu0 0.0
    %2676 = vmatpush2.msra.mxu0 0.0
    %2677 = vmatprep.subr.mxu0 0.0
    %2678 = vmatpush2.msra.mxu0 0.0
    %2679 = vmatprep.subr.mxu0 0.0
    %2680 = vmatpush2.msra.mxu0 0.0
    %2681 = vmatprep.mubr.f32.mxu0 0.0
    %2682 = vmatmul.mubr.f32.gmra.mxu0 %v2616
    %v2683 = vpop.f32.mrf.mxu0
    %v2684 = vadd.f32 %v2443, %v2683
    %v2685 = vpop.f32.mrf.mxu0
    %v2686 = vadd.f32 %v2447, %v2685
    %2687 = vdwg.mxu0
    %2688 = vmatprep.subr.mxu0 0.0
    %2689 = vmatpush1.msra.mxu0 %v2436
    %2690 = vmatprep.subr.mxu0 0.0
    %2691 = vmatpush1.msra.mxu0 %v2433
    %2692 = vmatprep.subr.mxu0 0.0
    %2693 = vmatpush1.msra.mxu0 %v2430
    %2694 = vmatprep.subr.mxu0 0.0
    %2695 = vmatpush1.msra.mxu0 %v2427
    %2696 = vmatprep.subr.mxu0 0.0
    %2697 = vmatpush1.msra.mxu0 %v2424
    %2698 = vmatprep.subr.mxu0 0.0
    %2699 = vmatpush1.msra.mxu0 %v2421
    %2700 = vmatprep.subr.mxu0 0.0
    %2701 = vmatpush1.msra.mxu0 %v2418
    %2702 = vmatprep.subr.mxu0 0.0
    %2703 = vmatpush1.msra.mxu0 %v2415
    %2704 = vmatprep.subr.mxu0 0.0
    %2705 = vmatpush1.msra.mxu0 %v2412
    %2706 = vmatprep.subr.mxu0 0.0
    %2707 = vmatpush1.msra.mxu0 %v2409
    %2708 = vmatprep.subr.mxu0 0.0
    %2709 = vmatpush1.msra.mxu0 %v2406
    %2710 = vmatprep.subr.mxu0 0.0
    %2711 = vmatpush1.msra.mxu0 %v2403
    %2712 = vmatprep.subr.mxu0 0.0
    %2713 = vmatpush1.msra.mxu0 %v2400
    %2714 = vmatprep.subr.mxu0 0.0
    %2715 = vmatpush1.msra.mxu0 %v2397
    %2716 = vmatprep.subr.mxu0 0.0
    %2717 = vmatpush1.msra.mxu0 %v2394
    %2718 = vmatprep.subr.mxu0 0.0
    %2719 = vmatpush1.msra.mxu0 %v2391
    %2720 = vmatprep.subr.mxu0 0.0
    %2721 = vmatpush2.msra.mxu0 0.0
    %2722 = vmatprep.subr.mxu0 0.0
    %2723 = vmatpush2.msra.mxu0 0.0
    %2724 = vmatprep.subr.mxu0 0.0
    %2725 = vmatpush2.msra.mxu0 0.0
    %2726 = vmatprep.subr.mxu0 0.0
    %2727 = vmatpush2.msra.mxu0 0.0
    %2728 = vmatprep.subr.mxu0 0.0
    %2729 = vmatpush2.msra.mxu0 0.0
    %2730 = vmatprep.subr.mxu0 0.0
    %2731 = vmatpush2.msra.mxu0 0.0
    %2732 = vmatprep.subr.mxu0 0.0
    %2733 = vmatpush2.msra.mxu0 0.0
    %2734 = vmatprep.subr.mxu0 0.0
    %2735 = vmatpush2.msra.mxu0 0.0
    %2736 = vmatprep.subr.mxu0 0.0
    %2737 = vmatpush2.msra.mxu0 0.0
    %2738 = vmatprep.subr.mxu0 0.0
    %2739 = vmatpush2.msra.mxu0 0.0
    %2740 = vmatprep.subr.mxu0 0.0
    %2741 = vmatpush2.msra.mxu0 0.0
    %2742 = vmatprep.subr.mxu0 0.0
    %2743 = vmatpush2.msra.mxu0 0.0
    %2744 = vmatprep.subr.mxu0 0.0
    %2745 = vmatpush2.msra.mxu0 0.0
    %2746 = vmatprep.subr.mxu0 0.0
    %2747 = vmatpush2.msra.mxu0 0.0
    %2748 = vmatprep.subr.mxu0 0.0
    %2749 = vmatpush2.msra.mxu0 0.0
    %2750 = vmatprep.subr.mxu0 0.0
    %2751 = vmatpush2.msra.mxu0 0.0
    %2752 = vmatprep.mubr.f32.mxu0 0.0
    %2753 = vmatmul.mubr.f32.gmra.mxu0 %v2616
    %v2754 = vpop.f32.mrf.mxu0
    %v2755 = vadd.f32 %v2451, %v2754
    %v2756 = vpop.f32.mrf.mxu0
    %2757 = vdwg.mxu0
    %v2758 = vadd.f32 %v2288, %v2684
    %v2759 = vxor.u32 %v2758, 2147483648
    %v2760 = vmul.f32 %v2759, 1.442695
    %v2761 = vpow.pop %v2760
    %v2762 = vadd.f32 %v2761, 1.0
    %v2763 = vrcp.pop %v2762
    %v2764 = vmul.f32 1.0, %v2763
    %v2765 = vadd.f32 %v2290, %v2686
    %v2766 = vxor.u32 %v2765, 2147483648
    %v2767 = vmul.f32 %v2766, 1.442695
    %v2768 = vpow.pop %v2767
    %v2769 = vadd.f32 %v2768, 1.0
    %v2770 = vrcp.pop %v2769
    %v2771 = vmul.f32 1.0, %v2770
    %v2772 = vmul.f32 %v2764, %v2755
    %v2773 = vadd.f32 %v2376, %v2772
    %v2774 = vtanh.pop %v2773
    %v2775 = vsub.f32 1.0, %v2771
    %v2776 = vmul.f32 %v2775, %v2774
    %v2777 = vmul.f32 %v2771, %v2616
    %v2778 = vadd.f32 %v2776, %v2777
    %2779 = vmatprep.subr.mxu0 %v2435
    %2780 = vmatpush1.msra.mxu0 %v2434
    %2781 = vmatprep.subr.mxu0 %v2432
    %2782 = vmatpush1.msra.mxu0 %v2431
    %2783 = vmatprep.subr.mxu0 %v2429
    %2784 = vmatpush1.msra.mxu0 %v2428
    %2785 = vmatprep.subr.mxu0 %v2426
    %2786 = vmatpush1.msra.mxu0 %v2425
    %2787 = vmatprep.subr.mxu0 %v2423
    %2788 = vmatpush1.msra.mxu0 %v2422
    %2789 = vmatprep.subr.mxu0 %v2420
    %2790 = vmatpush1.msra.mxu0 %v2419
    %2791 = vmatprep.subr.mxu0 %v2417
    %2792 = vmatpush1.msra.mxu0 %v2416
    %2793 = vmatprep.subr.mxu0 %v2414
    %2794 = vmatpush1.msra.mxu0 %v2413
    %2795 = vmatprep.subr.mxu0 %v2411
    %2796 = vmatpush1.msra.mxu0 %v2410
    %2797 = vmatprep.subr.mxu0 %v2408
    %2798 = vmatpush1.msra.mxu0 %v2407
    %2799 = vmatprep.subr.mxu0 %v2405
    %2800 = vmatpush1.msra.mxu0 %v2404
    %2801 = vmatprep.subr.mxu0 %v2402
    %2802 = vmatpush1.msra.mxu0 %v2401
    %2803 = vmatprep.subr.mxu0 %v2399
    %2804 = vmatpush1.msra.mxu0 %v2398
    %2805 = vmatprep.subr.mxu0 %v2396
    %2806 = vmatpush1.msra.mxu0 %v2395
    %2807 = vmatprep.subr.mxu0 %v2393
    %2808 = vmatpush1.msra.mxu0 %v2392
    %2809 = vmatprep.subr.mxu0 %v2390
    %2810 = vmatpush1.msra.mxu0 %v2389
    %2811 = vmatprep.subr.mxu0 0.0
    %2812 = vmatpush2.msra.mxu0 0.0
    %2813 = vmatprep.subr.mxu0 0.0
    %2814 = vmatpush2.msra.mxu0 0.0
    %2815 = vmatprep.subr.mxu0 0.0
    %2816 = vmatpush2.msra.mxu0 0.0
    %2817 = vmatprep.subr.mxu0 0.0
    %2818 = vmatpush2.msra.mxu0 0.0
    %2819 = vmatprep.subr.mxu0 0.0
    %2820 = vmatpush2.msra.mxu0 0.0
    %2821 = vmatprep.subr.mxu0 0.0
    %2822 = vmatpush2.msra.mxu0 0.0
    %2823 = vmatprep.subr.mxu0 0.0
    %2824 = vmatpush2.msra.mxu0 0.0
    %2825 = vmatprep.subr.mxu0 0.0
    %2826 = vmatpush2.msra.mxu0 0.0
    %2827 = vmatprep.subr.mxu0 0.0
    %2828 = vmatpush2.msra.mxu0 0.0
    %2829 = vmatprep.subr.mxu0 0.0
    %2830 = vmatpush2.msra.mxu0 0.0
    %2831 = vmatprep.subr.mxu0 0.0
    %2832 = vmatpush2.msra.mxu0 0.0
    %2833 = vmatprep.subr.mxu0 0.0
    %2834 = vmatpush2.msra.mxu0 0.0
    %2835 = vmatprep.subr.mxu0 0.0
    %2836 = vmatpush2.msra.mxu0 0.0
    %2837 = vmatprep.subr.mxu0 0.0
    %2838 = vmatpush2.msra.mxu0 0.0
    %2839 = vmatprep.subr.mxu0 0.0
    %2840 = vmatpush2.msra.mxu0 0.0
    %2841 = vmatprep.subr.mxu0 0.0
    %2842 = vmatpush2.msra.mxu0 0.0
    %2843 = vmatprep.mubr.f32.mxu0 0.0
    %2844 = vmatmul.mubr.f32.gmra.mxu0 %v2778
    %v2845 = vpop.f32.mrf.mxu0
    %v2846 = vadd.f32 %v2443, %v2845
    %v2847 = vpop.f32.mrf.mxu0
    %v2848 = vadd.f32 %v2447, %v2847
    %2849 = vdwg.mxu0
    %2850 = vmatprep.subr.mxu0 0.0
    %2851 = vmatpush1.msra.mxu0 %v2436
    %2852 = vmatprep.subr.mxu0 0.0
    %2853 = vmatpush1.msra.mxu0 %v2433
    %2854 = vmatprep.subr.mxu0 0.0
    %2855 = vmatpush1.msra.mxu0 %v2430
    %2856 = vmatprep.subr.mxu0 0.0
    %2857 = vmatpush1.msra.mxu0 %v2427
    %2858 = vmatprep.subr.mxu0 0.0
    %2859 = vmatpush1.msra.mxu0 %v2424
    %2860 = vmatprep.subr.mxu0 0.0
    %2861 = vmatpush1.msra.mxu0 %v2421
    %2862 = vmatprep.subr.mxu0 0.0
    %2863 = vmatpush1.msra.mxu0 %v2418
    %2864 = vmatprep.subr.mxu0 0.0
    %2865 = vmatpush1.msra.mxu0 %v2415
    %2866 = vmatprep.subr.mxu0 0.0
    %2867 = vmatpush1.msra.mxu0 %v2412
    %2868 = vmatprep.subr.mxu0 0.0
    %2869 = vmatpush1.msra.mxu0 %v2409
    %2870 = vmatprep.subr.mxu0 0.0
    %2871 = vmatpush1.msra.mxu0 %v2406
    %2872 = vmatprep.subr.mxu0 0.0
    %2873 = vmatpush1.msra.mxu0 %v2403
    %2874 = vmatprep.subr.mxu0 0.0
    %2875 = vmatpush1.msra.mxu0 %v2400
    %2876 = vmatprep.subr.mxu0 0.0
    %2877 = vmatpush1.msra.mxu0 %v2397
    %2878 = vmatprep.subr.mxu0 0.0
    %2879 = vmatpush1.msra.mxu0 %v2394
    %2880 = vmatprep.subr.mxu0 0.0
    %2881 = vmatpush1.msra.mxu0 %v2391
    %2882 = vmatprep.subr.mxu0 0.0
    %2883 = vmatpush2.msra.mxu0 0.0
    %2884 = vmatprep.subr.mxu0 0.0
    %2885 = vmatpush2.msra.mxu0 0.0
    %2886 = vmatprep.subr.mxu0 0.0
    %2887 = vmatpush2.msra.mxu0 0.0
    %2888 = vmatprep.subr.mxu0 0.0
    %2889 = vmatpush2.msra.mxu0 0.0
    %2890 = vmatprep.subr.mxu0 0.0
    %2891 = vmatpush2.msra.mxu0 0.0
    %2892 = vmatprep.subr.mxu0 0.0
    %2893 = vmatpush2.msra.mxu0 0.0
    %2894 = vmatprep.subr.mxu0 0.0
    %2895 = vmatpush2.msra.mxu0 0.0
    %2896 = vmatprep.subr.mxu0 0.0
    %2897 = vmatpush2.msra.mxu0 0.0
    %2898 = vmatprep.subr.mxu0 0.0
    %2899 = vmatpush2.msra.mxu0 0.0
    %2900 = vmatprep.subr.mxu0 0.0
    %2901 = vmatpush2.msra.mxu0 0.0
    %2902 = vmatprep.subr.mxu0 0.0
    %2903 = vmatpush2.msra.mxu0 0.0
    %2904 = vmatprep.subr.mxu0 0.0
    %2905 = vmatpush2.msra.mxu0 0.0
    %2906 = vmatprep.subr.mxu0 0.0
    %2907 = vmatpush2.msra.mxu0 0.0
    %2908 = vmatprep.subr.mxu0 0.0
    %2909 = vmatpush2.msra.mxu0 0.0
    %2910 = vmatprep.subr.mxu0 0.0
    %2911 = vmatpush2.msra.mxu0 0.0
    %2912 = vmatprep.subr.mxu0 0.0
    %2913 = vmatpush2.msra.mxu0 0.0
    %2914 = vmatprep.mubr.f32.mxu0 0.0
    %2915 = vmatmul.mubr.f32.gmra.mxu0 %v2778
    %v2916 = vpop.f32.mrf.mxu0
    %v2917 = vadd.f32 %v2451, %v2916
    %v2918 = vpop.f32.mrf.mxu0
    %2919 = vdwg.mxu0
    %v2920 = vadd.f32 %v2294, %v2846
    %v2921 = vxor.u32 %v2920, 2147483648
    %v2922 = vmul.f32 %v2921, 1.442695
    %v2923 = vpow.pop %v2922
    %v2924 = vadd.f32 %v2923, 1.0
    %v2925 = vrcp.pop %v2924
    %v2926 = vmul.f32 1.0, %v2925
    %v2927 = vadd.f32 %v2296, %v2848
    %v2928 = vxor.u32 %v2927, 2147483648
    %v2929 = vmul.f32 %v2928, 1.442695
    %v2930 = vpow.pop %v2929
    %v2931 = vadd.f32 %v2930, 1.0
    %v2932 = vrcp.pop %v2931
    %v2933 = vmul.f32 1.0, %v2932
    %v2934 = vmul.f32 %v2926, %v2917
    %v2935 = vadd.f32 %v2381, %v2934
    %v2936 = vtanh.pop %v2935
    %v2937 = vsub.f32 1.0, %v2933
    %v2938 = vmul.f32 %v2937, %v2936
    %v2939 = vmul.f32 %v2933, %v2778
    %v2940 = vadd.f32 %v2938, %v2939
    %2941 = vmatprep.subr.mxu0 %v2435
    %2942 = vmatpush1.msra.mxu0 %v2434
    %2943 = vmatprep.subr.mxu0 %v2432
    %2944 = vmatpush1.msra.mxu0 %v2431
    %2945 = vmatprep.subr.mxu0 %v2429
    %2946 = vmatpush1.msra.mxu0 %v2428
    %2947 = vmatprep.subr.mxu0 %v2426
    %2948 = vmatpush1.msra.mxu0 %v2425
    %2949 = vmatprep.subr.mxu0 %v2423
    %2950 = vmatpush1.msra.mxu0 %v2422
    %2951 = vmatprep.subr.mxu0 %v2420
    %2952 = vmatpush1.msra.mxu0 %v2419
    %2953 = vmatprep.subr.mxu0 %v2417
    %2954 = vmatpush1.msra.mxu0 %v2416
    %2955 = vmatprep.subr.mxu0 %v2414
    %2956 = vmatpush1.msra.mxu0 %v2413
    %2957 = vmatprep.subr.mxu0 %v2411
    %2958 = vmatpush1.msra.mxu0 %v2410
    %2959 = vmatprep.subr.mxu0 %v2408
    %2960 = vmatpush1.msra.mxu0 %v2407
    %2961 = vmatprep.subr.mxu0 %v2405
    %2962 = vmatpush1.msra.mxu0 %v2404
    %2963 = vmatprep.subr.mxu0 %v2402
    %2964 = vmatpush1.msra.mxu0 %v2401
    %2965 = vmatprep.subr.mxu0 %v2399
    %2966 = vmatpush1.msra.mxu0 %v2398
    %2967 = vmatprep.subr.mxu0 %v2396
    %2968 = vmatpush1.msra.mxu0 %v2395
    %2969 = vmatprep.subr.mxu0 %v2393
    %2970 = vmatpush1.msra.mxu0 %v2392
    %2971 = vmatprep.subr.mxu0 %v2390
    %2972 = vmatpush1.msra.mxu0 %v2389
    %2973 = vmatprep.subr.mxu0 0.0
    %2974 = vmatpush2.msra.mxu0 0.0
    %2975 = vmatprep.subr.mxu0 0.0
    %2976 = vmatpush2.msra.mxu0 0.0
    %2977 = vmatprep.subr.mxu0 0.0
    %2978 = vmatpush2.msra.mxu0 0.0
    %2979 = vmatprep.subr.mxu0 0.0
    %2980 = vmatpush2.msra.mxu0 0.0
    %2981 = vmatprep.subr.mxu0 0.0
    %2982 = vmatpush2.msra.mxu0 0.0
    %2983 = vmatprep.subr.mxu0 0.0
    %2984 = vmatpush2.msra.mxu0 0.0
    %2985 = vmatprep.subr.mxu0 0.0
    %2986 = vmatpush2.msra.mxu0 0.0
    %2987 = vmatprep.subr.mxu0 0.0
    %2988 = vmatpush2.msra.mxu0 0.0
    %2989 = vmatprep.subr.mxu0 0.0
    %2990 = vmatpush2.msra.mxu0 0.0
    %2991 = vmatprep.subr.mxu0 0.0
    %2992 = vmatpush2.msra.mxu0 0.0
    %2993 = vmatprep.subr.mxu0 0.0
    %2994 = vmatpush2.msra.mxu0 0.0
    %2995 = vmatprep.subr.mxu0 0.0
    %2996 = vmatpush2.msra.mxu0 0.0
    %2997 = vmatprep.subr.mxu0 0.0
    %2998 = vmatpush2.msra.mxu0 0.0
    %2999 = vmatprep.subr.mxu0 0.0
    %3000 = vmatpush2.msra.mxu0 0.0
    %3001 = vmatprep.subr.mxu0 0.0
    %3002 = vmatpush2.msra.mxu0 0.0
    %3003 = vmatprep.subr.mxu0 0.0
    %3004 = vmatpush2.msra.mxu0 0.0
    %3005 = vmatprep.mubr.f32.mxu0 0.0
    %3006 = vmatmul.mubr.f32.gmra.mxu0 %v2940
    %v3007 = vpop.f32.mrf.mxu0
    %v3008 = vadd.f32 %v2443, %v3007
    %v3009 = vpop.f32.mrf.mxu0
    %v3010 = vadd.f32 %v2447, %v3009
    %3011 = vdwg.mxu0
    %3012 = vmatprep.subr.mxu0 0.0
    %3013 = vmatpush1.msra.mxu0 %v2436
    %3014 = vmatprep.subr.mxu0 0.0
    %3015 = vmatpush1.msra.mxu0 %v2433
    %3016 = vmatprep.subr.mxu0 0.0
    %3017 = vmatpush1.msra.mxu0 %v2430
    %3018 = vmatprep.subr.mxu0 0.0
    %3019 = vmatpush1.msra.mxu0 %v2427
    %3020 = vmatprep.subr.mxu0 0.0
    %3021 = vmatpush1.msra.mxu0 %v2424
    %3022 = vmatprep.subr.mxu0 0.0
    %3023 = vmatpush1.msra.mxu0 %v2421
    %3024 = vmatprep.subr.mxu0 0.0
    %3025 = vmatpush1.msra.mxu0 %v2418
    %3026 = vmatprep.subr.mxu0 0.0
    %3027 = vmatpush1.msra.mxu0 %v2415
    %3028 = vmatprep.subr.mxu0 0.0
    %3029 = vmatpush1.msra.mxu0 %v2412
    %3030 = vmatprep.subr.mxu0 0.0
    %3031 = vmatpush1.msra.mxu0 %v2409
    %3032 = vmatprep.subr.mxu0 0.0
    %3033 = vmatpush1.msra.mxu0 %v2406
    %3034 = vmatprep.subr.mxu0 0.0
    %3035 = vmatpush1.msra.mxu0 %v2403
    %3036 = vmatprep.subr.mxu0 0.0
    %3037 = vmatpush1.msra.mxu0 %v2400
    %3038 = vmatprep.subr.mxu0 0.0
    %3039 = vmatpush1.msra.mxu0 %v2397
    %3040 = vmatprep.subr.mxu0 0.0
    %3041 = vmatpush1.msra.mxu0 %v2394
    %3042 = vmatprep.subr.mxu0 0.0
    %3043 = vmatpush1.msra.mxu0 %v2391
    %3044 = vmatprep.subr.mxu0 0.0
    %3045 = vmatpush2.msra.mxu0 0.0
    %3046 = vmatprep.subr.mxu0 0.0
    %3047 = vmatpush2.msra.mxu0 0.0
    %3048 = vmatprep.subr.mxu0 0.0
    %3049 = vmatpush2.msra.mxu0 0.0
    %3050 = vmatprep.subr.mxu0 0.0
    %3051 = vmatpush2.msra.mxu0 0.0
    %3052 = vmatprep.subr.mxu0 0.0
    %3053 = vmatpush2.msra.mxu0 0.0
    %3054 = vmatprep.subr.mxu0 0.0
    %3055 = vmatpush2.msra.mxu0 0.0
    %3056 = vmatprep.subr.mxu0 0.0
    %3057 = vmatpush2.msra.mxu0 0.0
    %3058 = vmatprep.subr.mxu0 0.0
    %3059 = vmatpush2.msra.mxu0 0.0
    %3060 = vmatprep.subr.mxu0 0.0
    %3061 = vmatpush2.msra.mxu0 0.0
    %3062 = vmatprep.subr.mxu0 0.0
    %3063 = vmatpush2.msra.mxu0 0.0
    %3064 = vmatprep.subr.mxu0 0.0
    %3065 = vmatpush2.msra.mxu0 0.0
    %3066 = vmatprep.subr.mxu0 0.0
    %3067 = vmatpush2.msra.mxu0 0.0
    %3068 = vmatprep.subr.mxu0 0.0
    %3069 = vmatpush2.msra.mxu0 0.0
    %3070 = vmatprep.subr.mxu0 0.0
    %3071 = vmatpush2.msra.mxu0 0.0
    %3072 = vmatprep.subr.mxu0 0.0
    %3073 = vmatpush2.msra.mxu0 0.0
    %3074 = vmatprep.subr.mxu0 0.0
    %3075 = vmatpush2.msra.mxu0 0.0
    %3076 = vmatprep.mubr.f32.mxu0 0.0
    %3077 = vmatmul.mubr.f32.gmra.mxu0 %v2940
    %v3078 = vpop.f32.mrf.mxu0
    %v3079 = vadd.f32 %v2451, %v3078
    %v3080 = vpop.f32.mrf.mxu0
    %3081 = vdwg.mxu0
    %v3082 = vadd.f32 %v2300, %v3008
    %v3083 = vxor.u32 %v3082, 2147483648
    %v3084 = vmul.f32 %v3083, 1.442695
    %v3085 = vpow.pop %v3084
    %v3086 = vadd.f32 %v3085, 1.0
    %v3087 = vrcp.pop %v3086
    %v3088 = vmul.f32 1.0, %v3087
    %v3089 = vadd.f32 %v2302, %v3010
    %v3090 = vxor.u32 %v3089, 2147483648
    %v3091 = vmul.f32 %v3090, 1.442695
    %v3092 = vpow.pop %v3091
    %v3093 = vadd.f32 %v3092, 1.0
    %v3094 = vrcp.pop %v3093
    %v3095 = vmul.f32 1.0, %v3094
    %v3096 = vmul.f32 %v3088, %v3079
    %v3097 = vadd.f32 %v2386, %v3096
    %v3098 = vtanh.pop %v3097
    %v3099 = vsub.f32 1.0, %v3095
    %v3100 = vmul.f32 %v3099, %v3098
    %v3101 = vmul.f32 %v3095, %v2940
    %v3102 = vadd.f32 %v3100, %v3101
    %3103 = vst [vmem:[%s69] sm:$0xff] %v3102
    %v3104 = vld [vmem:[#allocation30] sm:$0xff]
    %v3105 = vld [vmem:[#allocation30 + $0x8] sm:$0xff]
    %v3106 = vld [vmem:[#allocation30 + $0x10] sm:$0xff]
    %v3107 = vld [vmem:[#allocation30 + $0x18] sm:$0xff]
    %v3108 = vld [vmem:[#allocation30 + $0x20] sm:$0xff]
    %v3109 = vld [vmem:[#allocation30 + $0x28] sm:$0xff]
    %v3110 = vld [vmem:[#allocation30 + $0x30] sm:$0xff]
    %v3111 = vld [vmem:[#allocation30 + $0x38] sm:$0xff]
    %v3112 = vld [vmem:[#allocation30 + $0x40] sm:$0xff]
    %v3113 = vld [vmem:[#allocation30 + $0x48] sm:$0xff]
    %v3114 = vld [vmem:[#allocation30 + $0x50] sm:$0xff]
    %v3115 = vld [vmem:[#allocation30 + $0x58] sm:$0xff]
    %v3116 = vld [vmem:[#allocation30 + $0x60] sm:$0xff]
    %v3117 = vld [vmem:[#allocation30 + $0x68] sm:$0xff]
    %v3118 = vld [vmem:[#allocation30 + $0x70] sm:$0xff]
    %v3119 = vld [vmem:[#allocation30 + $0x78] sm:$0xff]
    %v3120 = vld [vmem:[#allocation31] sm:$0x1]
    %v3122 = vlaneseq
    %v3123 = vshrl.u32 %v3122, 7
    %v3124 = vsub.s32 0, %v3123
    %v3125 = vrot.slane %v3120, %v3124
    %3127 = vmatprep.subr.mxu0 0.0
    %3128 = vmatpush1.msra.mxu0 %v3119
    %3129 = vmatprep.subr.mxu0 0.0
    %3130 = vmatpush1.msra.mxu0 %v3118
    %3131 = vmatprep.subr.mxu0 0.0
    %3132 = vmatpush1.msra.mxu0 %v3117
    %3133 = vmatprep.subr.mxu0 0.0
    %3134 = vmatpush1.msra.mxu0 %v3116
    %3135 = vmatprep.subr.mxu0 0.0
    %3136 = vmatpush1.msra.mxu0 %v3115
    %3137 = vmatprep.subr.mxu0 0.0
    %3138 = vmatpush1.msra.mxu0 %v3114
    %3139 = vmatprep.subr.mxu0 0.0
    %3140 = vmatpush1.msra.mxu0 %v3113
    %3141 = vmatprep.subr.mxu0 0.0
    %3142 = vmatpush1.msra.mxu0 %v3112
    %3143 = vmatprep.subr.mxu0 0.0
    %3144 = vmatpush1.msra.mxu0 %v3111
    %3145 = vmatprep.subr.mxu0 0.0
    %3146 = vmatpush1.msra.mxu0 %v3110
    %3147 = vmatprep.subr.mxu0 0.0
    %3148 = vmatpush1.msra.mxu0 %v3109
    %3149 = vmatprep.subr.mxu0 0.0
    %3150 = vmatpush1.msra.mxu0 %v3108
    %3151 = vmatprep.subr.mxu0 0.0
    %3152 = vmatpush1.msra.mxu0 %v3107
    %3153 = vmatprep.subr.mxu0 0.0
    %3154 = vmatpush1.msra.mxu0 %v3106
    %3155 = vmatprep.subr.mxu0 0.0
    %3156 = vmatpush1.msra.mxu0 %v3105
    %3157 = vmatprep.subr.mxu0 0.0
    %3158 = vmatpush1.msra.mxu0 %v3104
    %3159 = vmatprep.subr.mxu0 0.0
    %3160 = vmatpush2.msra.mxu0 0.0
    %3161 = vmatprep.subr.mxu0 0.0
    %3162 = vmatpush2.msra.mxu0 0.0
    %3163 = vmatprep.subr.mxu0 0.0
    %3164 = vmatpush2.msra.mxu0 0.0
    %3165 = vmatprep.subr.mxu0 0.0
    %3166 = vmatpush2.msra.mxu0 0.0
    %3167 = vmatprep.subr.mxu0 0.0
    %3168 = vmatpush2.msra.mxu0 0.0
    %3169 = vmatprep.subr.mxu0 0.0
    %3170 = vmatpush2.msra.mxu0 0.0
    %3171 = vmatprep.subr.mxu0 0.0
    %3172 = vmatpush2.msra.mxu0 0.0
    %3173 = vmatprep.subr.mxu0 0.0
    %3174 = vmatpush2.msra.mxu0 0.0
    %3175 = vmatprep.subr.mxu0 0.0
    %3176 = vmatpush2.msra.mxu0 0.0
    %3177 = vmatprep.subr.mxu0 0.0
    %3178 = vmatpush2.msra.mxu0 0.0
    %3179 = vmatprep.subr.mxu0 0.0
    %3180 = vmatpush2.msra.mxu0 0.0
    %3181 = vmatprep.subr.mxu0 0.0
    %3182 = vmatpush2.msra.mxu0 0.0
    %3183 = vmatprep.subr.mxu0 0.0
    %3184 = vmatpush2.msra.mxu0 0.0
    %3185 = vmatprep.subr.mxu0 0.0
    %3186 = vmatpush2.msra.mxu0 0.0
    %3187 = vmatprep.subr.mxu0 0.0
    %3188 = vmatpush2.msra.mxu0 0.0
    %3189 = vmatprep.subr.mxu0 0.0
    %3190 = vmatpush2.msra.mxu0 0.0
    %3191 = vmatprep.mubr.f32.mxu0 0.0
    %3192 = vmatmul.mubr.f32.gmra.mxu0 %v2616
    %v3193 = vpop.f32.mrf.mxu0
    %v3194 = vadd.f32 %v3125, %v3193
    %v3195 = vpop.f32.mrf.mxu0
    %3196 = vmatprep.mubr.f32.mxu0 0.0
    %3197 = vmatmul.mubr.f32.gmra.mxu0 %v2778
    %v3198 = vpop.f32.mrf.mxu0
    %v3199 = vadd.f32 %v3125, %v3198
    %v3200 = vpop.f32.mrf.mxu0
    %3201 = vmatprep.mubr.f32.mxu0 0.0
    %3202 = vmatmul.mubr.f32.gmra.mxu0 %v2940
    %v3203 = vpop.f32.mrf.mxu0
    %v3204 = vadd.f32 %v3125, %v3203
    %v3205 = vpop.f32.mrf.mxu0
    %3206 = vmatprep.mubr.f32.mxu0 0.0
    %3207 = vmatmul.mubr.f32.gmra.mxu0 %v3102
    %v3208 = vpop.f32.mrf.mxu0
    %v3209 = vadd.f32 %v3125, %v3208
    %v3210 = vpop.f32.mrf.mxu0
    %3211 = vdwg.mxu0
    %3212 = vst [vmem:[%s67] sm:$0xff] %v3194
    %3213 = vst [vmem:[%s67 + $0x8] sm:$0xff] %v3199
    %3214 = vst [vmem:[%s67 + $0x10] sm:$0xff] %v3204
    %3215 = vst [vmem:[%s67 + $0x18] sm:$0xff] %v3209
    // Predicated region
    $region214: #{eeg_model_2_forward.1} parent=1 // pred_check
      _
    $region215: #{eeg_model_2_forward.1} parent=1 // pred_check_branch
      %3217 = sbr.rel (0) target = $region217
    $region216: #{eeg_model_2_forward.1} parent=1 // pred_region
      _
    $region217: #{eeg_model_2_forward.1} parent=1 // pred_fallthru
      _
    // Predicated region
    $region218: #{eeg_model_2_forward.1} parent=1 // pred_check
      _
    $region219: #{eeg_model_2_forward.1} parent=1 // pred_check_branch
      %3219 = sbr.rel (0) target = $region221
    $region220: #{eeg_model_2_forward.1} parent=1 // pred_region
      _
    $region221: #{eeg_model_2_forward.1} parent=1 // pred_fallthru
      _
    // Predicated region
    $region222: #{eeg_model_2_forward.1} parent=1 // pred_check
      _
    $region223: #{eeg_model_2_forward.1} parent=1 // pred_check_branch
      %3221 = sbr.rel (0) target = $region225
    $region224: #{eeg_model_2_forward.1} parent=1 // pred_region
      _
    $region225: #{eeg_model_2_forward.1} parent=1 // pred_fallthru
      _
    // Predicated region
    $region226: #{eeg_model_2_forward.1} parent=1 // pred_check
      _
    $region227: #{eeg_model_2_forward.1} parent=1 // pred_check_branch
      %3223 = sbr.rel (0) target = $region229
    $region228: #{eeg_model_2_forward.1} parent=1 // pred_region
      _
    $region229: #{eeg_model_2_forward.1} parent=1 // pred_fallthru
      _
    %3224 = vsyncpa [#allocation3], 1
    %3225 = vsyncpa [#allocation5], 1
    %3226 = vsyncpa [#allocation8], 1
    %3227 = vsyncpa [#allocation11], 1
    %3228 = vsyncpa [#allocation14], 1
    %3229 = vsyncpa [#allocation17], 1
    %3230 = vsyncpa [#allocation20], 1
    %3231 = vsyncpa [#allocation23], 1
    %3232 = vsyncpa [#allocation26], 1
    %3233 = vsyncpa [#allocation29], 1
    %3234 = vsyncpa [#allocation32], 1

</llo_original>
